<compile_context>
chip_gen: v7x
topology: tpu7x:2x2x1
jax: 0.10.0
libtpu: 0.0.40
codegen_flags: <defaults>
</compile_context>

<pallas_src>
import functools

import jax
import jax.numpy as jnp
from jax.experimental import pallas as pl
from jax.experimental.pallas import tpu as pltpu

LPAD = 8  # left/top halo region rounded up to a full sublane tile -> aligned center store


def _layernorm(x, gamma, beta, eps=1e-6):
    mu = jnp.mean(x, axis=-1, keepdims=True)
    var = jnp.mean((x - mu) ** 2, axis=-1, keepdims=True)
    return (x - mu) * jax.lax.rsqrt(var + eps) * gamma + beta


def fused_convnext_kernel(
    patches_ref, stem_w_ref, stem_b_ref, stem_g_ref, stem_bt_ref,
    dw_w_ref, dw_b_ref,
    blk_g_ref, blk_bt_ref, w1_ref, b1_ref, w2_ref, b2_ref, gamma_ref,
    head_g_ref, head_bt_ref, head_w_ref, head_b_ref,
    o_ref,
    pad_scr,
    *, Ho, Wo, K):
    C = stem_w_ref.shape[1]
    T = Ho * Wo
    P = K // 2
    base = LPAD - P  # read offset of the conv window inside the padded scratch

    # ---- Stem: patchify conv (matmul over flattened 4x4 patches, bf16 -> f32) + LN ----
    x = jnp.dot(patches_ref[0], stem_w_ref[...],
                preferred_element_type=jnp.float32) + stem_b_ref[...]
    feat = _layernorm(x, stem_g_ref[...], stem_bt_ref[...])            # [T, C] f32

    # ---- Depthwise 7x7 conv ('same'); halo kept in VMEM scratch, no HBM pad round-trip ----
    pad_scr[...] = jnp.zeros_like(pad_scr)
    # Center store starts at sublane offset LPAD (multiple of 8) -> tile-aligned store.
    pad_scr[LPAD:LPAD + Ho, LPAD:LPAD + Wo, :] = feat.reshape(Ho, Wo, C)
    padv = pad_scr[...]                                                # [LPAD+Ho+P, LPAD+Wo+P, C]

    acc = jnp.zeros((Ho, Wo, C), jnp.float32)
    for kw in range(K):
        col = padv[:, base + kw:base + kw + Wo, :]   # one sublane-axis slice per kw (K total)
        for kh in range(K):
            acc = acc + col[base + kh:base + kh + Ho] * dw_w_ref[kh * K + kw]  # tap: [1, C]
    dw = (acc + dw_b_ref[...]).reshape(T, C)

    # ---- ConvNeXt block tail: LN -> Linear(C,4C) -> GELU -> Linear(4C,C) -> scale -> +res ----
    xn = _layernorm(dw, blk_g_ref[...], blk_bt_ref[...])
    h = jnp.dot(xn.astype(jnp.bfloat16), w1_ref[...],
                preferred_element_type=jnp.float32) + b1_ref[...]
    # TODO(synk): PyTorch nn.GELU default is the exact erf GELU; tanh approximation used here.
    h = jax.nn.gelu(h, approximate=True)
    y = jnp.dot(h.astype(jnp.bfloat16), w2_ref[...],
                preferred_element_type=jnp.float32) + b2_ref[...]
    blk = feat + gamma_ref[...] * y                                    # [T, C]

    # ---- Fused global average pool + LayerNorm + classifier head (lane-padded output) ----
    pooled = jnp.mean(blk, axis=0, keepdims=True)                      # [1, C]
    pn = _layernorm(pooled, head_g_ref[...], head_bt_ref[...])
    logits = jnp.dot(pn.astype(jnp.bfloat16), head_w_ref[...],
                     preferred_element_type=jnp.float32) + head_b_ref[...]
    o_ref[...] = logits.reshape(1, 1, -1)


# ---------------- Parameters (deterministic, synthetic) ----------------

def init_params(key, in_chans=3, dim=128, num_classes=10, patch=4, ksize=7, ncls_pad=128):
    ks = jax.random.split(key, 5)
    nrm = lambda k, shape, scale=0.02: jax.random.normal(k, shape, jnp.float32) * scale
    head_w = jnp.zeros((dim, ncls_pad), jnp.float32).at[:, :num_classes].set(
        nrm(ks[4], (dim, num_classes)))
    return dict(
        stem_w=nrm(ks[0], (patch * patch * in_chans, dim)).astype(jnp.bfloat16),
        stem_b=jnp.zeros((1, dim), jnp.float32),
        stem_ln_g=jnp.ones((1, dim), jnp.float32),
        stem_ln_b=jnp.zeros((1, dim), jnp.float32),
        dw_w=nrm(ks[1], (ksize * ksize, 1, dim)),       # [K*K, 1, C], tap-major
        dw_b=jnp.zeros((1, dim), jnp.float32),
        blk_ln_g=jnp.ones((1, dim), jnp.float32),
        blk_ln_b=jnp.zeros((1, dim), jnp.float32),
        blk_w1=nrm(ks[2], (dim, 4 * dim)).astype(jnp.bfloat16),
        blk_b1=jnp.zeros((1, 4 * dim), jnp.float32),
        blk_w2=nrm(ks[3], (4 * dim, dim)).astype(jnp.bfloat16),
        blk_b2=jnp.zeros((1, dim), jnp.float32),
        blk_gamma=jnp.full((1, dim), 1e-6, jnp.float32),
        head_ln_g=jnp.ones((1, dim), jnp.float32),
        head_ln_b=jnp.zeros((1, dim), jnp.float32),
        head_w=head_w.astype(jnp.bfloat16),             # [C, 128] lane-padded classifier
        head_b=jnp.zeros((1, ncls_pad), jnp.float32),
    )


# ---------------- Forward: one fused, gridded Pallas kernel ----------------

def convnext_forward(x_nchw, params, *, patch=4, ksize=7, num_classes=10):
    N, Cin, H, W = x_nchw.shape
    C = params["stem_w"].shape[1]
    ncls_pad = params["head_w"].shape[1]
    Ho, Wo = H // patch, W // patch
    T = Ho * Wo
    ppc = patch * patch * Cin

    x = jnp.transpose(x_nchw, (0, 2, 3, 1))  # NCHW -> NHWC
    patches = (
        x.reshape(N, Ho, patch, Wo, patch, Cin)
        .transpose(0, 1, 3, 2, 4, 5)
        .reshape(N, T, ppc)
        .astype(jnp.bfloat16)                # bf16 activations into the MXU, f32 accumulation
    )

    def resident(arr):                        # weights stay VMEM-resident across the grid
        nd = arr.ndim
        return pl.BlockSpec(arr.shape, lambda i, _nd=nd: (0,) * _nd)

    weight_names = ("stem_w", "stem_b", "stem_ln_g", "stem_ln_b",
                    "dw_w", "dw_b",
                    "blk_ln_g", "blk_ln_b", "blk_w1", "blk_b1",
                    "blk_w2", "blk_b2", "blk_gamma",
                    "head_ln_g", "head_ln_b", "head_w", "head_b")
    weights = [params[n] for n in weight_names]

    grid_spec = pltpu.PrefetchScalarGridSpec(
        num_scalar_prefetch=0,
        grid=(N,),
        in_specs=[pl.BlockSpec((1, T, ppc), lambda i: (i, 0, 0))]
                 + [resident(w) for w in weights],
        out_specs=pl.BlockSpec((1, 1, ncls_pad), lambda i: (i, 0, 0)),
        scratch_shapes=[pltpu.VMEM((LPAD + Ho + ksize // 2, LPAD + Wo + ksize // 2, C),
                                   jnp.float32)],
    )

    out = pl.pallas_call(
        functools.partial(fused_convnext_kernel, Ho=Ho, Wo=Wo, K=ksize),
        out_shape=jax.ShapeDtypeStruct((N, 1, ncls_pad), jnp.float32),
        grid_spec=grid_spec,
        compiler_params=pltpu.CompilerParams(
            dimension_semantics=("parallel",),       # shard batch across TCs (v7x megacore)
            vmem_limit_bytes=48 * 1024 * 1024,       # explicit; fits v7x's 64 MiB VMEM
        ),
    )(patches, *weights)

    return out.reshape(N, ncls_pad)[:, :num_classes]


if __name__ == "__main__":
    key = jax.random.PRNGKey(0)
    kx, kp = jax.random.split(key)
    # NCHW input like the PyTorch module (batch=2, channels=3, spatial=32x32)
    x = jax.random.normal(kx, (2, 3, 32, 32), jnp.float32)
    params = init_params(kp, in_chans=3, dim=128, num_classes=10)

    fwd = jax.jit(convnext_forward)
    out = fwd(x, params)
    jax.block_until_ready(out)
    assert out.shape == (2, 10) and out.dtype == jnp.float32
    print("KERNEL_OK")
</pallas_src>

<mosaic_0001>
module attributes {stable_mosaic.version = 11 : i64} {
  func.func @fused_convnext_kernel(%arg0: i32, %arg1: memref<1x64x48xbf16, #tpu.memory_space<vmem>>, %arg2: memref<48x128xbf16, #tpu.memory_space<vmem>>, %arg3: memref<1x128xf32, #tpu.memory_space<vmem>>, %arg4: memref<1x128xf32, #tpu.memory_space<vmem>>, %arg5: memref<1x128xf32, #tpu.memory_space<vmem>>, %arg6: memref<49x1x128xf32, #tpu.memory_space<vmem>>, %arg7: memref<1x128xf32, #tpu.memory_space<vmem>>, %arg8: memref<1x128xf32, #tpu.memory_space<vmem>>, %arg9: memref<1x128xf32, #tpu.memory_space<vmem>>, %arg10: memref<128x512xbf16, #tpu.memory_space<vmem>>, %arg11: memref<1x512xf32, #tpu.memory_space<vmem>>, %arg12: memref<512x128xbf16, #tpu.memory_space<vmem>>, %arg13: memref<1x128xf32, #tpu.memory_space<vmem>>, %arg14: memref<1x128xf32, #tpu.memory_space<vmem>>, %arg15: memref<1x128xf32, #tpu.memory_space<vmem>>, %arg16: memref<1x128xf32, #tpu.memory_space<vmem>>, %arg17: memref<128x128xbf16, #tpu.memory_space<vmem>>, %arg18: memref<1x128xf32, #tpu.memory_space<vmem>>, %arg19: memref<1x1x128xf32, #tpu.memory_space<vmem>>, %arg20: memref<19x19x128xf32, #tpu.memory_space<vmem>>) attributes {dimension_semantics = [#tpu.dimension_semantics<parallel>], iteration_bounds = array<i64: 2>, scalar_prefetch = 0 : i64, scratch_operands = 1 : i64, tpu.core_type = #tpu.core_type<tc>, window_params = [{transform_indices = @transform_0, window_bounds = array<i64: 1, 64, 48>}, {pipeline_mode = #tpu.pipeline_mode<synchronous>, transform_indices = @transform_1, window_bounds = array<i64: 48, 128>}, {pipeline_mode = #tpu.pipeline_mode<synchronous>, transform_indices = @transform_2, window_bounds = array<i64: 1, 128>}, {pipeline_mode = #tpu.pipeline_mode<synchronous>, transform_indices = @transform_3, window_bounds = array<i64: 1, 128>}, {pipeline_mode = #tpu.pipeline_mode<synchronous>, transform_indices = @transform_4, window_bounds = array<i64: 1, 128>}, {pipeline_mode = #tpu.pipeline_mode<synchronous>, transform_indices = @transform_5, window_bounds = array<i64: 49, 1, 128>}, {pipeline_mode = #tpu.pipeline_mode<synchronous>, transform_indices = @transform_6, window_bounds = array<i64: 1, 128>}, {pipeline_mode = #tpu.pipeline_mode<synchronous>, transform_indices = @transform_7, window_bounds = array<i64: 1, 128>}, {pipeline_mode = #tpu.pipeline_mode<synchronous>, transform_indices = @transform_8, window_bounds = array<i64: 1, 128>}, {pipeline_mode = #tpu.pipeline_mode<synchronous>, transform_indices = @transform_9, window_bounds = array<i64: 128, 512>}, {pipeline_mode = #tpu.pipeline_mode<synchronous>, transform_indices = @transform_10, window_bounds = array<i64: 1, 512>}, {pipeline_mode = #tpu.pipeline_mode<synchronous>, transform_indices = @transform_11, window_bounds = array<i64: 512, 128>}, {pipeline_mode = #tpu.pipeline_mode<synchronous>, transform_indices = @transform_12, window_bounds = array<i64: 1, 128>}, {pipeline_mode = #tpu.pipeline_mode<synchronous>, transform_indices = @transform_13, window_bounds = array<i64: 1, 128>}, {pipeline_mode = #tpu.pipeline_mode<synchronous>, transform_indices = @transform_14, window_bounds = array<i64: 1, 128>}, {pipeline_mode = #tpu.pipeline_mode<synchronous>, transform_indices = @transform_15, window_bounds = array<i64: 1, 128>}, {pipeline_mode = #tpu.pipeline_mode<synchronous>, transform_indices = @transform_16, window_bounds = array<i64: 128, 128>}, {pipeline_mode = #tpu.pipeline_mode<synchronous>, transform_indices = @transform_17, window_bounds = array<i64: 1, 128>}, {transform_indices = @transform_18, window_bounds = array<i64: 1, 1, 128>}]} {
    %c0 = arith.constant 0 : index
    %c0_0 = arith.constant 0 : index
    %c0_1 = arith.constant 0 : index
    %0 = vector.load %arg1[%c0, %c0_0, %c0_1] : memref<1x64x48xbf16, #tpu.memory_space<vmem>>, vector<1x64x48xbf16>
    %1 = vector.shape_cast %0 : vector<1x64x48xbf16> to vector<64x48xbf16>
    %c0_2 = arith.constant 0 : index
    %c0_3 = arith.constant 0 : index
    %2 = vector.load %arg2[%c0_2, %c0_3] : memref<48x128xbf16, #tpu.memory_space<vmem>>, vector<48x128xbf16>
    %cst = arith.constant dense<0.000000e+00> : vector<64x128xf32>
    %3 = tpu.matmul %1, %2, %cst {dimension_numbers = #tpu.dot_dimension_numbers<[1], [0], [0], [1], [0, 0, 1, 1], [], []>} : vector<64x48xbf16>, vector<48x128xbf16>, vector<64x128xf32> -> vector<64x128xf32>
    %c0_4 = arith.constant 0 : index
    %c0_5 = arith.constant 0 : index
    %4 = vector.load %arg3[%c0_4, %c0_5] : memref<1x128xf32, #tpu.memory_space<vmem>>, vector<1x128xf32>
    %5 = vector.broadcast %4 : vector<1x128xf32> to vector<64x128xf32>
    %6 = arith.addf %3, %5 : vector<64x128xf32>
    %c0_6 = arith.constant 0 : index
    %c0_7 = arith.constant 0 : index
    %7 = vector.load %arg4[%c0_6, %c0_7] : memref<1x128xf32, #tpu.memory_space<vmem>>, vector<1x128xf32>
    %c0_8 = arith.constant 0 : index
    %c0_9 = arith.constant 0 : index
    %8 = vector.load %arg5[%c0_8, %c0_9] : memref<1x128xf32, #tpu.memory_space<vmem>>, vector<1x128xf32>
    %cst_10 = arith.constant dense<0.000000e+00> : vector<64xf32>
    %9 = vector.multi_reduction <add>, %6, %cst_10 [1] : vector<64x128xf32> to vector<64xf32>
    %10 = vector.shape_cast %9 : vector<64xf32> to vector<64x1xf32>
    %cst_11 = arith.constant 1.280000e+02 : f32
    %11 = vector.broadcast %cst_11 : f32 to vector<64x1xf32>
    %12 = arith.divf %10, %11 : vector<64x1xf32>
    %13 = vector.broadcast %12 : vector<64x1xf32> to vector<64x128xf32>
    %14 = arith.subf %6, %13 : vector<64x128xf32>
    %15 = arith.mulf %14, %14 : vector<64x128xf32>
    %cst_12 = arith.constant dense<0.000000e+00> : vector<64xf32>
    %16 = vector.multi_reduction <add>, %15, %cst_12 [1] : vector<64x128xf32> to vector<64xf32>
    %17 = vector.shape_cast %16 : vector<64xf32> to vector<64x1xf32>
    %cst_13 = arith.constant 1.280000e+02 : f32
    %18 = vector.broadcast %cst_13 : f32 to vector<64x1xf32>
    %19 = arith.divf %17, %18 : vector<64x1xf32>
    %20 = vector.broadcast %12 : vector<64x1xf32> to vector<64x128xf32>
    %21 = arith.subf %6, %20 : vector<64x128xf32>
    %cst_14 = arith.constant 9.99999997E-7 : f32
    %22 = vector.broadcast %cst_14 : f32 to vector<64x1xf32>
    %23 = arith.addf %19, %22 : vector<64x1xf32>
    %24 = math.rsqrt %23 : vector<64x1xf32>
    %25 = vector.broadcast %24 : vector<64x1xf32> to vector<64x128xf32>
    %26 = arith.mulf %21, %25 : vector<64x128xf32>
    %27 = vector.broadcast %7 : vector<1x128xf32> to vector<64x128xf32>
    %28 = arith.mulf %26, %27 : vector<64x128xf32>
    %29 = vector.broadcast %8 : vector<1x128xf32> to vector<64x128xf32>
    %30 = arith.addf %28, %29 : vector<64x128xf32>
    %cst_15 = arith.constant 0.000000e+00 : f32
    %31 = vector.broadcast %cst_15 : f32 to vector<19x19x128xf32>
    %c0_16 = arith.constant 0 : index
    %c0_17 = arith.constant 0 : index
    %c0_18 = arith.constant 0 : index
    %32 = vector.load %arg20[%c0_16, %c0_17, %c0_18] : memref<19x19x128xf32, #tpu.memory_space<vmem>>, vector<19x19x128xf32>
    tpu.vector_store %arg20[%c0_16, %c0_17, %c0_18], %31 {strides = array<i32>} : memref<19x19x128xf32, #tpu.memory_space<vmem>>, vector<19x19x128xf32>,
    %33 = vector.shape_cast %30 : vector<64x128xf32> to vector<8x8x128xf32>
    %c8 = arith.constant 8 : index
    %c8_19 = arith.constant 8 : index
    %c0_20 = arith.constant 0 : index
    %34 = vector.load %arg20[%c8, %c8_19, %c0_20] : memref<19x19x128xf32, #tpu.memory_space<vmem>>, vector<8x8x128xf32>
    tpu.vector_store %arg20[%c8, %c8_19, %c0_20], %33 {strides = array<i32>} : memref<19x19x128xf32, #tpu.memory_space<vmem>>, vector<8x8x128xf32>,
    %c0_21 = arith.constant 0 : index
    %c0_22 = arith.constant 0 : index
    %c0_23 = arith.constant 0 : index
    %35 = vector.load %arg20[%c0_21, %c0_22, %c0_23] : memref<19x19x128xf32, #tpu.memory_space<vmem>>, vector<19x19x128xf32>
    %cst_24 = arith.constant 0.000000e+00 : f32
    %36 = vector.broadcast %cst_24 : f32 to vector<8x8x128xf32>
    %37 = vector.extract_strided_slice %35 {offsets = [0, 5, 0], sizes = [19, 8, 128], strides = [1, 1, 1]} : vector<19x19x128xf32> to vector<19x8x128xf32>
    %38 = vector.extract_strided_slice %37 {offsets = [5, 0, 0], sizes = [8, 8, 128], strides = [1, 1, 1]} : vector<19x8x128xf32> to vector<8x8x128xf32>
    %c0_25 = arith.constant 0 : index
    %c0_26 = arith.constant 0 : index
    %c0_27 = arith.constant 0 : index
    %39 = vector.load %arg6[%c0_25, %c0_26, %c0_27] : memref<49x1x128xf32, #tpu.memory_space<vmem>>, vector<1x1x128xf32>
    %40 = vector.shape_cast %39 : vector<1x1x128xf32> to vector<1x128xf32>
    %41 = vector.shape_cast %40 : vector<1x128xf32> to vector<1x1x128xf32>
    %42 = vector.broadcast %41 : vector<1x1x128xf32> to vector<8x8x128xf32>
    %43 = arith.mulf %38, %42 : vector<8x8x128xf32>
    %44 = arith.addf %36, %43 : vector<8x8x128xf32>
    %45 = vector.extract_strided_slice %37 {offsets = [6, 0, 0], sizes = [8, 8, 128], strides = [1, 1, 1]} : vector<19x8x128xf32> to vector<8x8x128xf32>
    %c7 = arith.constant 7 : index
    %c0_28 = arith.constant 0 : index
    %c0_29 = arith.constant 0 : index
    %46 = vector.load %arg6[%c7, %c0_28, %c0_29] : memref<49x1x128xf32, #tpu.memory_space<vmem>>, vector<1x1x128xf32>
    %47 = vector.shape_cast %46 : vector<1x1x128xf32> to vector<1x128xf32>
    %48 = vector.shape_cast %47 : vector<1x128xf32> to vector<1x1x128xf32>
    %49 = vector.broadcast %48 : vector<1x1x128xf32> to vector<8x8x128xf32>
    %50 = arith.mulf %45, %49 : vector<8x8x128xf32>
    %51 = arith.addf %44, %50 : vector<8x8x128xf32>
    %52 = vector.extract_strided_slice %37 {offsets = [7, 0, 0], sizes = [8, 8, 128], strides = [1, 1, 1]} : vector<19x8x128xf32> to vector<8x8x128xf32>
    %c14 = arith.constant 14 : index
    %c0_30 = arith.constant 0 : index
    %c0_31 = arith.constant 0 : index
    %53 = vector.load %arg6[%c14, %c0_30, %c0_31] : memref<49x1x128xf32, #tpu.memory_space<vmem>>, vector<1x1x128xf32>
    %54 = vector.shape_cast %53 : vector<1x1x128xf32> to vector<1x128xf32>
    %55 = vector.shape_cast %54 : vector<1x128xf32> to vector<1x1x128xf32>
    %56 = vector.broadcast %55 : vector<1x1x128xf32> to vector<8x8x128xf32>
    %57 = arith.mulf %52, %56 : vector<8x8x128xf32>
    %58 = arith.addf %51, %57 : vector<8x8x128xf32>
    %59 = vector.extract_strided_slice %37 {offsets = [8, 0, 0], sizes = [8, 8, 128], strides = [1, 1, 1]} : vector<19x8x128xf32> to vector<8x8x128xf32>
    %c21 = arith.constant 21 : index
    %c0_32 = arith.constant 0 : index
    %c0_33 = arith.constant 0 : index
    %60 = vector.load %arg6[%c21, %c0_32, %c0_33] : memref<49x1x128xf32, #tpu.memory_space<vmem>>, vector<1x1x128xf32>
    %61 = vector.shape_cast %60 : vector<1x1x128xf32> to vector<1x128xf32>
    %62 = vector.shape_cast %61 : vector<1x128xf32> to vector<1x1x128xf32>
    %63 = vector.broadcast %62 : vector<1x1x128xf32> to vector<8x8x128xf32>
    %64 = arith.mulf %59, %63 : vector<8x8x128xf32>
    %65 = arith.addf %58, %64 : vector<8x8x128xf32>
    %66 = vector.extract_strided_slice %37 {offsets = [9, 0, 0], sizes = [8, 8, 128], strides = [1, 1, 1]} : vector<19x8x128xf32> to vector<8x8x128xf32>
    %c28 = arith.constant 28 : index
    %c0_34 = arith.constant 0 : index
    %c0_35 = arith.constant 0 : index
    %67 = vector.load %arg6[%c28, %c0_34, %c0_35] : memref<49x1x128xf32, #tpu.memory_space<vmem>>, vector<1x1x128xf32>
    %68 = vector.shape_cast %67 : vector<1x1x128xf32> to vector<1x128xf32>
    %69 = vector.shape_cast %68 : vector<1x128xf32> to vector<1x1x128xf32>
    %70 = vector.broadcast %69 : vector<1x1x128xf32> to vector<8x8x128xf32>
    %71 = arith.mulf %66, %70 : vector<8x8x128xf32>
    %72 = arith.addf %65, %71 : vector<8x8x128xf32>
    %73 = vector.extract_strided_slice %37 {offsets = [10, 0, 0], sizes = [8, 8, 128], strides = [1, 1, 1]} : vector<19x8x128xf32> to vector<8x8x128xf32>
    %c35 = arith.constant 35 : index
    %c0_36 = arith.constant 0 : index
    %c0_37 = arith.constant 0 : index
    %74 = vector.load %arg6[%c35, %c0_36, %c0_37] : memref<49x1x128xf32, #tpu.memory_space<vmem>>, vector<1x1x128xf32>
    %75 = vector.shape_cast %74 : vector<1x1x128xf32> to vector<1x128xf32>
    %76 = vector.shape_cast %75 : vector<1x128xf32> to vector<1x1x128xf32>
    %77 = vector.broadcast %76 : vector<1x1x128xf32> to vector<8x8x128xf32>
    %78 = arith.mulf %73, %77 : vector<8x8x128xf32>
    %79 = arith.addf %72, %78 : vector<8x8x128xf32>
    %80 = vector.extract_strided_slice %37 {offsets = [11, 0, 0], sizes = [8, 8, 128], strides = [1, 1, 1]} : vector<19x8x128xf32> to vector<8x8x128xf32>
    %c42 = arith.constant 42 : index
    %c0_38 = arith.constant 0 : index
    %c0_39 = arith.constant 0 : index
    %81 = vector.load %arg6[%c42, %c0_38, %c0_39] : memref<49x1x128xf32, #tpu.memory_space<vmem>>, vector<1x1x128xf32>
    %82 = vector.shape_cast %81 : vector<1x1x128xf32> to vector<1x128xf32>
    %83 = vector.shape_cast %82 : vector<1x128xf32> to vector<1x1x128xf32>
    %84 = vector.broadcast %83 : vector<1x1x128xf32> to vector<8x8x128xf32>
    %85 = arith.mulf %80, %84 : vector<8x8x128xf32>
    %86 = arith.addf %79, %85 : vector<8x8x128xf32>
    %87 = vector.extract_strided_slice %35 {offsets = [0, 6, 0], sizes = [19, 8, 128], strides = [1, 1, 1]} : vector<19x19x128xf32> to vector<19x8x128xf32>
    %88 = vector.extract_strided_slice %87 {offsets = [5, 0, 0], sizes = [8, 8, 128], strides = [1, 1, 1]} : vector<19x8x128xf32> to vector<8x8x128xf32>
    %c1 = arith.constant 1 : index
    %c0_40 = arith.constant 0 : index
    %c0_41 = arith.constant 0 : index
    %89 = vector.load %arg6[%c1, %c0_40, %c0_41] : memref<49x1x128xf32, #tpu.memory_space<vmem>>, vector<1x1x128xf32>
    %90 = vector.shape_cast %89 : vector<1x1x128xf32> to vector<1x128xf32>
    %91 = vector.shape_cast %90 : vector<1x128xf32> to vector<1x1x128xf32>
    %92 = vector.broadcast %91 : vector<1x1x128xf32> to vector<8x8x128xf32>
    %93 = arith.mulf %88, %92 : vector<8x8x128xf32>
    %94 = arith.addf %86, %93 : vector<8x8x128xf32>
    %95 = vector.extract_strided_slice %87 {offsets = [6, 0, 0], sizes = [8, 8, 128], strides = [1, 1, 1]} : vector<19x8x128xf32> to vector<8x8x128xf32>
    %c8_42 = arith.constant 8 : index
    %c0_43 = arith.constant 0 : index
    %c0_44 = arith.constant 0 : index
    %96 = vector.load %arg6[%c8_42, %c0_43, %c0_44] : memref<49x1x128xf32, #tpu.memory_space<vmem>>, vector<1x1x128xf32>
    %97 = vector.shape_cast %96 : vector<1x1x128xf32> to vector<1x128xf32>
    %98 = vector.shape_cast %97 : vector<1x128xf32> to vector<1x1x128xf32>
    %99 = vector.broadcast %98 : vector<1x1x128xf32> to vector<8x8x128xf32>
    %100 = arith.mulf %95, %99 : vector<8x8x128xf32>
    %101 = arith.addf %94, %100 : vector<8x8x128xf32>
    %102 = vector.extract_strided_slice %87 {offsets = [7, 0, 0], sizes = [8, 8, 128], strides = [1, 1, 1]} : vector<19x8x128xf32> to vector<8x8x128xf32>
    %c15 = arith.constant 15 : index
    %c0_45 = arith.constant 0 : index
    %c0_46 = arith.constant 0 : index
    %103 = vector.load %arg6[%c15, %c0_45, %c0_46] : memref<49x1x128xf32, #tpu.memory_space<vmem>>, vector<1x1x128xf32>
    %104 = vector.shape_cast %103 : vector<1x1x128xf32> to vector<1x128xf32>
    %105 = vector.shape_cast %104 : vector<1x128xf32> to vector<1x1x128xf32>
    %106 = vector.broadcast %105 : vector<1x1x128xf32> to vector<8x8x128xf32>
    %107 = arith.mulf %102, %106 : vector<8x8x128xf32>
    %108 = arith.addf %101, %107 : vector<8x8x128xf32>
    %109 = vector.extract_strided_slice %87 {offsets = [8, 0, 0], sizes = [8, 8, 128], strides = [1, 1, 1]} : vector<19x8x128xf32> to vector<8x8x128xf32>
    %c22 = arith.constant 22 : index
    %c0_47 = arith.constant 0 : index
    %c0_48 = arith.constant 0 : index
    %110 = vector.load %arg6[%c22, %c0_47, %c0_48] : memref<49x1x128xf32, #tpu.memory_space<vmem>>, vector<1x1x128xf32>
    %111 = vector.shape_cast %110 : vector<1x1x128xf32> to vector<1x128xf32>
    %112 = vector.shape_cast %111 : vector<1x128xf32> to vector<1x1x128xf32>
    %113 = vector.broadcast %112 : vector<1x1x128xf32> to vector<8x8x128xf32>
    %114 = arith.mulf %109, %113 : vector<8x8x128xf32>
    %115 = arith.addf %108, %114 : vector<8x8x128xf32>
    %116 = vector.extract_strided_slice %87 {offsets = [9, 0, 0], sizes = [8, 8, 128], strides = [1, 1, 1]} : vector<19x8x128xf32> to vector<8x8x128xf32>
    %c29 = arith.constant 29 : index
    %c0_49 = arith.constant 0 : index
    %c0_50 = arith.constant 0 : index
    %117 = vector.load %arg6[%c29, %c0_49, %c0_50] : memref<49x1x128xf32, #tpu.memory_space<vmem>>, vector<1x1x128xf32>
    %118 = vector.shape_cast %117 : vector<1x1x128xf32> to vector<1x128xf32>
    %119 = vector.shape_cast %118 : vector<1x128xf32> to vector<1x1x128xf32>
    %120 = vector.broadcast %119 : vector<1x1x128xf32> to vector<8x8x128xf32>
    %121 = arith.mulf %116, %120 : vector<8x8x128xf32>
    %122 = arith.addf %115, %121 : vector<8x8x128xf32>
    %123 = vector.extract_strided_slice %87 {offsets = [10, 0, 0], sizes = [8, 8, 128], strides = [1, 1, 1]} : vector<19x8x128xf32> to vector<8x8x128xf32>
    %c36 = arith.constant 36 : index
    %c0_51 = arith.constant 0 : index
    %c0_52 = arith.constant 0 : index
    %124 = vector.load %arg6[%c36, %c0_51, %c0_52] : memref<49x1x128xf32, #tpu.memory_space<vmem>>, vector<1x1x128xf32>
    %125 = vector.shape_cast %124 : vector<1x1x128xf32> to vector<1x128xf32>
    %126 = vector.shape_cast %125 : vector<1x128xf32> to vector<1x1x128xf32>
    %127 = vector.broadcast %126 : vector<1x1x128xf32> to vector<8x8x128xf32>
    %128 = arith.mulf %123, %127 : vector<8x8x128xf32>
    %129 = arith.addf %122, %128 : vector<8x8x128xf32>
    %130 = vector.extract_strided_slice %87 {offsets = [11, 0, 0], sizes = [8, 8, 128], strides = [1, 1, 1]} : vector<19x8x128xf32> to vector<8x8x128xf32>
    %c43 = arith.constant 43 : index
    %c0_53 = arith.constant 0 : index
    %c0_54 = arith.constant 0 : index
    %131 = vector.load %arg6[%c43, %c0_53, %c0_54] : memref<49x1x128xf32, #tpu.memory_space<vmem>>, vector<1x1x128xf32>
    %132 = vector.shape_cast %131 : vector<1x1x128xf32> to vector<1x128xf32>
    %133 = vector.shape_cast %132 : vector<1x128xf32> to vector<1x1x128xf32>
    %134 = vector.broadcast %133 : vector<1x1x128xf32> to vector<8x8x128xf32>
    %135 = arith.mulf %130, %134 : vector<8x8x128xf32>
    %136 = arith.addf %129, %135 : vector<8x8x128xf32>
    %137 = vector.extract_strided_slice %35 {offsets = [0, 7, 0], sizes = [19, 8, 128], strides = [1, 1, 1]} : vector<19x19x128xf32> to vector<19x8x128xf32>
    %138 = vector.extract_strided_slice %137 {offsets = [5, 0, 0], sizes = [8, 8, 128], strides = [1, 1, 1]} : vector<19x8x128xf32> to vector<8x8x128xf32>
    %c2 = arith.constant 2 : index
    %c0_55 = arith.constant 0 : index
    %c0_56 = arith.constant 0 : index
    %139 = vector.load %arg6[%c2, %c0_55, %c0_56] : memref<49x1x128xf32, #tpu.memory_space<vmem>>, vector<1x1x128xf32>
    %140 = vector.shape_cast %139 : vector<1x1x128xf32> to vector<1x128xf32>
    %141 = vector.shape_cast %140 : vector<1x128xf32> to vector<1x1x128xf32>
    %142 = vector.broadcast %141 : vector<1x1x128xf32> to vector<8x8x128xf32>
    %143 = arith.mulf %138, %142 : vector<8x8x128xf32>
    %144 = arith.addf %136, %143 : vector<8x8x128xf32>
    %145 = vector.extract_strided_slice %137 {offsets = [6, 0, 0], sizes = [8, 8, 128], strides = [1, 1, 1]} : vector<19x8x128xf32> to vector<8x8x128xf32>
    %c9 = arith.constant 9 : index
    %c0_57 = arith.constant 0 : index
    %c0_58 = arith.constant 0 : index
    %146 = vector.load %arg6[%c9, %c0_57, %c0_58] : memref<49x1x128xf32, #tpu.memory_space<vmem>>, vector<1x1x128xf32>
    %147 = vector.shape_cast %146 : vector<1x1x128xf32> to vector<1x128xf32>
    %148 = vector.shape_cast %147 : vector<1x128xf32> to vector<1x1x128xf32>
    %149 = vector.broadcast %148 : vector<1x1x128xf32> to vector<8x8x128xf32>
    %150 = arith.mulf %145, %149 : vector<8x8x128xf32>
    %151 = arith.addf %144, %150 : vector<8x8x128xf32>
    %152 = vector.extract_strided_slice %137 {offsets = [7, 0, 0], sizes = [8, 8, 128], strides = [1, 1, 1]} : vector<19x8x128xf32> to vector<8x8x128xf32>
    %c16 = arith.constant 16 : index
    %c0_59 = arith.constant 0 : index
    %c0_60 = arith.constant 0 : index
    %153 = vector.load %arg6[%c16, %c0_59, %c0_60] : memref<49x1x128xf32, #tpu.memory_space<vmem>>, vector<1x1x128xf32>
    %154 = vector.shape_cast %153 : vector<1x1x128xf32> to vector<1x128xf32>
    %155 = vector.shape_cast %154 : vector<1x128xf32> to vector<1x1x128xf32>
    %156 = vector.broadcast %155 : vector<1x1x128xf32> to vector<8x8x128xf32>
    %157 = arith.mulf %152, %156 : vector<8x8x128xf32>
    %158 = arith.addf %151, %157 : vector<8x8x128xf32>
    %159 = vector.extract_strided_slice %137 {offsets = [8, 0, 0], sizes = [8, 8, 128], strides = [1, 1, 1]} : vector<19x8x128xf32> to vector<8x8x128xf32>
    %c23 = arith.constant 23 : index
    %c0_61 = arith.constant 0 : index
    %c0_62 = arith.constant 0 : index
    %160 = vector.load %arg6[%c23, %c0_61, %c0_62] : memref<49x1x128xf32, #tpu.memory_space<vmem>>, vector<1x1x128xf32>
    %161 = vector.shape_cast %160 : vector<1x1x128xf32> to vector<1x128xf32>
    %162 = vector.shape_cast %161 : vector<1x128xf32> to vector<1x1x128xf32>
    %163 = vector.broadcast %162 : vector<1x1x128xf32> to vector<8x8x128xf32>
    %164 = arith.mulf %159, %163 : vector<8x8x128xf32>
    %165 = arith.addf %158, %164 : vector<8x8x128xf32>
    %166 = vector.extract_strided_slice %137 {offsets = [9, 0, 0], sizes = [8, 8, 128], strides = [1, 1, 1]} : vector<19x8x128xf32> to vector<8x8x128xf32>
    %c30 = arith.constant 30 : index
    %c0_63 = arith.constant 0 : index
    %c0_64 = arith.constant 0 : index
    %167 = vector.load %arg6[%c30, %c0_63, %c0_64] : memref<49x1x128xf32, #tpu.memory_space<vmem>>, vector<1x1x128xf32>
    %168 = vector.shape_cast %167 : vector<1x1x128xf32> to vector<1x128xf32>
    %169 = vector.shape_cast %168 : vector<1x128xf32> to vector<1x1x128xf32>
    %170 = vector.broadcast %169 : vector<1x1x128xf32> to vector<8x8x128xf32>
    %171 = arith.mulf %166, %170 : vector<8x8x128xf32>
    %172 = arith.addf %165, %171 : vector<8x8x128xf32>
    %173 = vector.extract_strided_slice %137 {offsets = [10, 0, 0], sizes = [8, 8, 128], strides = [1, 1, 1]} : vector<19x8x128xf32> to vector<8x8x128xf32>
    %c37 = arith.constant 37 : index
    %c0_65 = arith.constant 0 : index
    %c0_66 = arith.constant 0 : index
    %174 = vector.load %arg6[%c37, %c0_65, %c0_66] : memref<49x1x128xf32, #tpu.memory_space<vmem>>, vector<1x1x128xf32>
    %175 = vector.shape_cast %174 : vector<1x1x128xf32> to vector<1x128xf32>
    %176 = vector.shape_cast %175 : vector<1x128xf32> to vector<1x1x128xf32>
    %177 = vector.broadcast %176 : vector<1x1x128xf32> to vector<8x8x128xf32>
    %178 = arith.mulf %173, %177 : vector<8x8x128xf32>
    %179 = arith.addf %172, %178 : vector<8x8x128xf32>
    %180 = vector.extract_strided_slice %137 {offsets = [11, 0, 0], sizes = [8, 8, 128], strides = [1, 1, 1]} : vector<19x8x128xf32> to vector<8x8x128xf32>
    %c44 = arith.constant 44 : index
    %c0_67 = arith.constant 0 : index
    %c0_68 = arith.constant 0 : index
    %181 = vector.load %arg6[%c44, %c0_67, %c0_68] : memref<49x1x128xf32, #tpu.memory_space<vmem>>, vector<1x1x128xf32>
    %182 = vector.shape_cast %181 : vector<1x1x128xf32> to vector<1x128xf32>
    %183 = vector.shape_cast %182 : vector<1x128xf32> to vector<1x1x128xf32>
    %184 = vector.broadcast %183 : vector<1x1x128xf32> to vector<8x8x128xf32>
    %185 = arith.mulf %180, %184 : vector<8x8x128xf32>
    %186 = arith.addf %179, %185 : vector<8x8x128xf32>
    %187 = vector.extract_strided_slice %35 {offsets = [0, 8, 0], sizes = [19, 8, 128], strides = [1, 1, 1]} : vector<19x19x128xf32> to vector<19x8x128xf32>
    %188 = vector.extract_strided_slice %187 {offsets = [5, 0, 0], sizes = [8, 8, 128], strides = [1, 1, 1]} : vector<19x8x128xf32> to vector<8x8x128xf32>
    %c3 = arith.constant 3 : index
    %c0_69 = arith.constant 0 : index
    %c0_70 = arith.constant 0 : index
    %189 = vector.load %arg6[%c3, %c0_69, %c0_70] : memref<49x1x128xf32, #tpu.memory_space<vmem>>, vector<1x1x128xf32>
    %190 = vector.shape_cast %189 : vector<1x1x128xf32> to vector<1x128xf32>
    %191 = vector.shape_cast %190 : vector<1x128xf32> to vector<1x1x128xf32>
    %192 = vector.broadcast %191 : vector<1x1x128xf32> to vector<8x8x128xf32>
    %193 = arith.mulf %188, %192 : vector<8x8x128xf32>
    %194 = arith.addf %186, %193 : vector<8x8x128xf32>
    %195 = vector.extract_strided_slice %187 {offsets = [6, 0, 0], sizes = [8, 8, 128], strides = [1, 1, 1]} : vector<19x8x128xf32> to vector<8x8x128xf32>
    %c10 = arith.constant 10 : index
    %c0_71 = arith.constant 0 : index
    %c0_72 = arith.constant 0 : index
    %196 = vector.load %arg6[%c10, %c0_71, %c0_72] : memref<49x1x128xf32, #tpu.memory_space<vmem>>, vector<1x1x128xf32>
    %197 = vector.shape_cast %196 : vector<1x1x128xf32> to vector<1x128xf32>
    %198 = vector.shape_cast %197 : vector<1x128xf32> to vector<1x1x128xf32>
    %199 = vector.broadcast %198 : vector<1x1x128xf32> to vector<8x8x128xf32>
    %200 = arith.mulf %195, %199 : vector<8x8x128xf32>
    %201 = arith.addf %194, %200 : vector<8x8x128xf32>
    %202 = vector.extract_strided_slice %187 {offsets = [7, 0, 0], sizes = [8, 8, 128], strides = [1, 1, 1]} : vector<19x8x128xf32> to vector<8x8x128xf32>
    %c17 = arith.constant 17 : index
    %c0_73 = arith.constant 0 : index
    %c0_74 = arith.constant 0 : index
    %203 = vector.load %arg6[%c17, %c0_73, %c0_74] : memref<49x1x128xf32, #tpu.memory_space<vmem>>, vector<1x1x128xf32>
    %204 = vector.shape_cast %203 : vector<1x1x128xf32> to vector<1x128xf32>
    %205 = vector.shape_cast %204 : vector<1x128xf32> to vector<1x1x128xf32>
    %206 = vector.broadcast %205 : vector<1x1x128xf32> to vector<8x8x128xf32>
    %207 = arith.mulf %202, %206 : vector<8x8x128xf32>
    %208 = arith.addf %201, %207 : vector<8x8x128xf32>
    %209 = vector.extract_strided_slice %187 {offsets = [8, 0, 0], sizes = [8, 8, 128], strides = [1, 1, 1]} : vector<19x8x128xf32> to vector<8x8x128xf32>
    %c24 = arith.constant 24 : index
    %c0_75 = arith.constant 0 : index
    %c0_76 = arith.constant 0 : index
    %210 = vector.load %arg6[%c24, %c0_75, %c0_76] : memref<49x1x128xf32, #tpu.memory_space<vmem>>, vector<1x1x128xf32>
    %211 = vector.shape_cast %210 : vector<1x1x128xf32> to vector<1x128xf32>
    %212 = vector.shape_cast %211 : vector<1x128xf32> to vector<1x1x128xf32>
    %213 = vector.broadcast %212 : vector<1x1x128xf32> to vector<8x8x128xf32>
    %214 = arith.mulf %209, %213 : vector<8x8x128xf32>
    %215 = arith.addf %208, %214 : vector<8x8x128xf32>
    %216 = vector.extract_strided_slice %187 {offsets = [9, 0, 0], sizes = [8, 8, 128], strides = [1, 1, 1]} : vector<19x8x128xf32> to vector<8x8x128xf32>
    %c31 = arith.constant 31 : index
    %c0_77 = arith.constant 0 : index
    %c0_78 = arith.constant 0 : index
    %217 = vector.load %arg6[%c31, %c0_77, %c0_78] : memref<49x1x128xf32, #tpu.memory_space<vmem>>, vector<1x1x128xf32>
    %218 = vector.shape_cast %217 : vector<1x1x128xf32> to vector<1x128xf32>
    %219 = vector.shape_cast %218 : vector<1x128xf32> to vector<1x1x128xf32>
    %220 = vector.broadcast %219 : vector<1x1x128xf32> to vector<8x8x128xf32>
    %221 = arith.mulf %216, %220 : vector<8x8x128xf32>
    %222 = arith.addf %215, %221 : vector<8x8x128xf32>
    %223 = vector.extract_strided_slice %187 {offsets = [10, 0, 0], sizes = [8, 8, 128], strides = [1, 1, 1]} : vector<19x8x128xf32> to vector<8x8x128xf32>
    %c38 = arith.constant 38 : index
    %c0_79 = arith.constant 0 : index
    %c0_80 = arith.constant 0 : index
    %224 = vector.load %arg6[%c38, %c0_79, %c0_80] : memref<49x1x128xf32, #tpu.memory_space<vmem>>, vector<1x1x128xf32>
    %225 = vector.shape_cast %224 : vector<1x1x128xf32> to vector<1x128xf32>
    %226 = vector.shape_cast %225 : vector<1x128xf32> to vector<1x1x128xf32>
    %227 = vector.broadcast %226 : vector<1x1x128xf32> to vector<8x8x128xf32>
    %228 = arith.mulf %223, %227 : vector<8x8x128xf32>
    %229 = arith.addf %222, %228 : vector<8x8x128xf32>
    %230 = vector.extract_strided_slice %187 {offsets = [11, 0, 0], sizes = [8, 8, 128], strides = [1, 1, 1]} : vector<19x8x128xf32> to vector<8x8x128xf32>
    %c45 = arith.constant 45 : index
    %c0_81 = arith.constant 0 : index
    %c0_82 = arith.constant 0 : index
    %231 = vector.load %arg6[%c45, %c0_81, %c0_82] : memref<49x1x128xf32, #tpu.memory_space<vmem>>, vector<1x1x128xf32>
    %232 = vector.shape_cast %231 : vector<1x1x128xf32> to vector<1x128xf32>
    %233 = vector.shape_cast %232 : vector<1x128xf32> to vector<1x1x128xf32>
    %234 = vector.broadcast %233 : vector<1x1x128xf32> to vector<8x8x128xf32>
    %235 = arith.mulf %230, %234 : vector<8x8x128xf32>
    %236 = arith.addf %229, %235 : vector<8x8x128xf32>
    %237 = vector.extract_strided_slice %35 {offsets = [0, 9, 0], sizes = [19, 8, 128], strides = [1, 1, 1]} : vector<19x19x128xf32> to vector<19x8x128xf32>
    %238 = vector.extract_strided_slice %237 {offsets = [5, 0, 0], sizes = [8, 8, 128], strides = [1, 1, 1]} : vector<19x8x128xf32> to vector<8x8x128xf32>
    %c4 = arith.constant 4 : index
    %c0_83 = arith.constant 0 : index
    %c0_84 = arith.constant 0 : index
    %239 = vector.load %arg6[%c4, %c0_83, %c0_84] : memref<49x1x128xf32, #tpu.memory_space<vmem>>, vector<1x1x128xf32>
    %240 = vector.shape_cast %239 : vector<1x1x128xf32> to vector<1x128xf32>
    %241 = vector.shape_cast %240 : vector<1x128xf32> to vector<1x1x128xf32>
    %242 = vector.broadcast %241 : vector<1x1x128xf32> to vector<8x8x128xf32>
    %243 = arith.mulf %238, %242 : vector<8x8x128xf32>
    %244 = arith.addf %236, %243 : vector<8x8x128xf32>
    %245 = vector.extract_strided_slice %237 {offsets = [6, 0, 0], sizes = [8, 8, 128], strides = [1, 1, 1]} : vector<19x8x128xf32> to vector<8x8x128xf32>
    %c11 = arith.constant 11 : index
    %c0_85 = arith.constant 0 : index
    %c0_86 = arith.constant 0 : index
    %246 = vector.load %arg6[%c11, %c0_85, %c0_86] : memref<49x1x128xf32, #tpu.memory_space<vmem>>, vector<1x1x128xf32>
    %247 = vector.shape_cast %246 : vector<1x1x128xf32> to vector<1x128xf32>
    %248 = vector.shape_cast %247 : vector<1x128xf32> to vector<1x1x128xf32>
    %249 = vector.broadcast %248 : vector<1x1x128xf32> to vector<8x8x128xf32>
    %250 = arith.mulf %245, %249 : vector<8x8x128xf32>
    %251 = arith.addf %244, %250 : vector<8x8x128xf32>
    %252 = vector.extract_strided_slice %237 {offsets = [7, 0, 0], sizes = [8, 8, 128], strides = [1, 1, 1]} : vector<19x8x128xf32> to vector<8x8x128xf32>
    %c18 = arith.constant 18 : index
    %c0_87 = arith.constant 0 : index
    %c0_88 = arith.constant 0 : index
    %253 = vector.load %arg6[%c18, %c0_87, %c0_88] : memref<49x1x128xf32, #tpu.memory_space<vmem>>, vector<1x1x128xf32>
    %254 = vector.shape_cast %253 : vector<1x1x128xf32> to vector<1x128xf32>
    %255 = vector.shape_cast %254 : vector<1x128xf32> to vector<1x1x128xf32>
    %256 = vector.broadcast %255 : vector<1x1x128xf32> to vector<8x8x128xf32>
    %257 = arith.mulf %252, %256 : vector<8x8x128xf32>
    %258 = arith.addf %251, %257 : vector<8x8x128xf32>
    %259 = vector.extract_strided_slice %237 {offsets = [8, 0, 0], sizes = [8, 8, 128], strides = [1, 1, 1]} : vector<19x8x128xf32> to vector<8x8x128xf32>
    %c25 = arith.constant 25 : index
    %c0_89 = arith.constant 0 : index
    %c0_90 = arith.constant 0 : index
    %260 = vector.load %arg6[%c25, %c0_89, %c0_90] : memref<49x1x128xf32, #tpu.memory_space<vmem>>, vector<1x1x128xf32>
    %261 = vector.shape_cast %260 : vector<1x1x128xf32> to vector<1x128xf32>
    %262 = vector.shape_cast %261 : vector<1x128xf32> to vector<1x1x128xf32>
    %263 = vector.broadcast %262 : vector<1x1x128xf32> to vector<8x8x128xf32>
    %264 = arith.mulf %259, %263 : vector<8x8x128xf32>
    %265 = arith.addf %258, %264 : vector<8x8x128xf32>
    %266 = vector.extract_strided_slice %237 {offsets = [9, 0, 0], sizes = [8, 8, 128], strides = [1, 1, 1]} : vector<19x8x128xf32> to vector<8x8x128xf32>
    %c32 = arith.constant 32 : index
    %c0_91 = arith.constant 0 : index
    %c0_92 = arith.constant 0 : index
    %267 = vector.load %arg6[%c32, %c0_91, %c0_92] : memref<49x1x128xf32, #tpu.memory_space<vmem>>, vector<1x1x128xf32>
    %268 = vector.shape_cast %267 : vector<1x1x128xf32> to vector<1x128xf32>
    %269 = vector.shape_cast %268 : vector<1x128xf32> to vector<1x1x128xf32>
    %270 = vector.broadcast %269 : vector<1x1x128xf32> to vector<8x8x128xf32>
    %271 = arith.mulf %266, %270 : vector<8x8x128xf32>
    %272 = arith.addf %265, %271 : vector<8x8x128xf32>
    %273 = vector.extract_strided_slice %237 {offsets = [10, 0, 0], sizes = [8, 8, 128], strides = [1, 1, 1]} : vector<19x8x128xf32> to vector<8x8x128xf32>
    %c39 = arith.constant 39 : index
    %c0_93 = arith.constant 0 : index
    %c0_94 = arith.constant 0 : index
    %274 = vector.load %arg6[%c39, %c0_93, %c0_94] : memref<49x1x128xf32, #tpu.memory_space<vmem>>, vector<1x1x128xf32>
    %275 = vector.shape_cast %274 : vector<1x1x128xf32> to vector<1x128xf32>
    %276 = vector.shape_cast %275 : vector<1x128xf32> to vector<1x1x128xf32>
    %277 = vector.broadcast %276 : vector<1x1x128xf32> to vector<8x8x128xf32>
    %278 = arith.mulf %273, %277 : vector<8x8x128xf32>
    %279 = arith.addf %272, %278 : vector<8x8x128xf32>
    %280 = vector.extract_strided_slice %237 {offsets = [11, 0, 0], sizes = [8, 8, 128], strides = [1, 1, 1]} : vector<19x8x128xf32> to vector<8x8x128xf32>
    %c46 = arith.constant 46 : index
    %c0_95 = arith.constant 0 : index
    %c0_96 = arith.constant 0 : index
    %281 = vector.load %arg6[%c46, %c0_95, %c0_96] : memref<49x1x128xf32, #tpu.memory_space<vmem>>, vector<1x1x128xf32>
    %282 = vector.shape_cast %281 : vector<1x1x128xf32> to vector<1x128xf32>
    %283 = vector.shape_cast %282 : vector<1x128xf32> to vector<1x1x128xf32>
    %284 = vector.broadcast %283 : vector<1x1x128xf32> to vector<8x8x128xf32>
    %285 = arith.mulf %280, %284 : vector<8x8x128xf32>
    %286 = arith.addf %279, %285 : vector<8x8x128xf32>
    %287 = vector.extract_strided_slice %35 {offsets = [0, 10, 0], sizes = [19, 8, 128], strides = [1, 1, 1]} : vector<19x19x128xf32> to vector<19x8x128xf32>
    %288 = vector.extract_strided_slice %287 {offsets = [5, 0, 0], sizes = [8, 8, 128], strides = [1, 1, 1]} : vector<19x8x128xf32> to vector<8x8x128xf32>
    %c5 = arith.constant 5 : index
    %c0_97 = arith.constant 0 : index
    %c0_98 = arith.constant 0 : index
    %289 = vector.load %arg6[%c5, %c0_97, %c0_98] : memref<49x1x128xf32, #tpu.memory_space<vmem>>, vector<1x1x128xf32>
    %290 = vector.shape_cast %289 : vector<1x1x128xf32> to vector<1x128xf32>
    %291 = vector.shape_cast %290 : vector<1x128xf32> to vector<1x1x128xf32>
    %292 = vector.broadcast %291 : vector<1x1x128xf32> to vector<8x8x128xf32>
    %293 = arith.mulf %288, %292 : vector<8x8x128xf32>
    %294 = arith.addf %286, %293 : vector<8x8x128xf32>
    %295 = vector.extract_strided_slice %287 {offsets = [6, 0, 0], sizes = [8, 8, 128], strides = [1, 1, 1]} : vector<19x8x128xf32> to vector<8x8x128xf32>
    %c12 = arith.constant 12 : index
    %c0_99 = arith.constant 0 : index
    %c0_100 = arith.constant 0 : index
    %296 = vector.load %arg6[%c12, %c0_99, %c0_100] : memref<49x1x128xf32, #tpu.memory_space<vmem>>, vector<1x1x128xf32>
    %297 = vector.shape_cast %296 : vector<1x1x128xf32> to vector<1x128xf32>
    %298 = vector.shape_cast %297 : vector<1x128xf32> to vector<1x1x128xf32>
    %299 = vector.broadcast %298 : vector<1x1x128xf32> to vector<8x8x128xf32>
    %300 = arith.mulf %295, %299 : vector<8x8x128xf32>
    %301 = arith.addf %294, %300 : vector<8x8x128xf32>
    %302 = vector.extract_strided_slice %287 {offsets = [7, 0, 0], sizes = [8, 8, 128], strides = [1, 1, 1]} : vector<19x8x128xf32> to vector<8x8x128xf32>
    %c19 = arith.constant 19 : index
    %c0_101 = arith.constant 0 : index
    %c0_102 = arith.constant 0 : index
    %303 = vector.load %arg6[%c19, %c0_101, %c0_102] : memref<49x1x128xf32, #tpu.memory_space<vmem>>, vector<1x1x128xf32>
    %304 = vector.shape_cast %303 : vector<1x1x128xf32> to vector<1x128xf32>
    %305 = vector.shape_cast %304 : vector<1x128xf32> to vector<1x1x128xf32>
    %306 = vector.broadcast %305 : vector<1x1x128xf32> to vector<8x8x128xf32>
    %307 = arith.mulf %302, %306 : vector<8x8x128xf32>
    %308 = arith.addf %301, %307 : vector<8x8x128xf32>
    %309 = vector.extract_strided_slice %287 {offsets = [8, 0, 0], sizes = [8, 8, 128], strides = [1, 1, 1]} : vector<19x8x128xf32> to vector<8x8x128xf32>
    %c26 = arith.constant 26 : index
    %c0_103 = arith.constant 0 : index
    %c0_104 = arith.constant 0 : index
    %310 = vector.load %arg6[%c26, %c0_103, %c0_104] : memref<49x1x128xf32, #tpu.memory_space<vmem>>, vector<1x1x128xf32>
    %311 = vector.shape_cast %310 : vector<1x1x128xf32> to vector<1x128xf32>
    %312 = vector.shape_cast %311 : vector<1x128xf32> to vector<1x1x128xf32>
    %313 = vector.broadcast %312 : vector<1x1x128xf32> to vector<8x8x128xf32>
    %314 = arith.mulf %309, %313 : vector<8x8x128xf32>
    %315 = arith.addf %308, %314 : vector<8x8x128xf32>
    %316 = vector.extract_strided_slice %287 {offsets = [9, 0, 0], sizes = [8, 8, 128], strides = [1, 1, 1]} : vector<19x8x128xf32> to vector<8x8x128xf32>
    %c33 = arith.constant 33 : index
    %c0_105 = arith.constant 0 : index
    %c0_106 = arith.constant 0 : index
    %317 = vector.load %arg6[%c33, %c0_105, %c0_106] : memref<49x1x128xf32, #tpu.memory_space<vmem>>, vector<1x1x128xf32>
    %318 = vector.shape_cast %317 : vector<1x1x128xf32> to vector<1x128xf32>
    %319 = vector.shape_cast %318 : vector<1x128xf32> to vector<1x1x128xf32>
    %320 = vector.broadcast %319 : vector<1x1x128xf32> to vector<8x8x128xf32>
    %321 = arith.mulf %316, %320 : vector<8x8x128xf32>
    %322 = arith.addf %315, %321 : vector<8x8x128xf32>
    %323 = vector.extract_strided_slice %287 {offsets = [10, 0, 0], sizes = [8, 8, 128], strides = [1, 1, 1]} : vector<19x8x128xf32> to vector<8x8x128xf32>
    %c40 = arith.constant 40 : index
    %c0_107 = arith.constant 0 : index
    %c0_108 = arith.constant 0 : index
    %324 = vector.load %arg6[%c40, %c0_107, %c0_108] : memref<49x1x128xf32, #tpu.memory_space<vmem>>, vector<1x1x128xf32>
    %325 = vector.shape_cast %324 : vector<1x1x128xf32> to vector<1x128xf32>
    %326 = vector.shape_cast %325 : vector<1x128xf32> to vector<1x1x128xf32>
    %327 = vector.broadcast %326 : vector<1x1x128xf32> to vector<8x8x128xf32>
    %328 = arith.mulf %323, %327 : vector<8x8x128xf32>
    %329 = arith.addf %322, %328 : vector<8x8x128xf32>
    %330 = vector.extract_strided_slice %287 {offsets = [11, 0, 0], sizes = [8, 8, 128], strides = [1, 1, 1]} : vector<19x8x128xf32> to vector<8x8x128xf32>
    %c47 = arith.constant 47 : index
    %c0_109 = arith.constant 0 : index
    %c0_110 = arith.constant 0 : index
    %331 = vector.load %arg6[%c47, %c0_109, %c0_110] : memref<49x1x128xf32, #tpu.memory_space<vmem>>, vector<1x1x128xf32>
    %332 = vector.shape_cast %331 : vector<1x1x128xf32> to vector<1x128xf32>
    %333 = vector.shape_cast %332 : vector<1x128xf32> to vector<1x1x128xf32>
    %334 = vector.broadcast %333 : vector<1x1x128xf32> to vector<8x8x128xf32>
    %335 = arith.mulf %330, %334 : vector<8x8x128xf32>
    %336 = arith.addf %329, %335 : vector<8x8x128xf32>
    %337 = vector.extract_strided_slice %35 {offsets = [0, 11, 0], sizes = [19, 8, 128], strides = [1, 1, 1]} : vector<19x19x128xf32> to vector<19x8x128xf32>
    %338 = vector.extract_strided_slice %337 {offsets = [5, 0, 0], sizes = [8, 8, 128], strides = [1, 1, 1]} : vector<19x8x128xf32> to vector<8x8x128xf32>
    %c6 = arith.constant 6 : index
    %c0_111 = arith.constant 0 : index
    %c0_112 = arith.constant 0 : index
    %339 = vector.load %arg6[%c6, %c0_111, %c0_112] : memref<49x1x128xf32, #tpu.memory_space<vmem>>, vector<1x1x128xf32>
    %340 = vector.shape_cast %339 : vector<1x1x128xf32> to vector<1x128xf32>
    %341 = vector.shape_cast %340 : vector<1x128xf32> to vector<1x1x128xf32>
    %342 = vector.broadcast %341 : vector<1x1x128xf32> to vector<8x8x128xf32>
    %343 = arith.mulf %338, %342 : vector<8x8x128xf32>
    %344 = arith.addf %336, %343 : vector<8x8x128xf32>
    %345 = vector.extract_strided_slice %337 {offsets = [6, 0, 0], sizes = [8, 8, 128], strides = [1, 1, 1]} : vector<19x8x128xf32> to vector<8x8x128xf32>
    %c13 = arith.constant 13 : index
    %c0_113 = arith.constant 0 : index
    %c0_114 = arith.constant 0 : index
    %346 = vector.load %arg6[%c13, %c0_113, %c0_114] : memref<49x1x128xf32, #tpu.memory_space<vmem>>, vector<1x1x128xf32>
    %347 = vector.shape_cast %346 : vector<1x1x128xf32> to vector<1x128xf32>
    %348 = vector.shape_cast %347 : vector<1x128xf32> to vector<1x1x128xf32>
    %349 = vector.broadcast %348 : vector<1x1x128xf32> to vector<8x8x128xf32>
    %350 = arith.mulf %345, %349 : vector<8x8x128xf32>
    %351 = arith.addf %344, %350 : vector<8x8x128xf32>
    %352 = vector.extract_strided_slice %337 {offsets = [7, 0, 0], sizes = [8, 8, 128], strides = [1, 1, 1]} : vector<19x8x128xf32> to vector<8x8x128xf32>
    %c20 = arith.constant 20 : index
    %c0_115 = arith.constant 0 : index
    %c0_116 = arith.constant 0 : index
    %353 = vector.load %arg6[%c20, %c0_115, %c0_116] : memref<49x1x128xf32, #tpu.memory_space<vmem>>, vector<1x1x128xf32>
    %354 = vector.shape_cast %353 : vector<1x1x128xf32> to vector<1x128xf32>
    %355 = vector.shape_cast %354 : vector<1x128xf32> to vector<1x1x128xf32>
    %356 = vector.broadcast %355 : vector<1x1x128xf32> to vector<8x8x128xf32>
    %357 = arith.mulf %352, %356 : vector<8x8x128xf32>
    %358 = arith.addf %351, %357 : vector<8x8x128xf32>
    %359 = vector.extract_strided_slice %337 {offsets = [8, 0, 0], sizes = [8, 8, 128], strides = [1, 1, 1]} : vector<19x8x128xf32> to vector<8x8x128xf32>
    %c27 = arith.constant 27 : index
    %c0_117 = arith.constant 0 : index
    %c0_118 = arith.constant 0 : index
    %360 = vector.load %arg6[%c27, %c0_117, %c0_118] : memref<49x1x128xf32, #tpu.memory_space<vmem>>, vector<1x1x128xf32>
    %361 = vector.shape_cast %360 : vector<1x1x128xf32> to vector<1x128xf32>
    %362 = vector.shape_cast %361 : vector<1x128xf32> to vector<1x1x128xf32>
    %363 = vector.broadcast %362 : vector<1x1x128xf32> to vector<8x8x128xf32>
    %364 = arith.mulf %359, %363 : vector<8x8x128xf32>
    %365 = arith.addf %358, %364 : vector<8x8x128xf32>
    %366 = vector.extract_strided_slice %337 {offsets = [9, 0, 0], sizes = [8, 8, 128], strides = [1, 1, 1]} : vector<19x8x128xf32> to vector<8x8x128xf32>
    %c34 = arith.constant 34 : index
    %c0_119 = arith.constant 0 : index
    %c0_120 = arith.constant 0 : index
    %367 = vector.load %arg6[%c34, %c0_119, %c0_120] : memref<49x1x128xf32, #tpu.memory_space<vmem>>, vector<1x1x128xf32>
    %368 = vector.shape_cast %367 : vector<1x1x128xf32> to vector<1x128xf32>
    %369 = vector.shape_cast %368 : vector<1x128xf32> to vector<1x1x128xf32>
    %370 = vector.broadcast %369 : vector<1x1x128xf32> to vector<8x8x128xf32>
    %371 = arith.mulf %366, %370 : vector<8x8x128xf32>
    %372 = arith.addf %365, %371 : vector<8x8x128xf32>
    %373 = vector.extract_strided_slice %337 {offsets = [10, 0, 0], sizes = [8, 8, 128], strides = [1, 1, 1]} : vector<19x8x128xf32> to vector<8x8x128xf32>
    %c41 = arith.constant 41 : index
    %c0_121 = arith.constant 0 : index
    %c0_122 = arith.constant 0 : index
    %374 = vector.load %arg6[%c41, %c0_121, %c0_122] : memref<49x1x128xf32, #tpu.memory_space<vmem>>, vector<1x1x128xf32>
    %375 = vector.shape_cast %374 : vector<1x1x128xf32> to vector<1x128xf32>
    %376 = vector.shape_cast %375 : vector<1x128xf32> to vector<1x1x128xf32>
    %377 = vector.broadcast %376 : vector<1x1x128xf32> to vector<8x8x128xf32>
    %378 = arith.mulf %373, %377 : vector<8x8x128xf32>
    %379 = arith.addf %372, %378 : vector<8x8x128xf32>
    %380 = vector.extract_strided_slice %337 {offsets = [11, 0, 0], sizes = [8, 8, 128], strides = [1, 1, 1]} : vector<19x8x128xf32> to vector<8x8x128xf32>
    %c48 = arith.constant 48 : index
    %c0_123 = arith.constant 0 : index
    %c0_124 = arith.constant 0 : index
    %381 = vector.load %arg6[%c48, %c0_123, %c0_124] : memref<49x1x128xf32, #tpu.memory_space<vmem>>, vector<1x1x128xf32>
    %382 = vector.shape_cast %381 : vector<1x1x128xf32> to vector<1x128xf32>
    %383 = vector.shape_cast %382 : vector<1x128xf32> to vector<1x1x128xf32>
    %384 = vector.broadcast %383 : vector<1x1x128xf32> to vector<8x8x128xf32>
    %385 = arith.mulf %380, %384 : vector<8x8x128xf32>
    %386 = arith.addf %379, %385 : vector<8x8x128xf32>
    %c0_125 = arith.constant 0 : index
    %c0_126 = arith.constant 0 : index
    %387 = vector.load %arg7[%c0_125, %c0_126] : memref<1x128xf32, #tpu.memory_space<vmem>>, vector<1x128xf32>
    %388 = vector.shape_cast %387 : vector<1x128xf32> to vector<1x1x128xf32>
    %389 = vector.broadcast %388 : vector<1x1x128xf32> to vector<8x8x128xf32>
    %390 = arith.addf %386, %389 : vector<8x8x128xf32>
    %391 = vector.shape_cast %390 : vector<8x8x128xf32> to vector<64x128xf32>
    %c0_127 = arith.constant 0 : index
    %c0_128 = arith.constant 0 : index
    %392 = vector.load %arg8[%c0_127, %c0_128] : memref<1x128xf32, #tpu.memory_space<vmem>>, vector<1x128xf32>
    %c0_129 = arith.constant 0 : index
    %c0_130 = arith.constant 0 : index
    %393 = vector.load %arg9[%c0_129, %c0_130] : memref<1x128xf32, #tpu.memory_space<vmem>>, vector<1x128xf32>
    %cst_131 = arith.constant dense<0.000000e+00> : vector<64xf32>
    %394 = vector.multi_reduction <add>, %391, %cst_131 [1] : vector<64x128xf32> to vector<64xf32>
    %395 = vector.shape_cast %394 : vector<64xf32> to vector<64x1xf32>
    %cst_132 = arith.constant 1.280000e+02 : f32
    %396 = vector.broadcast %cst_132 : f32 to vector<64x1xf32>
    %397 = arith.divf %395, %396 : vector<64x1xf32>
    %398 = vector.broadcast %397 : vector<64x1xf32> to vector<64x128xf32>
    %399 = arith.subf %391, %398 : vector<64x128xf32>
    %400 = arith.mulf %399, %399 : vector<64x128xf32>
    %cst_133 = arith.constant dense<0.000000e+00> : vector<64xf32>
    %401 = vector.multi_reduction <add>, %400, %cst_133 [1] : vector<64x128xf32> to vector<64xf32>
    %402 = vector.shape_cast %401 : vector<64xf32> to vector<64x1xf32>
    %cst_134 = arith.constant 1.280000e+02 : f32
    %403 = vector.broadcast %cst_134 : f32 to vector<64x1xf32>
    %404 = arith.divf %402, %403 : vector<64x1xf32>
    %405 = vector.broadcast %397 : vector<64x1xf32> to vector<64x128xf32>
    %406 = arith.subf %391, %405 : vector<64x128xf32>
    %cst_135 = arith.constant 9.99999997E-7 : f32
    %407 = vector.broadcast %cst_135 : f32 to vector<64x1xf32>
    %408 = arith.addf %404, %407 : vector<64x1xf32>
    %409 = math.rsqrt %408 : vector<64x1xf32>
    %410 = vector.broadcast %409 : vector<64x1xf32> to vector<64x128xf32>
    %411 = arith.mulf %406, %410 : vector<64x128xf32>
    %412 = vector.broadcast %392 : vector<1x128xf32> to vector<64x128xf32>
    %413 = arith.mulf %411, %412 : vector<64x128xf32>
    %414 = vector.broadcast %393 : vector<1x128xf32> to vector<64x128xf32>
    %415 = arith.addf %413, %414 : vector<64x128xf32>
    %416 = arith.truncf %415 : vector<64x128xf32> to vector<64x128xbf16>
    %c0_136 = arith.constant 0 : index
    %c0_137 = arith.constant 0 : index
    %417 = vector.load %arg10[%c0_136, %c0_137] : memref<128x512xbf16, #tpu.memory_space<vmem>>, vector<128x512xbf16>
    %cst_138 = arith.constant dense<0.000000e+00> : vector<64x512xf32>
    %418 = tpu.matmul %416, %417, %cst_138 {dimension_numbers = #tpu.dot_dimension_numbers<[1], [0], [0], [1], [0, 0, 1, 1], [], []>} : vector<64x128xbf16>, vector<128x512xbf16>, vector<64x512xf32> -> vector<64x512xf32>
    %c0_139 = arith.constant 0 : index
    %c0_140 = arith.constant 0 : index
    %419 = vector.load %arg11[%c0_139, %c0_140] : memref<1x512xf32, #tpu.memory_space<vmem>>, vector<1x512xf32>
    %420 = vector.broadcast %419 : vector<1x512xf32> to vector<64x512xf32>
    %421 = arith.addf %418, %420 : vector<64x512xf32>
    %422 = arith.mulf %421, %421 : vector<64x512xf32>
    %423 = arith.mulf %421, %422 : vector<64x512xf32>
    %cst_141 = arith.constant 4.471500e-02 : f32
    %424 = vector.broadcast %cst_141 : f32 to vector<64x512xf32>
    %425 = arith.mulf %424, %423 : vector<64x512xf32>
    %426 = arith.addf %421, %425 : vector<64x512xf32>
    %cst_142 = arith.constant 0.797884583 : f32
    %427 = vector.broadcast %cst_142 : f32 to vector<64x512xf32>
    %428 = arith.mulf %427, %426 : vector<64x512xf32>
    %429 = math.tanh %428 : vector<64x512xf32>
    %cst_143 = arith.constant 1.000000e+00 : f32
    %430 = vector.broadcast %cst_143 : f32 to vector<64x512xf32>
    %431 = arith.addf %430, %429 : vector<64x512xf32>
    %cst_144 = arith.constant 5.000000e-01 : f32
    %432 = vector.broadcast %cst_144 : f32 to vector<64x512xf32>
    %433 = arith.mulf %432, %431 : vector<64x512xf32>
    %434 = arith.mulf %421, %433 : vector<64x512xf32>
    %435 = arith.truncf %434 : vector<64x512xf32> to vector<64x512xbf16>
    %c0_145 = arith.constant 0 : index
    %c0_146 = arith.constant 0 : index
    %436 = vector.load %arg12[%c0_145, %c0_146] : memref<512x128xbf16, #tpu.memory_space<vmem>>, vector<512x128xbf16>
    %cst_147 = arith.constant dense<0.000000e+00> : vector<64x128xf32>
    %437 = tpu.matmul %435, %436, %cst_147 {dimension_numbers = #tpu.dot_dimension_numbers<[1], [0], [0], [1], [0, 0, 1, 1], [], []>} : vector<64x512xbf16>, vector<512x128xbf16>, vector<64x128xf32> -> vector<64x128xf32>
    %c0_148 = arith.constant 0 : index
    %c0_149 = arith.constant 0 : index
    %438 = vector.load %arg13[%c0_148, %c0_149] : memref<1x128xf32, #tpu.memory_space<vmem>>, vector<1x128xf32>
    %439 = vector.broadcast %438 : vector<1x128xf32> to vector<64x128xf32>
    %440 = arith.addf %437, %439 : vector<64x128xf32>
    %c0_150 = arith.constant 0 : index
    %c0_151 = arith.constant 0 : index
    %441 = vector.load %arg14[%c0_150, %c0_151] : memref<1x128xf32, #tpu.memory_space<vmem>>, vector<1x128xf32>
    %442 = vector.broadcast %441 : vector<1x128xf32> to vector<64x128xf32>
    %443 = arith.mulf %442, %440 : vector<64x128xf32>
    %444 = arith.addf %30, %443 : vector<64x128xf32>
    %cst_152 = arith.constant dense<0.000000e+00> : vector<128xf32>
    %445 = vector.multi_reduction <add>, %444, %cst_152 [0] : vector<64x128xf32> to vector<128xf32>
    %446 = vector.shape_cast %445 : vector<128xf32> to vector<1x128xf32>
    %cst_153 = arith.constant 6.400000e+01 : f32
    %447 = vector.broadcast %cst_153 : f32 to vector<1x128xf32>
    %448 = arith.divf %446, %447 : vector<1x128xf32>
    %c0_154 = arith.constant 0 : index
    %c0_155 = arith.constant 0 : index
    %449 = vector.load %arg15[%c0_154, %c0_155] : memref<1x128xf32, #tpu.memory_space<vmem>>, vector<1x128xf32>
    %c0_156 = arith.constant 0 : index
    %c0_157 = arith.constant 0 : index
    %450 = vector.load %arg16[%c0_156, %c0_157] : memref<1x128xf32, #tpu.memory_space<vmem>>, vector<1x128xf32>
    %cst_158 = arith.constant dense<0.000000e+00> : vector<1xf32>
    %451 = vector.multi_reduction <add>, %448, %cst_158 [1] : vector<1x128xf32> to vector<1xf32>
    %452 = vector.shape_cast %451 : vector<1xf32> to vector<1x1xf32>
    %cst_159 = arith.constant 1.280000e+02 : f32
    %453 = vector.broadcast %cst_159 : f32 to vector<1x1xf32>
    %454 = arith.divf %452, %453 : vector<1x1xf32>
    %455 = vector.broadcast %454 : vector<1x1xf32> to vector<1x128xf32>
    %456 = arith.subf %448, %455 : vector<1x128xf32>
    %457 = arith.mulf %456, %456 : vector<1x128xf32>
    %cst_160 = arith.constant dense<0.000000e+00> : vector<1xf32>
    %458 = vector.multi_reduction <add>, %457, %cst_160 [1] : vector<1x128xf32> to vector<1xf32>
    %459 = vector.shape_cast %458 : vector<1xf32> to vector<1x1xf32>
    %cst_161 = arith.constant 1.280000e+02 : f32
    %460 = vector.broadcast %cst_161 : f32 to vector<1x1xf32>
    %461 = arith.divf %459, %460 : vector<1x1xf32>
    %462 = vector.broadcast %454 : vector<1x1xf32> to vector<1x128xf32>
    %463 = arith.subf %448, %462 : vector<1x128xf32>
    %cst_162 = arith.constant 9.99999997E-7 : f32
    %464 = vector.broadcast %cst_162 : f32 to vector<1x1xf32>
    %465 = arith.addf %461, %464 : vector<1x1xf32>
    %466 = math.rsqrt %465 : vector<1x1xf32>
    %467 = vector.broadcast %466 : vector<1x1xf32> to vector<1x128xf32>
    %468 = arith.mulf %463, %467 : vector<1x128xf32>
    %469 = arith.mulf %468, %449 : vector<1x128xf32>
    %470 = arith.addf %469, %450 : vector<1x128xf32>
    %471 = arith.truncf %470 : vector<1x128xf32> to vector<1x128xbf16>
    %c0_163 = arith.constant 0 : index
    %c0_164 = arith.constant 0 : index
    %472 = vector.load %arg17[%c0_163, %c0_164] : memref<128x128xbf16, #tpu.memory_space<vmem>>, vector<128x128xbf16>
    %cst_165 = arith.constant dense<0.000000e+00> : vector<1x128xf32>
    %473 = tpu.matmul %471, %472, %cst_165 {dimension_numbers = #tpu.dot_dimension_numbers<[1], [0], [0], [1], [0, 0, 1, 1], [], []>} : vector<1x128xbf16>, vector<128x128xbf16>, vector<1x128xf32> -> vector<1x128xf32>
    %c0_166 = arith.constant 0 : index
    %c0_167 = arith.constant 0 : index
    %474 = vector.load %arg18[%c0_166, %c0_167] : memref<1x128xf32, #tpu.memory_space<vmem>>, vector<1x128xf32>
    %475 = arith.addf %473, %474 : vector<1x128xf32>
    %476 = vector.shape_cast %475 : vector<1x128xf32> to vector<1x1x128xf32>
    %c0_168 = arith.constant 0 : index
    %c0_169 = arith.constant 0 : index
    %c0_170 = arith.constant 0 : index
    %477 = vector.load %arg19[%c0_168, %c0_169, %c0_170] : memref<1x1x128xf32, #tpu.memory_space<vmem>>, vector<1x1x128xf32>
    tpu.vector_store %arg19[%c0_168, %c0_169, %c0_170], %476 {strides = array<i32>} : memref<1x1x128xf32, #tpu.memory_space<vmem>>, vector<1x1x128xf32>,
    return
  }
  func.func @transform_0(%arg0: i32) -> (i32, i32, i32) {
    %c0_i32 = arith.constant 0 : i32
    %c0_i32_0 = arith.constant 0 : i32
    %c0_i32_1 = arith.constant 0 : i32
    return %arg0, %c0_i32, %c0_i32_0 : i32, i32, i32
  }
  func.func @transform_1(%arg0: i32) -> (i32, i32) {
    %c0_i32 = arith.constant 0 : i32
    %c0_i32_0 = arith.constant 0 : i32
    %c0_i32_1 = arith.constant 0 : i32
    return %c0_i32, %c0_i32_0 : i32, i32
  }
  func.func @transform_2(%arg0: i32) -> (i32, i32) {
    %c0_i32 = arith.constant 0 : i32
    %c0_i32_0 = arith.constant 0 : i32
    %c0_i32_1 = arith.constant 0 : i32
    return %c0_i32, %c0_i32_0 : i32, i32
  }
  func.func @transform_3(%arg0: i32) -> (i32, i32) {
    %c0_i32 = arith.constant 0 : i32
    %c0_i32_0 = arith.constant 0 : i32
    %c0_i32_1 = arith.constant 0 : i32
    return %c0_i32, %c0_i32_0 : i32, i32
  }
  func.func @transform_4(%arg0: i32) -> (i32, i32) {
    %c0_i32 = arith.constant 0 : i32
    %c0_i32_0 = arith.constant 0 : i32
    %c0_i32_1 = arith.constant 0 : i32
    return %c0_i32, %c0_i32_0 : i32, i32
  }
  func.func @transform_5(%arg0: i32) -> (i32, i32, i32) {
    %c0_i32 = arith.constant 0 : i32
    %c0_i32_0 = arith.constant 0 : i32
    %c0_i32_1 = arith.constant 0 : i32
    %c0_i32_2 = arith.constant 0 : i32
    return %c0_i32, %c0_i32_0, %c0_i32_1 : i32, i32, i32
  }
  func.func @transform_6(%arg0: i32) -> (i32, i32) {
    %c0_i32 = arith.constant 0 : i32
    %c0_i32_0 = arith.constant 0 : i32
    %c0_i32_1 = arith.constant 0 : i32
    return %c0_i32, %c0_i32_0 : i32, i32
  }
  func.func @transform_7(%arg0: i32) -> (i32, i32) {
    %c0_i32 = arith.constant 0 : i32
    %c0_i32_0 = arith.constant 0 : i32
    %c0_i32_1 = arith.constant 0 : i32
    return %c0_i32, %c0_i32_0 : i32, i32
  }
  func.func @transform_8(%arg0: i32) -> (i32, i32) {
    %c0_i32 = arith.constant 0 : i32
    %c0_i32_0 = arith.constant 0 : i32
    %c0_i32_1 = arith.constant 0 : i32
    return %c0_i32, %c0_i32_0 : i32, i32
  }
  func.func @transform_9(%arg0: i32) -> (i32, i32) {
    %c0_i32 = arith.constant 0 : i32
    %c0_i32_0 = arith.constant 0 : i32
    %c0_i32_1 = arith.constant 0 : i32
    return %c0_i32, %c0_i32_0 : i32, i32
  }
  func.func @transform_10(%arg0: i32) -> (i32, i32) {
    %c0_i32 = arith.constant 0 : i32
    %c0_i32_0 = arith.constant 0 : i32
    %c0_i32_1 = arith.constant 0 : i32
    return %c0_i32, %c0_i32_0 : i32, i32
  }
  func.func @transform_11(%arg0: i32) -> (i32, i32) {
    %c0_i32 = arith.constant 0 : i32
    %c0_i32_0 = arith.constant 0 : i32
    %c0_i32_1 = arith.constant 0 : i32
    return %c0_i32, %c0_i32_0 : i32, i32
  }
  func.func @transform_12(%arg0: i32) -> (i32, i32) {
    %c0_i32 = arith.constant 0 : i32
    %c0_i32_0 = arith.constant 0 : i32
    %c0_i32_1 = arith.constant 0 : i32
    return %c0_i32, %c0_i32_0 : i32, i32
  }
  func.func @transform_13(%arg0: i32) -> (i32, i32) {
    %c0_i32 = arith.constant 0 : i32
    %c0_i32_0 = arith.constant 0 : i32
    %c0_i32_1 = arith.constant 0 : i32
    return %c0_i32, %c0_i32_0 : i32, i32
  }
  func.func @transform_14(%arg0: i32) -> (i32, i32) {
    %c0_i32 = arith.constant 0 : i32
    %c0_i32_0 = arith.constant 0 : i32
    %c0_i32_1 = arith.constant 0 : i32
    return %c0_i32, %c0_i32_0 : i32, i32
  }
  func.func @transform_15(%arg0: i32) -> (i32, i32) {
    %c0_i32 = arith.constant 0 : i32
    %c0_i32_0 = arith.constant 0 : i32
    %c0_i32_1 = arith.constant 0 : i32
    return %c0_i32, %c0_i32_0 : i32, i32
  }
  func.func @transform_16(%arg0: i32) -> (i32, i32) {
    %c0_i32 = arith.constant 0 : i32
    %c0_i32_0 = arith.constant 0 : i32
    %c0_i32_1 = arith.constant 0 : i32
    return %c0_i32, %c0_i32_0 : i32, i32
  }
  func.func @transform_17(%arg0: i32) -> (i32, i32) {
    %c0_i32 = arith.constant 0 : i32
    %c0_i32_0 = arith.constant 0 : i32
    %c0_i32_1 = arith.constant 0 : i32
    return %c0_i32, %c0_i32_0 : i32, i32
  }
  func.func @transform_18(%arg0: i32) -> (i32, i32, i32) {
    %c0_i32 = arith.constant 0 : i32
    %c0_i32_0 = arith.constant 0 : i32
    %c0_i32_1 = arith.constant 0 : i32
    return %arg0, %c0_i32, %c0_i32_0 : i32, i32, i32
  }
}

</mosaic_0001>

<llo_original>
// kernel: convnext_forward.1
$region0: #{convnext_forward.1}
  #allocation0 [shape = 'u32[]', space=smem, size = 0x4, offset = 0x4, fixed_abs, tag = 'smem constant byte address 0x4 - core index']
  #allocation1 [shape = 'u32[144,128]{1,0:T(1,128)}', space=vmem, size = 0x12000, scoped, tag = 'internal scratch']
  #allocation2 [shape = 'f32[19,19,128]{2,1,0:T(8,128)}', space=vmem, size = 0x39000, scoped, tag = 'scratch operand']
  %s0 = inlined_call_operand.vmem [shape: bf16[2,64,48], index: 0, kind: input, shape index: {}]
  %s1 = inlined_call_operand.vmem [shape: bf16[48,128], index: 1, kind: input, shape index: {}]
  %s2 = inlined_call_operand.vmem [shape: f32[1,128], index: 2, kind: input, shape index: {}]
  %s3 = inlined_call_operand.vmem [shape: f32[1,128], index: 3, kind: input, shape index: {}]
  %s4 = inlined_call_operand.vmem [shape: f32[1,128], index: 4, kind: input, shape index: {}]
  %s5 = inlined_call_operand.vmem [shape: f32[49,1,128], index: 5, kind: input, shape index: {}]
  %s6 = inlined_call_operand.vmem [shape: f32[1,128], index: 6, kind: input, shape index: {}]
  %s7 = inlined_call_operand.vmem [shape: f32[1,128], index: 7, kind: input, shape index: {}]
  %s8 = inlined_call_operand.vmem [shape: f32[1,128], index: 8, kind: input, shape index: {}]
  %s9 = inlined_call_operand.vmem [shape: bf16[128,512], index: 9, kind: input, shape index: {}]
  %s10 = inlined_call_operand.vmem [shape: f32[1,512], index: 10, kind: input, shape index: {}]
  %s11 = inlined_call_operand.vmem [shape: bf16[512,128], index: 11, kind: input, shape index: {}]
  %s12 = inlined_call_operand.vmem [shape: f32[1,128], index: 12, kind: input, shape index: {}]
  %s13 = inlined_call_operand.vmem [shape: f32[1,128], index: 13, kind: input, shape index: {}]
  %s14 = inlined_call_operand.vmem [shape: f32[1,128], index: 14, kind: input, shape index: {}]
  %s15 = inlined_call_operand.vmem [shape: f32[1,128], index: 15, kind: input, shape index: {}]
  %s16 = inlined_call_operand.vmem [shape: bf16[128,128], index: 16, kind: input, shape index: {}]
  %s17 = inlined_call_operand.vmem [shape: f32[1,128], index: 17, kind: input, shape index: {}]
  %s18 = inlined_call_operand.hbm [shape: f32[2,1,128], index: 18, kind: output, shape index: {}]
  %s19 = sld [smem:[#allocation0]]
  $region105: #{convnext_forward.1} parent=0
    _
  %s21 = ssub.s32 1, %s19
  %s22 = scalar_select 0, %s21, %s19
  $region1: #{convnext_forward.1} parent=0
    #allocation3 [shape = 'u8[1024]{0}', space=vmem, size = 0x400, scoped, tag = 'output window, operand 0']
    #allocation4 [shape = 's32[2]{0}', space=sflag, size = 0x8, scoped, tag = 'scoped memory for convnext_forward.1']
    %23 = vsyncpa [#allocation4], 0
    %s24 = scalar_lea.sflag [#allocation4], 1
    %25 = vsyncpa %s24, 0
    loop: start=0, step=1, limit=4
    $region2: #{convnext_forward.1} parent=1 // loop_pre_header
      _
    $region3: #{convnext_forward.1} parent=1 // loop_header
      %s27 = sphi 0, %s31
      %p28 = scmp.ge.s32.totalorder %s27, 4
      %s37 = sphi 0, %s39
      %s40 = sphi 0, %s37
      %s41 = sphi 0, %s40
      %s57 = sphi 0, %s41
      %s61 = sphi 0, %s61
      %s63 = sphi 0, %s61
      %s64 = sphi 0, %s63
      %s78 = sphi 0, %s64
      %s82 = sphi 0, %s82
      %s84 = sphi 0, %s82
      %s85 = sphi 0, %s84
      %s99 = sphi 0, %s85
      %s103 = sphi 0, %s103
      %s105 = sphi 0, %s103
      %s106 = sphi 0, %s105
      %s120 = sphi 0, %s106
      %s124 = sphi 0, %s124
      %s126 = sphi 0, %s124
      %s127 = sphi 0, %s126
      %s141 = sphi 0, %s127
      %s145 = sphi 0, %s145
      %s147 = sphi 0, %s145
      %s148 = sphi 0, %s147
      %s162 = sphi 0, %s148
      %s166 = sphi 0, %s166
      %s168 = sphi 0, %s166
      %s169 = sphi 0, %s168
      %s183 = sphi 0, %s169
      %s187 = sphi 0, %s187
      %s189 = sphi 0, %s187
      %s190 = sphi 0, %s189
      %s204 = sphi 0, %s190
      %s208 = sphi 0, %s208
      %s210 = sphi 0, %s208
      %s211 = sphi 0, %s210
      %s225 = sphi 0, %s211
      %s229 = sphi 0, %s229
      %s231 = sphi 0, %s229
      %s232 = sphi 0, %s231
      %s246 = sphi 0, %s232
      %s250 = sphi 0, %s250
      %s252 = sphi 0, %s250
      %s253 = sphi 0, %s252
      %s267 = sphi 0, %s253
      %s271 = sphi 0, %s271
      %s273 = sphi 0, %s271
      %s274 = sphi 0, %s273
      %s288 = sphi 0, %s274
      %s292 = sphi 0, %s292
      %s294 = sphi 0, %s292
      %s295 = sphi 0, %s294
      %s309 = sphi 0, %s295
      %s313 = sphi 0, %s313
      %s315 = sphi 0, %s313
      %s316 = sphi 0, %s315
      %s330 = sphi 0, %s316
      %s334 = sphi 0, %s334
      %s336 = sphi 0, %s334
      %s337 = sphi 0, %s336
      %s351 = sphi 0, %s337
      %s355 = sphi 0, %s355
      %s357 = sphi 0, %s355
      %s358 = sphi 0, %s357
      %s372 = sphi 0, %s358
      %s376 = sphi 0, %s376
      %s378 = sphi 0, %s376
      %s379 = sphi 0, %s378
      %s393 = sphi 0, %s379
      %s397 = sphi 0, %s397
      %s399 = sphi 0, %s397
      %s400 = sphi 0, %s399
      %s414 = sphi 0, %s400
      %s420 = sphi 0, %s422
      %s423 = sphi 0, %s420
      %s424 = sphi 0, %s423
      %s440 = sphi 0, %s424
    $region4: #{convnext_forward.1} parent=1 // loop_header_branch
      %30 = sbr.rel (%p28) target = $region8
    $region5: #{convnext_forward.1} parent=1 // loop_body
      %s32 = ssub.s32 %s27, 1
      %s33 = ssub.s32 %s27, 2
      %s34 = sadd.s32 %s27, 1
      %s35 = ssub.s32 %s27, %s34
      %p36 = scmp.eq.s32.totalorder %s35, 0
      %s38 = sadd.s32 %s37, 1
      %s39 = scalar_select %p36, %s37, %s38
      %p42 = pneg %p36
      %p43 = scmp.eq.s32.totalorder %s27, 1
      %p44 = por %p42, %p43
      %p45 = scmp.ne.s32.totalorder %s37, %s40
      %p46 = scmp.eq.s32.totalorder %s27, 0
      %p47 = por %p45, %p46
      %p48 = scmp.ne.s32.totalorder %s37, %s40
      %p49 = scmp.eq.s32.totalorder %s32, 1
      %p50 = por %p48, %p49
      %p51 = scmp.ne.s32.totalorder %s40, %s41
      %p52 = scmp.eq.s32.totalorder %s32, 0
      %p53 = por %p51, %p52
      %p54 = scmp.ne.s32.totalorder %s40, %s41
      %p55 = scmp.eq.s32.totalorder %s33, 1
      %p56 = por %p54, %p55
      %p58 = scmp.ne.s32.totalorder %s41, %s57
      %p59 = scmp.eq.s32.totalorder %s33, 0
      %p60 = por %p58, %p59
      %s62 = sadd.s32 %s61, 1
      %p65 = scmp.eq.s32.totalorder %s27, 1
      %p66 = scmp.ne.s32.totalorder %s61, %s63
      %p67 = scmp.eq.s32.totalorder %s27, 0
      %p68 = por %p66, %p67
      %p69 = scmp.ne.s32.totalorder %s61, %s63
      %p70 = scmp.eq.s32.totalorder %s32, 1
      %p71 = por %p69, %p70
      %p72 = scmp.ne.s32.totalorder %s63, %s64
      %p73 = scmp.eq.s32.totalorder %s32, 0
      %p74 = por %p72, %p73
      %p75 = scmp.ne.s32.totalorder %s63, %s64
      %p76 = scmp.eq.s32.totalorder %s33, 1
      %p77 = por %p75, %p76
      %p79 = scmp.ne.s32.totalorder %s64, %s78
      %p80 = scmp.eq.s32.totalorder %s33, 0
      %p81 = por %p79, %p80
      %s83 = sadd.s32 %s82, 1
      %p86 = scmp.eq.s32.totalorder %s27, 1
      %p87 = scmp.ne.s32.totalorder %s82, %s84
      %p88 = scmp.eq.s32.totalorder %s27, 0
      %p89 = por %p87, %p88
      %p90 = scmp.ne.s32.totalorder %s82, %s84
      %p91 = scmp.eq.s32.totalorder %s32, 1
      %p92 = por %p90, %p91
      %p93 = scmp.ne.s32.totalorder %s84, %s85
      %p94 = scmp.eq.s32.totalorder %s32, 0
      %p95 = por %p93, %p94
      %p96 = scmp.ne.s32.totalorder %s84, %s85
      %p97 = scmp.eq.s32.totalorder %s33, 1
      %p98 = por %p96, %p97
      %p100 = scmp.ne.s32.totalorder %s85, %s99
      %p101 = scmp.eq.s32.totalorder %s33, 0
      %p102 = por %p100, %p101
      %s104 = sadd.s32 %s103, 1
      %p107 = scmp.eq.s32.totalorder %s27, 1
      %p108 = scmp.ne.s32.totalorder %s103, %s105
      %p109 = scmp.eq.s32.totalorder %s27, 0
      %p110 = por %p108, %p109
      %p111 = scmp.ne.s32.totalorder %s103, %s105
      %p112 = scmp.eq.s32.totalorder %s32, 1
      %p113 = por %p111, %p112
      %p114 = scmp.ne.s32.totalorder %s105, %s106
      %p115 = scmp.eq.s32.totalorder %s32, 0
      %p116 = por %p114, %p115
      %p117 = scmp.ne.s32.totalorder %s105, %s106
      %p118 = scmp.eq.s32.totalorder %s33, 1
      %p119 = por %p117, %p118
      %p121 = scmp.ne.s32.totalorder %s106, %s120
      %p122 = scmp.eq.s32.totalorder %s33, 0
      %p123 = por %p121, %p122
      %s125 = sadd.s32 %s124, 1
      %p128 = scmp.eq.s32.totalorder %s27, 1
      %p129 = scmp.ne.s32.totalorder %s124, %s126
      %p130 = scmp.eq.s32.totalorder %s27, 0
      %p131 = por %p129, %p130
      %p132 = scmp.ne.s32.totalorder %s124, %s126
      %p133 = scmp.eq.s32.totalorder %s32, 1
      %p134 = por %p132, %p133
      %p135 = scmp.ne.s32.totalorder %s126, %s127
      %p136 = scmp.eq.s32.totalorder %s32, 0
      %p137 = por %p135, %p136
      %p138 = scmp.ne.s32.totalorder %s126, %s127
      %p139 = scmp.eq.s32.totalorder %s33, 1
      %p140 = por %p138, %p139
      %p142 = scmp.ne.s32.totalorder %s127, %s141
      %p143 = scmp.eq.s32.totalorder %s33, 0
      %p144 = por %p142, %p143
      %s146 = sadd.s32 %s145, 1
      %p149 = scmp.eq.s32.totalorder %s27, 1
      %p150 = scmp.ne.s32.totalorder %s145, %s147
      %p151 = scmp.eq.s32.totalorder %s27, 0
      %p152 = por %p150, %p151
      %p153 = scmp.ne.s32.totalorder %s145, %s147
      %p154 = scmp.eq.s32.totalorder %s32, 1
      %p155 = por %p153, %p154
      %p156 = scmp.ne.s32.totalorder %s147, %s148
      %p157 = scmp.eq.s32.totalorder %s32, 0
      %p158 = por %p156, %p157
      %p159 = scmp.ne.s32.totalorder %s147, %s148
      %p160 = scmp.eq.s32.totalorder %s33, 1
      %p161 = por %p159, %p160
      %p163 = scmp.ne.s32.totalorder %s148, %s162
      %p164 = scmp.eq.s32.totalorder %s33, 0
      %p165 = por %p163, %p164
      %s167 = sadd.s32 %s166, 1
      %p170 = scmp.eq.s32.totalorder %s27, 1
      %p171 = scmp.ne.s32.totalorder %s166, %s168
      %p172 = scmp.eq.s32.totalorder %s27, 0
      %p173 = por %p171, %p172
      %p174 = scmp.ne.s32.totalorder %s166, %s168
      %p175 = scmp.eq.s32.totalorder %s32, 1
      %p176 = por %p174, %p175
      %p177 = scmp.ne.s32.totalorder %s168, %s169
      %p178 = scmp.eq.s32.totalorder %s32, 0
      %p179 = por %p177, %p178
      %p180 = scmp.ne.s32.totalorder %s168, %s169
      %p181 = scmp.eq.s32.totalorder %s33, 1
      %p182 = por %p180, %p181
      %p184 = scmp.ne.s32.totalorder %s169, %s183
      %p185 = scmp.eq.s32.totalorder %s33, 0
      %p186 = por %p184, %p185
      %s188 = sadd.s32 %s187, 1
      %p191 = scmp.eq.s32.totalorder %s27, 1
      %p192 = scmp.ne.s32.totalorder %s187, %s189
      %p193 = scmp.eq.s32.totalorder %s27, 0
      %p194 = por %p192, %p193
      %p195 = scmp.ne.s32.totalorder %s187, %s189
      %p196 = scmp.eq.s32.totalorder %s32, 1
      %p197 = por %p195, %p196
      %p198 = scmp.ne.s32.totalorder %s189, %s190
      %p199 = scmp.eq.s32.totalorder %s32, 0
      %p200 = por %p198, %p199
      %p201 = scmp.ne.s32.totalorder %s189, %s190
      %p202 = scmp.eq.s32.totalorder %s33, 1
      %p203 = por %p201, %p202
      %p205 = scmp.ne.s32.totalorder %s190, %s204
      %p206 = scmp.eq.s32.totalorder %s33, 0
      %p207 = por %p205, %p206
      %s209 = sadd.s32 %s208, 1
      %p212 = scmp.eq.s32.totalorder %s27, 1
      %p213 = scmp.ne.s32.totalorder %s208, %s210
      %p214 = scmp.eq.s32.totalorder %s27, 0
      %p215 = por %p213, %p214
      %p216 = scmp.ne.s32.totalorder %s208, %s210
      %p217 = scmp.eq.s32.totalorder %s32, 1
      %p218 = por %p216, %p217
      %p219 = scmp.ne.s32.totalorder %s210, %s211
      %p220 = scmp.eq.s32.totalorder %s32, 0
      %p221 = por %p219, %p220
      %p222 = scmp.ne.s32.totalorder %s210, %s211
      %p223 = scmp.eq.s32.totalorder %s33, 1
      %p224 = por %p222, %p223
      %p226 = scmp.ne.s32.totalorder %s211, %s225
      %p227 = scmp.eq.s32.totalorder %s33, 0
      %p228 = por %p226, %p227
      %s230 = sadd.s32 %s229, 1
      %p233 = scmp.eq.s32.totalorder %s27, 1
      %p234 = scmp.ne.s32.totalorder %s229, %s231
      %p235 = scmp.eq.s32.totalorder %s27, 0
      %p236 = por %p234, %p235
      %p237 = scmp.ne.s32.totalorder %s229, %s231
      %p238 = scmp.eq.s32.totalorder %s32, 1
      %p239 = por %p237, %p238
      %p240 = scmp.ne.s32.totalorder %s231, %s232
      %p241 = scmp.eq.s32.totalorder %s32, 0
      %p242 = por %p240, %p241
      %p243 = scmp.ne.s32.totalorder %s231, %s232
      %p244 = scmp.eq.s32.totalorder %s33, 1
      %p245 = por %p243, %p244
      %p247 = scmp.ne.s32.totalorder %s232, %s246
      %p248 = scmp.eq.s32.totalorder %s33, 0
      %p249 = por %p247, %p248
      %s251 = sadd.s32 %s250, 1
      %p254 = scmp.eq.s32.totalorder %s27, 1
      %p255 = scmp.ne.s32.totalorder %s250, %s252
      %p256 = scmp.eq.s32.totalorder %s27, 0
      %p257 = por %p255, %p256
      %p258 = scmp.ne.s32.totalorder %s250, %s252
      %p259 = scmp.eq.s32.totalorder %s32, 1
      %p260 = por %p258, %p259
      %p261 = scmp.ne.s32.totalorder %s252, %s253
      %p262 = scmp.eq.s32.totalorder %s32, 0
      %p263 = por %p261, %p262
      %p264 = scmp.ne.s32.totalorder %s252, %s253
      %p265 = scmp.eq.s32.totalorder %s33, 1
      %p266 = por %p264, %p265
      %p268 = scmp.ne.s32.totalorder %s253, %s267
      %p269 = scmp.eq.s32.totalorder %s33, 0
      %p270 = por %p268, %p269
      %s272 = sadd.s32 %s271, 1
      %p275 = scmp.eq.s32.totalorder %s27, 1
      %p276 = scmp.ne.s32.totalorder %s271, %s273
      %p277 = scmp.eq.s32.totalorder %s27, 0
      %p278 = por %p276, %p277
      %p279 = scmp.ne.s32.totalorder %s271, %s273
      %p280 = scmp.eq.s32.totalorder %s32, 1
      %p281 = por %p279, %p280
      %p282 = scmp.ne.s32.totalorder %s273, %s274
      %p283 = scmp.eq.s32.totalorder %s32, 0
      %p284 = por %p282, %p283
      %p285 = scmp.ne.s32.totalorder %s273, %s274
      %p286 = scmp.eq.s32.totalorder %s33, 1
      %p287 = por %p285, %p286
      %p289 = scmp.ne.s32.totalorder %s274, %s288
      %p290 = scmp.eq.s32.totalorder %s33, 0
      %p291 = por %p289, %p290
      %s293 = sadd.s32 %s292, 1
      %p296 = scmp.eq.s32.totalorder %s27, 1
      %p297 = scmp.ne.s32.totalorder %s292, %s294
      %p298 = scmp.eq.s32.totalorder %s27, 0
      %p299 = por %p297, %p298
      %p300 = scmp.ne.s32.totalorder %s292, %s294
      %p301 = scmp.eq.s32.totalorder %s32, 1
      %p302 = por %p300, %p301
      %p303 = scmp.ne.s32.totalorder %s294, %s295
      %p304 = scmp.eq.s32.totalorder %s32, 0
      %p305 = por %p303, %p304
      %p306 = scmp.ne.s32.totalorder %s294, %s295
      %p307 = scmp.eq.s32.totalorder %s33, 1
      %p308 = por %p306, %p307
      %p310 = scmp.ne.s32.totalorder %s295, %s309
      %p311 = scmp.eq.s32.totalorder %s33, 0
      %p312 = por %p310, %p311
      %s314 = sadd.s32 %s313, 1
      %p317 = scmp.eq.s32.totalorder %s27, 1
      %p318 = scmp.ne.s32.totalorder %s313, %s315
      %p319 = scmp.eq.s32.totalorder %s27, 0
      %p320 = por %p318, %p319
      %p321 = scmp.ne.s32.totalorder %s313, %s315
      %p322 = scmp.eq.s32.totalorder %s32, 1
      %p323 = por %p321, %p322
      %p324 = scmp.ne.s32.totalorder %s315, %s316
      %p325 = scmp.eq.s32.totalorder %s32, 0
      %p326 = por %p324, %p325
      %p327 = scmp.ne.s32.totalorder %s315, %s316
      %p328 = scmp.eq.s32.totalorder %s33, 1
      %p329 = por %p327, %p328
      %p331 = scmp.ne.s32.totalorder %s316, %s330
      %p332 = scmp.eq.s32.totalorder %s33, 0
      %p333 = por %p331, %p332
      %s335 = sadd.s32 %s334, 1
      %p338 = scmp.eq.s32.totalorder %s27, 1
      %p339 = scmp.ne.s32.totalorder %s334, %s336
      %p340 = scmp.eq.s32.totalorder %s27, 0
      %p341 = por %p339, %p340
      %p342 = scmp.ne.s32.totalorder %s334, %s336
      %p343 = scmp.eq.s32.totalorder %s32, 1
      %p344 = por %p342, %p343
      %p345 = scmp.ne.s32.totalorder %s336, %s337
      %p346 = scmp.eq.s32.totalorder %s32, 0
      %p347 = por %p345, %p346
      %p348 = scmp.ne.s32.totalorder %s336, %s337
      %p349 = scmp.eq.s32.totalorder %s33, 1
      %p350 = por %p348, %p349
      %p352 = scmp.ne.s32.totalorder %s337, %s351
      %p353 = scmp.eq.s32.totalorder %s33, 0
      %p354 = por %p352, %p353
      %s356 = sadd.s32 %s355, 1
      %p359 = scmp.eq.s32.totalorder %s27, 1
      %p360 = scmp.ne.s32.totalorder %s355, %s357
      %p361 = scmp.eq.s32.totalorder %s27, 0
      %p362 = por %p360, %p361
      %p363 = scmp.ne.s32.totalorder %s355, %s357
      %p364 = scmp.eq.s32.totalorder %s32, 1
      %p365 = por %p363, %p364
      %p366 = scmp.ne.s32.totalorder %s357, %s358
      %p367 = scmp.eq.s32.totalorder %s32, 0
      %p368 = por %p366, %p367
      %p369 = scmp.ne.s32.totalorder %s357, %s358
      %p370 = scmp.eq.s32.totalorder %s33, 1
      %p371 = por %p369, %p370
      %p373 = scmp.ne.s32.totalorder %s358, %s372
      %p374 = scmp.eq.s32.totalorder %s33, 0
      %p375 = por %p373, %p374
      %s377 = sadd.s32 %s376, 1
      %p380 = scmp.eq.s32.totalorder %s27, 1
      %p381 = scmp.ne.s32.totalorder %s376, %s378
      %p382 = scmp.eq.s32.totalorder %s27, 0
      %p383 = por %p381, %p382
      %p384 = scmp.ne.s32.totalorder %s376, %s378
      %p385 = scmp.eq.s32.totalorder %s32, 1
      %p386 = por %p384, %p385
      %p387 = scmp.ne.s32.totalorder %s378, %s379
      %p388 = scmp.eq.s32.totalorder %s32, 0
      %p389 = por %p387, %p388
      %p390 = scmp.ne.s32.totalorder %s378, %s379
      %p391 = scmp.eq.s32.totalorder %s33, 1
      %p392 = por %p390, %p391
      %p394 = scmp.ne.s32.totalorder %s379, %s393
      %p395 = scmp.eq.s32.totalorder %s33, 0
      %p396 = por %p394, %p395
      %s398 = sadd.s32 %s397, 1
      %p401 = scmp.eq.s32.totalorder %s27, 1
      %p402 = scmp.ne.s32.totalorder %s397, %s399
      %p403 = scmp.eq.s32.totalorder %s27, 0
      %p404 = por %p402, %p403
      %p405 = scmp.ne.s32.totalorder %s397, %s399
      %p406 = scmp.eq.s32.totalorder %s32, 1
      %p407 = por %p405, %p406
      %p408 = scmp.ne.s32.totalorder %s399, %s400
      %p409 = scmp.eq.s32.totalorder %s32, 0
      %p410 = por %p408, %p409
      %p411 = scmp.ne.s32.totalorder %s399, %s400
      %p412 = scmp.eq.s32.totalorder %s33, 1
      %p413 = por %p411, %p412
      %p415 = scmp.ne.s32.totalorder %s400, %s414
      %p416 = scmp.eq.s32.totalorder %s33, 0
      %p417 = por %p415, %p416
      %s418 = ssub.s32 %s27, %s34
      %p419 = scmp.eq.s32.totalorder %s418, 0
      %s421 = sadd.s32 %s420, 1
      %s422 = scalar_select %p419, %s420, %s421
      %p425 = pneg %p419
      %p426 = scmp.eq.s32.totalorder %s27, 1
      %p427 = por %p425, %p426
      %p428 = scmp.ne.s32.totalorder %s420, %s423
      %p429 = scmp.eq.s32.totalorder %s27, 0
      %p430 = por %p428, %p429
      %p431 = scmp.ne.s32.totalorder %s420, %s423
      %p432 = scmp.eq.s32.totalorder %s32, 1
      %p433 = por %p431, %p432
      %p434 = scmp.ne.s32.totalorder %s423, %s424
      %p435 = scmp.eq.s32.totalorder %s32, 0
      %p436 = por %p434, %p435
      %p437 = scmp.ne.s32.totalorder %s423, %s424
      %p438 = scmp.eq.s32.totalorder %s33, 1
      %p439 = por %p437, %p438
      %p441 = scmp.ne.s32.totalorder %s424, %s440
      %p442 = scmp.eq.s32.totalorder %s33, 0
      %p443 = por %p441, %p442
      %p444 = scmp.le.s32.totalorder 1, %s27
      %p445 = scmp.lt.s32.totalorder %s27, 3
      %p446 = pnand %p444, %p445
      %p447 = pneg %p446
      // Predicated region
      $region9: #{convnext_forward.1} parent=5 // pred_check
        _
      $region10: #{convnext_forward.1} parent=5 // pred_check_branch
        %449 = sbr.rel (%p446) target = $region12
      $region11: #{convnext_forward.1} parent=5 // pred_region
        %s450 = ssub.s32 %s27, 1
        // Predicated region
        $region13: #{convnext_forward.1} parent=11 // pred_check
          %p451 = pneg %p74
        $region14: #{convnext_forward.1} parent=11 // pred_check_branch
          %453 = sbr.rel (%p451) target = $region16
        $region15: #{convnext_forward.1} parent=11 // pred_region
          _
        $region16: #{convnext_forward.1} parent=11 // pred_fallthru
          _
        // Predicated region
        $region17: #{convnext_forward.1} parent=11 // pred_check
          %p454 = pneg %p95
        $region18: #{convnext_forward.1} parent=11 // pred_check_branch
          %456 = sbr.rel (%p454) target = $region20
        $region19: #{convnext_forward.1} parent=11 // pred_region
          _
        $region20: #{convnext_forward.1} parent=11 // pred_fallthru
          _
        // Predicated region
        $region21: #{convnext_forward.1} parent=11 // pred_check
          %p457 = pneg %p116
        $region22: #{convnext_forward.1} parent=11 // pred_check_branch
          %459 = sbr.rel (%p457) target = $region24
        $region23: #{convnext_forward.1} parent=11 // pred_region
          _
        $region24: #{convnext_forward.1} parent=11 // pred_fallthru
          _
        // Predicated region
        $region25: #{convnext_forward.1} parent=11 // pred_check
          %p460 = pneg %p137
        $region26: #{convnext_forward.1} parent=11 // pred_check_branch
          %462 = sbr.rel (%p460) target = $region28
        $region27: #{convnext_forward.1} parent=11 // pred_region
          _
        $region28: #{convnext_forward.1} parent=11 // pred_fallthru
          _
        // Predicated region
        $region29: #{convnext_forward.1} parent=11 // pred_check
          %p463 = pneg %p158
        $region30: #{convnext_forward.1} parent=11 // pred_check_branch
          %465 = sbr.rel (%p463) target = $region32
        $region31: #{convnext_forward.1} parent=11 // pred_region
          _
        $region32: #{convnext_forward.1} parent=11 // pred_fallthru
          _
        // Predicated region
        $region33: #{convnext_forward.1} parent=11 // pred_check
          %p466 = pneg %p179
        $region34: #{convnext_forward.1} parent=11 // pred_check_branch
          %468 = sbr.rel (%p466) target = $region36
        $region35: #{convnext_forward.1} parent=11 // pred_region
          _
        $region36: #{convnext_forward.1} parent=11 // pred_fallthru
          _
        // Predicated region
        $region37: #{convnext_forward.1} parent=11 // pred_check
          %p469 = pneg %p200
        $region38: #{convnext_forward.1} parent=11 // pred_check_branch
          %471 = sbr.rel (%p469) target = $region40
        $region39: #{convnext_forward.1} parent=11 // pred_region
          _
        $region40: #{convnext_forward.1} parent=11 // pred_fallthru
          _
        // Predicated region
        $region41: #{convnext_forward.1} parent=11 // pred_check
          %p472 = pneg %p221
        $region42: #{convnext_forward.1} parent=11 // pred_check_branch
          %474 = sbr.rel (%p472) target = $region44
        $region43: #{convnext_forward.1} parent=11 // pred_region
          _
        $region44: #{convnext_forward.1} parent=11 // pred_fallthru
          _
        // Predicated region
        $region45: #{convnext_forward.1} parent=11 // pred_check
          %p475 = pneg %p242
        $region46: #{convnext_forward.1} parent=11 // pred_check_branch
          %477 = sbr.rel (%p475) target = $region48
        $region47: #{convnext_forward.1} parent=11 // pred_region
          _
        $region48: #{convnext_forward.1} parent=11 // pred_fallthru
          _
        // Predicated region
        $region49: #{convnext_forward.1} parent=11 // pred_check
          %p478 = pneg %p263
        $region50: #{convnext_forward.1} parent=11 // pred_check_branch
          %480 = sbr.rel (%p478) target = $region52
        $region51: #{convnext_forward.1} parent=11 // pred_region
          _
        $region52: #{convnext_forward.1} parent=11 // pred_fallthru
          _
        // Predicated region
        $region53: #{convnext_forward.1} parent=11 // pred_check
          %p481 = pneg %p284
        $region54: #{convnext_forward.1} parent=11 // pred_check_branch
          %483 = sbr.rel (%p481) target = $region56
        $region55: #{convnext_forward.1} parent=11 // pred_region
          _
        $region56: #{convnext_forward.1} parent=11 // pred_fallthru
          _
        // Predicated region
        $region57: #{convnext_forward.1} parent=11 // pred_check
          %p484 = pneg %p305
        $region58: #{convnext_forward.1} parent=11 // pred_check_branch
          %486 = sbr.rel (%p484) target = $region60
        $region59: #{convnext_forward.1} parent=11 // pred_region
          _
        $region60: #{convnext_forward.1} parent=11 // pred_fallthru
          _
        // Predicated region
        $region61: #{convnext_forward.1} parent=11 // pred_check
          %p487 = pneg %p326
        $region62: #{convnext_forward.1} parent=11 // pred_check_branch
          %489 = sbr.rel (%p487) target = $region64
        $region63: #{convnext_forward.1} parent=11 // pred_region
          _
        $region64: #{convnext_forward.1} parent=11 // pred_fallthru
          _
        // Predicated region
        $region65: #{convnext_forward.1} parent=11 // pred_check
          %p490 = pneg %p347
        $region66: #{convnext_forward.1} parent=11 // pred_check_branch
          %492 = sbr.rel (%p490) target = $region68
        $region67: #{convnext_forward.1} parent=11 // pred_region
          _
        $region68: #{convnext_forward.1} parent=11 // pred_fallthru
          _
        // Predicated region
        $region69: #{convnext_forward.1} parent=11 // pred_check
          %p493 = pneg %p368
        $region70: #{convnext_forward.1} parent=11 // pred_check_branch
          %495 = sbr.rel (%p493) target = $region72
        $region71: #{convnext_forward.1} parent=11 // pred_region
          _
        $region72: #{convnext_forward.1} parent=11 // pred_fallthru
          _
        // Predicated region
        $region73: #{convnext_forward.1} parent=11 // pred_check
          %p496 = pneg %p389
        $region74: #{convnext_forward.1} parent=11 // pred_check_branch
          %498 = sbr.rel (%p496) target = $region76
        $region75: #{convnext_forward.1} parent=11 // pred_region
          _
        $region76: #{convnext_forward.1} parent=11 // pred_fallthru
          _
        // Predicated region
        $region77: #{convnext_forward.1} parent=11 // pred_check
          %p499 = pneg %p410
        $region78: #{convnext_forward.1} parent=11 // pred_check_branch
          %501 = sbr.rel (%p499) target = $region80
        $region79: #{convnext_forward.1} parent=11 // pred_region
          _
        $region80: #{convnext_forward.1} parent=11 // pred_fallthru
          _
      $region12: #{convnext_forward.1} parent=5 // pred_fallthru
        _
      %p502 = scmp.lt.s32.totalorder %s27, 2
      // Predicated region
      $region81: #{convnext_forward.1} parent=5 // pred_check
        %p503 = pneg %p502
      $region82: #{convnext_forward.1} parent=5 // pred_check_branch
        %505 = sbr.rel (%p503) target = $region84
      $region83: #{convnext_forward.1} parent=5 // pred_region
        // Predicated region
        $region85: #{convnext_forward.1} parent=83 // pred_check
          %p506 = pneg %p47
        $region86: #{convnext_forward.1} parent=83 // pred_check_branch
          %508 = sbr.rel (%p506) target = $region88
        $region87: #{convnext_forward.1} parent=83 // pred_region
          %p509 = scmp.lt.s32.totalorder %s27, 1
          %s510 = scalar_select %p509, %s27, 1
          %s511 = smul.addr %s510, 8
          %s512 = smul.addr %s511, 4
          %s513 = scalar_lea.vmem %s0, %s512
        $region88: #{convnext_forward.1} parent=83 // pred_fallthru
          _
      $region84: #{convnext_forward.1} parent=5 // pred_fallthru
        _
      %p514 = scmp.le.s32.totalorder 1, %s27
      %p515 = scmp.lt.s32.totalorder %s27, 3
      %p516 = pnand %p514, %p515
      %p517 = pneg %p516
      // Predicated region
      $region89: #{convnext_forward.1} parent=5 // pred_check
        _
      $region90: #{convnext_forward.1} parent=5 // pred_check_branch
        %519 = sbr.rel (%p516) target = $region92
      $region91: #{convnext_forward.1} parent=5 // pred_region
        %s520 = ssub.s32 %s27, 1
        %p521 = scmp.lt.s32.totalorder %s32, 1
        %s522 = scalar_select %p521, %s32, 1
        %s523 = smul.addr %s522, 8
        %s524 = smul.addr %s523, 4
        %s525 = scalar_lea.vmem %s0, %s524
        %p526 = pneg %p53
        %p527 = pneg %p50
        %p528 = pneg %p74
        %p529 = pneg %p71
        %p530 = pneg %p95
        %p531 = pneg %p92
        %p532 = pneg %p116
        %p533 = pneg %p113
        %p534 = pneg %p137
        %p535 = pneg %p134
        %p536 = pneg %p158
        %p537 = pneg %p155
        %p538 = pneg %p179
        %p539 = pneg %p176
        %p540 = pneg %p200
        %p541 = pneg %p197
        %p542 = pneg %p221
        %p543 = pneg %p218
        %p544 = pneg %p242
        %p545 = pneg %p239
        %p546 = pneg %p263
        %p547 = pneg %p260
        %p548 = pneg %p284
        %p549 = pneg %p281
        %p550 = pneg %p305
        %p551 = pneg %p302
        %p552 = pneg %p326
        %p553 = pneg %p323
        %p554 = pneg %p347
        %p555 = pneg %p344
        %p556 = pneg %p368
        %p557 = pneg %p365
        %p558 = pneg %p389
        %p559 = pneg %p386
        %p560 = pneg %p410
        %p561 = pneg %p407
        %p562 = pneg %p436
        %p563 = pneg %p433
        %s564 = sand.u32 %s423, 1
        %s565 = scalar_lea.sflag [#allocation4], %s564
        %s566 = sand.u32 %s423, 1
        %s567 = scalar_lea.vmem [#allocation3], %s566
        %p568 = scmp.lt.s32.totalorder %s32, 1
        %s569 = scalar_select %p568, %s32, 1
        %s570 = smul.addr %s569, 8
        %s571 = smul.addr %s570, 4
        %s572 = scalar_lea.vmem %s0, %s571
        %v574 = vld [vmem:[%s572] sm:$0xf]
        %v575 = vld [vmem:[%s572 + $0x4] sm:$0xf]
        %v576 = vld [vmem:[%s572 + $0x8] sm:$0xf]
        %v577 = vld [vmem:[%s572 + $0xc] sm:$0xf]
        %v578 = vld [vmem:[%s572 + $0x10] sm:$0xf]
        %v579 = vld [vmem:[%s572 + $0x14] sm:$0xf]
        %v580 = vld [vmem:[%s572 + $0x18] sm:$0xf]
        %v581 = vld [vmem:[%s572 + $0x1c] sm:$0xf]
        %v582 = vld [vmem:[%s1] sm:$0xf]
        %v583 = vld [vmem:[%s1 + $0x4] sm:$0xf]
        %v584 = vld [vmem:[%s1 + $0x8] sm:$0xf]
        %v585 = vld [vmem:[%s1 + $0xc] sm:$0xf]
        %v586 = vld [vmem:[%s1 + $0x10] sm:$0xf]
        %v587 = vld [vmem:[%s1 + $0x14] sm:$0xf]
        %v588 = vld [vmem:[%s2] sm:$0x1]
        %v590 = vlaneseq
        %v591 = vshrl.u32 %v590, 7
        %v592 = vsub.s32 0, %v591
        %v593 = vrot.slane %v588, %v592
        %v603 = vunpack.c.l.b16 %v574
        %v604 = vunpack.c.l.b16 %v575
        %v605 = vunpack.c.l.b16 %v576
        %v606 = vunpack.c.l.b16 %v577
        %v607 = vunpack.c.l.b16 %v578
        %v608 = vunpack.c.l.b16 %v579
        %v609 = vunpack.c.l.b16 %v580
        %v610 = vunpack.c.l.b16 %v581
        %v611 = vpack.c.b16 %v604, %v603
        %v612 = vpack.c.b16 %v606, %v605
        %v613 = vpack.c.b16 %v608, %v607
        %v614 = vpack.c.b16 %v610, %v609
        %v621 = vunpack.c.l.b16 %v582
        %v622 = vunpack.c.l.b16 %v583
        %v623 = vunpack.c.l.b16 %v584
        %v624 = vunpack.c.l.b16 %v585
        %v625 = vunpack.c.l.b16 %v586
        %v626 = vunpack.c.l.b16 %v587
        %v627 = vpack.c.b16 %v622, %v621
        %v628 = vpack.c.b16 %v624, %v623
        %v629 = vpack.c.b16 %v626, %v625
        %vm633 = vcmask 392192
        %v635 = vsel %vm633, %v611, 0
        %v638 = vsel %vm633, %v612, 0
        %v641 = vsel %vm633, %v613, 0
        %v644 = vsel %vm633, %v614, 0
        %646 = vmatprep.subr.bf16.mxu0 0
        %647 = vmatpush1.bf16.msra.mxu0 %v627
        %648 = vmatprep.subr.bf16.mxu0 0
        %649 = vmatpush1.bf16.msra.mxu0 %v628
        %650 = vmatprep.subr.bf16.mxu0 0
        %651 = vmatpush1.bf16.msra.mxu0 %v629
        %652 = vmatprep.subr.bf16.mxu0 0
        %653 = vmatpush1.bf16.msra.mxu0 0
        %654 = vmatprep.subr.bf16.mxu0 0
        %655 = vmatpush1.bf16.msra.mxu0 0
        %656 = vmatprep.subr.bf16.mxu0 0
        %657 = vmatpush1.bf16.msra.mxu0 0
        %658 = vmatprep.subr.bf16.mxu0 0
        %659 = vmatpush1.bf16.msra.mxu0 0
        %660 = vmatprep.subr.bf16.mxu0 0
        %661 = vmatpush1.bf16.msra.mxu0 0
        %662 = vmatprep.subr.bf16.mxu0 0
        %663 = vmatpush1.bf16.msra.mxu0 0
        %664 = vmatprep.subr.bf16.mxu0 0
        %665 = vmatpush1.bf16.msra.mxu0 0
        %666 = vmatprep.subr.bf16.mxu0 0
        %667 = vmatpush1.bf16.msra.mxu0 0
        %668 = vmatprep.subr.bf16.mxu0 0
        %669 = vmatpush1.bf16.msra.mxu0 0
        %670 = vmatprep.subr.bf16.mxu0 0
        %671 = vmatpush1.bf16.msra.mxu0 0
        %672 = vmatprep.subr.bf16.mxu0 0
        %673 = vmatpush1.bf16.msra.mxu0 0
        %674 = vmatprep.subr.bf16.mxu0 0
        %675 = vmatpush1.bf16.msra.mxu0 0
        %676 = vmatprep.subr.bf16.mxu0 0
        %677 = vmatpush1.bf16.msra.mxu0 0
        %678 = vmatprep.mubr.bf16.mxu0 0
        %679 = vmatmul.mubr.bf16.gmra.mrb[0].mxu0 %v635
        %v680 = vpop.f32.mrb[0].mxu0
        %v681 = vadd.f32 %v593, %v680
        %v682 = vpop.f32.mrb[0].mxu0
        %v683 = vpop.f32.mrb[0].mxu0
        %v684 = vadd.f32 %v593, %v683
        %v685 = vpop.f32.mrb[0].mxu0
        %686 = vmatprep.mubr.bf16.mxu0 0
        %687 = vmatmul.mubr.bf16.gmra.mrb[0].mxu0 %v638
        %v688 = vpop.f32.mrb[0].mxu0
        %v689 = vadd.f32 %v593, %v688
        %v690 = vpop.f32.mrb[0].mxu0
        %v691 = vpop.f32.mrb[0].mxu0
        %v692 = vadd.f32 %v593, %v691
        %v693 = vpop.f32.mrb[0].mxu0
        %694 = vmatprep.mubr.bf16.mxu0 0
        %695 = vmatmul.mubr.bf16.gmra.mrb[0].mxu0 %v641
        %v696 = vpop.f32.mrb[0].mxu0
        %v697 = vadd.f32 %v593, %v696
        %v698 = vpop.f32.mrb[0].mxu0
        %v699 = vpop.f32.mrb[0].mxu0
        %v700 = vadd.f32 %v593, %v699
        %v701 = vpop.f32.mrb[0].mxu0
        %702 = vmatprep.mubr.bf16.mxu0 0
        %703 = vmatmul.mubr.bf16.gmra.mrb[0].mxu0 %v644
        %v704 = vpop.f32.mrb[0].mxu0
        %v705 = vadd.f32 %v593, %v704
        %v706 = vpop.f32.mrb[0].mxu0
        %v707 = vpop.f32.mrb[0].mxu0
        %v708 = vadd.f32 %v593, %v707
        %v709 = vpop.f32.mrb[0].mxu0
        %710 = vdwg.mxu0
        %v711 = vld [vmem:[%s3] sm:$0x1]
        %v712 = vld [vmem:[%s4] sm:$0x1]
        %713 = vadd.xlane.f32.xlu0 %v681
        %v714 = vpop.xlane.xlu0 %713
        %715 = vadd.xlane.f32.xlu0 %v684
        %v716 = vpop.xlane.xlu0 %715
        %717 = vadd.xlane.f32.xlu0 %v689
        %v718 = vpop.xlane.xlu0 %717
        %719 = vadd.xlane.f32.xlu0 %v692
        %v720 = vpop.xlane.xlu0 %719
        %721 = vadd.xlane.f32.xlu0 %v697
        %v722 = vpop.xlane.xlu0 %721
        %723 = vadd.xlane.f32.xlu0 %v700
        %v724 = vpop.xlane.xlu0 %723
        %725 = vadd.xlane.f32.xlu0 %v705
        %v726 = vpop.xlane.xlu0 %725
        %727 = vadd.xlane.f32.xlu0 %v708
        %v728 = vpop.xlane.xlu0 %727
        %v729 = vrcp.pop 128.0
        %v730 = vmul.f32 %v714, %v729
        %v731 = vmul.f32 %v716, %v729
        %v732 = vmul.f32 %v718, %v729
        %v733 = vmul.f32 %v720, %v729
        %v734 = vmul.f32 %v722, %v729
        %v735 = vmul.f32 %v724, %v729
        %v736 = vmul.f32 %v726, %v729
        %v737 = vmul.f32 %v728, %v729
        %v738 = vsub.f32 %v681, %v730
        %v739 = vsub.f32 %v684, %v731
        %v740 = vsub.f32 %v689, %v732
        %v741 = vsub.f32 %v692, %v733
        %v742 = vsub.f32 %v697, %v734
        %v743 = vsub.f32 %v700, %v735
        %v744 = vsub.f32 %v705, %v736
        %v745 = vsub.f32 %v708, %v737
        %v746 = vmul.f32 %v738, %v738
        %v747 = vmul.f32 %v739, %v739
        %v748 = vmul.f32 %v740, %v740
        %v749 = vmul.f32 %v741, %v741
        %v750 = vmul.f32 %v742, %v742
        %v751 = vmul.f32 %v743, %v743
        %v752 = vmul.f32 %v744, %v744
        %v753 = vmul.f32 %v745, %v745
        %754 = vadd.xlane.f32.xlu0 %v746
        %v755 = vpop.xlane.xlu0 %754
        %756 = vadd.xlane.f32.xlu0 %v747
        %v757 = vpop.xlane.xlu0 %756
        %758 = vadd.xlane.f32.xlu0 %v748
        %v759 = vpop.xlane.xlu0 %758
        %760 = vadd.xlane.f32.xlu0 %v749
        %v761 = vpop.xlane.xlu0 %760
        %762 = vadd.xlane.f32.xlu0 %v750
        %v763 = vpop.xlane.xlu0 %762
        %764 = vadd.xlane.f32.xlu0 %v751
        %v765 = vpop.xlane.xlu0 %764
        %766 = vadd.xlane.f32.xlu0 %v752
        %v767 = vpop.xlane.xlu0 %766
        %768 = vadd.xlane.f32.xlu0 %v753
        %v769 = vpop.xlane.xlu0 %768
        %v770 = vmul.f32 %v755, %v729
        %v771 = vmul.f32 %v757, %v729
        %v772 = vmul.f32 %v759, %v729
        %v773 = vmul.f32 %v761, %v729
        %v774 = vmul.f32 %v763, %v729
        %v775 = vmul.f32 %v765, %v729
        %v776 = vmul.f32 %v767, %v729
        %v777 = vmul.f32 %v769, %v729
        %v778 = vadd.f32 %v770, 1e-06
        %v779 = vadd.f32 %v771, 1e-06
        %v780 = vadd.f32 %v772, 1e-06
        %v781 = vadd.f32 %v773, 1e-06
        %v782 = vadd.f32 %v774, 1e-06
        %v783 = vadd.f32 %v775, 1e-06
        %v784 = vadd.f32 %v776, 1e-06
        %v785 = vadd.f32 %v777, 1e-06
        %v786 = vrsqrt.pop %v778
        %v787 = vrsqrt.pop %v779
        %v788 = vrsqrt.pop %v780
        %v789 = vrsqrt.pop %v781
        %v790 = vrsqrt.pop %v782
        %v791 = vrsqrt.pop %v783
        %v792 = vrsqrt.pop %v784
        %v793 = vrsqrt.pop %v785
        %v794 = vmul.f32 %v738, %v786
        %v795 = vmul.f32 %v739, %v787
        %v796 = vmul.f32 %v740, %v788
        %v797 = vmul.f32 %v741, %v789
        %v798 = vmul.f32 %v742, %v790
        %v799 = vmul.f32 %v743, %v791
        %v800 = vmul.f32 %v744, %v792
        %v801 = vmul.f32 %v745, %v793
        %v803 = vlaneseq
        %v804 = vshrl.u32 %v803, 7
        %v805 = vsub.s32 0, %v804
        %v806 = vrot.slane %v711, %v805
        %v808 = vmul.f32 %v794, %v806
        %v809 = vmul.f32 %v795, %v806
        %v810 = vmul.f32 %v796, %v806
        %v811 = vmul.f32 %v797, %v806
        %v812 = vmul.f32 %v798, %v806
        %v813 = vmul.f32 %v799, %v806
        %v814 = vmul.f32 %v800, %v806
        %v815 = vmul.f32 %v801, %v806
        %v817 = vlaneseq
        %v818 = vshrl.u32 %v817, 7
        %v819 = vsub.s32 0, %v818
        %v820 = vrot.slane %v712, %v819
        %v822 = vadd.f32 %v808, %v820
        %v823 = vadd.f32 %v809, %v820
        %v824 = vadd.f32 %v810, %v820
        %v825 = vadd.f32 %v811, %v820
        %v826 = vadd.f32 %v812, %v820
        %v827 = vadd.f32 %v813, %v820
        %v828 = vadd.f32 %v814, %v820
        %v829 = vadd.f32 %v815, %v820
        %830 = vst [vmem:[#allocation2] sm:$0xff] 0.0
        %831 = vst [vmem:[#allocation2 + $0x8] sm:$0xff] 0.0
        %832 = vst [vmem:[#allocation2 + $0x10] sm:$0x7] 0.0
        %833 = vst [vmem:[#allocation2 + $0x18] sm:$0xff] 0.0
        %834 = vst [vmem:[#allocation2 + $0x20] sm:$0xff] 0.0
        %835 = vst [vmem:[#allocation2 + $0x28] sm:$0x7] 0.0
        %836 = vst [vmem:[#allocation2 + $0x30] sm:$0xff] 0.0
        %837 = vst [vmem:[#allocation2 + $0x38] sm:$0xff] 0.0
        %838 = vst [vmem:[#allocation2 + $0x40] sm:$0x7] 0.0
        %839 = vst [vmem:[#allocation2 + $0x48] sm:$0xff] 0.0
        %840 = vst [vmem:[#allocation2 + $0x50] sm:$0xff] 0.0
        %841 = vst [vmem:[#allocation2 + $0x58] sm:$0x7] 0.0
        %842 = vst [vmem:[#allocation2 + $0x60] sm:$0xff] 0.0
        %843 = vst [vmem:[#allocation2 + $0x68] sm:$0xff] 0.0
        %844 = vst [vmem:[#allocation2 + $0x70] sm:$0x7] 0.0
        %845 = vst [vmem:[#allocation2 + $0x78] sm:$0xff] 0.0
        %846 = vst [vmem:[#allocation2 + $0x80] sm:$0xff] 0.0
        %847 = vst [vmem:[#allocation2 + $0x88] sm:$0x7] 0.0
        %848 = vst [vmem:[#allocation2 + $0x90] sm:$0xff] 0.0
        %849 = vst [vmem:[#allocation2 + $0x98] sm:$0xff] 0.0
        %850 = vst [vmem:[#allocation2 + $0xa0] sm:$0x7] 0.0
        %851 = vst [vmem:[#allocation2 + $0xa8] sm:$0xff] 0.0
        %852 = vst [vmem:[#allocation2 + $0xb0] sm:$0xff] 0.0
        %853 = vst [vmem:[#allocation2 + $0xb8] sm:$0x7] 0.0
        %854 = vst [vmem:[#allocation2 + $0xc0] sm:$0xff] 0.0
        %855 = vst [vmem:[#allocation2 + $0xc8] sm:$0xff] 0.0
        %856 = vst [vmem:[#allocation2 + $0xd0] sm:$0x7] 0.0
        %857 = vst [vmem:[#allocation2 + $0xd8] sm:$0xff] 0.0
        %858 = vst [vmem:[#allocation2 + $0xe0] sm:$0xff] 0.0
        %859 = vst [vmem:[#allocation2 + $0xe8] sm:$0x7] 0.0
        %860 = vst [vmem:[#allocation2 + $0xf0] sm:$0xff] 0.0
        %861 = vst [vmem:[#allocation2 + $0xf8] sm:$0xff] 0.0
        %862 = vst [vmem:[#allocation2 + $0x100] sm:$0x7] 0.0
        %863 = vst [vmem:[#allocation2 + $0x108] sm:$0xff] 0.0
        %864 = vst [vmem:[#allocation2 + $0x110] sm:$0xff] 0.0
        %865 = vst [vmem:[#allocation2 + $0x118] sm:$0x7] 0.0
        %866 = vst [vmem:[#allocation2 + $0x120] sm:$0xff] 0.0
        %867 = vst [vmem:[#allocation2 + $0x128] sm:$0xff] 0.0
        %868 = vst [vmem:[#allocation2 + $0x130] sm:$0x7] 0.0
        %869 = vst [vmem:[#allocation2 + $0x138] sm:$0xff] 0.0
        %870 = vst [vmem:[#allocation2 + $0x140] sm:$0xff] 0.0
        %871 = vst [vmem:[#allocation2 + $0x148] sm:$0x7] 0.0
        %872 = vst [vmem:[#allocation2 + $0x150] sm:$0xff] 0.0
        %873 = vst [vmem:[#allocation2 + $0x158] sm:$0xff] 0.0
        %874 = vst [vmem:[#allocation2 + $0x160] sm:$0x7] 0.0
        %875 = vst [vmem:[#allocation2 + $0x168] sm:$0xff] 0.0
        %876 = vst [vmem:[#allocation2 + $0x170] sm:$0xff] 0.0
        %877 = vst [vmem:[#allocation2 + $0x178] sm:$0x7] 0.0
        %878 = vst [vmem:[#allocation2 + $0x180] sm:$0xff] 0.0
        %879 = vst [vmem:[#allocation2 + $0x188] sm:$0xff] 0.0
        %880 = vst [vmem:[#allocation2 + $0x190] sm:$0x7] 0.0
        %881 = vst [vmem:[#allocation2 + $0x198] sm:$0xff] 0.0
        %882 = vst [vmem:[#allocation2 + $0x1a0] sm:$0xff] 0.0
        %883 = vst [vmem:[#allocation2 + $0x1a8] sm:$0x7] 0.0
        %884 = vst [vmem:[#allocation2 + $0x1b0] sm:$0xff] 0.0
        %885 = vst [vmem:[#allocation2 + $0x1b8] sm:$0xff] 0.0
        %886 = vst [vmem:[#allocation2 + $0x1c0] sm:$0x7] 0.0
        %s887 = scalar_lea.vmem [#allocation2], 192
        %888 = vst [vmem:[%s887 + $0x8] sm:$0xff] %v822
        %889 = vst [vmem:[%s887 + $0x20] sm:$0xff] %v823
        %890 = vst [vmem:[%s887 + $0x38] sm:$0xff] %v824
        %891 = vst [vmem:[%s887 + $0x50] sm:$0xff] %v825
        %892 = vst [vmem:[%s887 + $0x68] sm:$0xff] %v826
        %893 = vst [vmem:[%s887 + $0x80] sm:$0xff] %v827
        %894 = vst [vmem:[%s887 + $0x98] sm:$0xff] %v828
        %895 = vst [vmem:[%s887 + $0xb0] sm:$0xff] %v829
        %v896 = vld [vmem:[#allocation2 + $0x78] sm:$0xff]
        %v897 = vld [vmem:[#allocation2 + $0x80] sm:$0xff]
        %v898 = vld [vmem:[#allocation2 + $0x88] sm:$0x7]
        %v899 = vld [vmem:[#allocation2 + $0x90] sm:$0xff]
        %v900 = vld [vmem:[#allocation2 + $0x98] sm:$0xff]
        %v901 = vld [vmem:[#allocation2 + $0xa0] sm:$0x7]
        %v902 = vld [vmem:[#allocation2 + $0xa8] sm:$0xff]
        %v903 = vld [vmem:[#allocation2 + $0xb0] sm:$0xff]
        %v904 = vld [vmem:[#allocation2 + $0xb8] sm:$0x7]
        %v905 = vld [vmem:[#allocation2 + $0xc0] sm:$0xff]
        %v906 = vld [vmem:[#allocation2 + $0xc8] sm:$0xff]
        %v907 = vld [vmem:[#allocation2 + $0xd0] sm:$0x7]
        %v908 = vld [vmem:[#allocation2 + $0xd8] sm:$0xff]
        %v909 = vld [vmem:[#allocation2 + $0xe0] sm:$0xff]
        %v910 = vld [vmem:[#allocation2 + $0xe8] sm:$0x7]
        %v911 = vld [vmem:[#allocation2 + $0xf0] sm:$0xff]
        %v912 = vld [vmem:[#allocation2 + $0xf8] sm:$0xff]
        %v913 = vld [vmem:[#allocation2 + $0x100] sm:$0x7]
        %v914 = vld [vmem:[#allocation2 + $0x108] sm:$0xff]
        %v915 = vld [vmem:[#allocation2 + $0x110] sm:$0xff]
        %v916 = vld [vmem:[#allocation2 + $0x118] sm:$0x7]
        %v917 = vld [vmem:[#allocation2 + $0x120] sm:$0xff]
        %v918 = vld [vmem:[#allocation2 + $0x128] sm:$0xff]
        %v919 = vld [vmem:[#allocation2 + $0x130] sm:$0x7]
        %v920 = vld [vmem:[#allocation2 + $0x138] sm:$0xff]
        %v921 = vld [vmem:[#allocation2 + $0x140] sm:$0xff]
        %v922 = vld [vmem:[#allocation2 + $0x148] sm:$0x7]
        %v923 = vld [vmem:[#allocation2 + $0x150] sm:$0xff]
        %v924 = vld [vmem:[#allocation2 + $0x158] sm:$0xff]
        %v925 = vld [vmem:[#allocation2 + $0x160] sm:$0x7]
        %v926 = vld [vmem:[#allocation2 + $0x168] sm:$0xff]
        %v927 = vld [vmem:[#allocation2 + $0x170] sm:$0xff]
        %v928 = vld [vmem:[#allocation2 + $0x178] sm:$0x7]
        %v929 = vld [vmem:[#allocation2 + $0x180] sm:$0xff]
        %v930 = vld [vmem:[#allocation2 + $0x188] sm:$0xff]
        %v931 = vld [vmem:[#allocation2 + $0x190] sm:$0x7]
        %v932 = vld [vmem:[#allocation2 + $0x198] sm:$0xff]
        %v933 = vld [vmem:[#allocation2 + $0x1a0] sm:$0xff]
        %v934 = vld [vmem:[#allocation2 + $0x1a8] sm:$0x7]
        %v935 = vld [vmem:[#allocation2 + $0x1b0] sm:$0xff]
        %v936 = vld [vmem:[#allocation2 + $0x1b8] sm:$0xff]
        %v937 = vld [vmem:[#allocation2 + $0x1c0] sm:$0x7]
        %v938 = vld [vmem:[%s5] sm:$0x1]
        %v940 = vlaneseq
        %v941 = vshrl.u32 %v940, 7
        %v942 = vsub.s32 0, %v941
        %v943 = vrot.slane %v938, %v942
        %v945 = vmul.f32 %v896, %v943
        %v946 = vmul.f32 %v897, %v943
        %v947 = vmul.f32 %v899, %v943
        %v948 = vmul.f32 %v900, %v943
        %v949 = vmul.f32 %v902, %v943
        %v950 = vmul.f32 %v903, %v943
        %v951 = vmul.f32 %v905, %v943
        %v952 = vmul.f32 %v906, %v943
        %v953 = vmul.f32 %v908, %v943
        %v954 = vmul.f32 %v909, %v943
        %v955 = vmul.f32 %v911, %v943
        %v956 = vmul.f32 %v912, %v943
        %v957 = vmul.f32 %v914, %v943
        %v958 = vmul.f32 %v915, %v943
        %v959 = vmul.f32 %v917, %v943
        %v960 = vmul.f32 %v918, %v943
        %v961 = vadd.f32 %v945, 0.0
        %v962 = vadd.f32 %v946, 0.0
        %v963 = vadd.f32 %v947, 0.0
        %v964 = vadd.f32 %v948, 0.0
        %v965 = vadd.f32 %v949, 0.0
        %v966 = vadd.f32 %v950, 0.0
        %v967 = vadd.f32 %v951, 0.0
        %v968 = vadd.f32 %v952, 0.0
        %v969 = vadd.f32 %v953, 0.0
        %v970 = vadd.f32 %v954, 0.0
        %v971 = vadd.f32 %v955, 0.0
        %v972 = vadd.f32 %v956, 0.0
        %v973 = vadd.f32 %v957, 0.0
        %v974 = vadd.f32 %v958, 0.0
        %v975 = vadd.f32 %v959, 0.0
        %v976 = vadd.f32 %v960, 0.0
        %s977 = scalar_lea.vmem %s5, 7
        %v978 = vld [vmem:[%s977] sm:$0x1]
        %v980 = vlaneseq
        %v981 = vshrl.u32 %v980, 7
        %v982 = vsub.s32 0, %v981
        %v983 = vrot.slane %v978, %v982
        %v985 = vmul.f32 %v899, %v983
        %v986 = vmul.f32 %v900, %v983
        %v987 = vmul.f32 %v902, %v983
        %v988 = vmul.f32 %v903, %v983
        %v989 = vmul.f32 %v905, %v983
        %v990 = vmul.f32 %v906, %v983
        %v991 = vmul.f32 %v908, %v983
        %v992 = vmul.f32 %v909, %v983
        %v993 = vmul.f32 %v911, %v983
        %v994 = vmul.f32 %v912, %v983
        %v995 = vmul.f32 %v914, %v983
        %v996 = vmul.f32 %v915, %v983
        %v997 = vmul.f32 %v917, %v983
        %v998 = vmul.f32 %v918, %v983
        %v999 = vmul.f32 %v920, %v983
        %v1000 = vmul.f32 %v921, %v983
        %v1001 = vadd.f32 %v961, %v985
        %v1002 = vadd.f32 %v962, %v986
        %v1003 = vadd.f32 %v963, %v987
        %v1004 = vadd.f32 %v964, %v988
        %v1005 = vadd.f32 %v965, %v989
        %v1006 = vadd.f32 %v966, %v990
        %v1007 = vadd.f32 %v967, %v991
        %v1008 = vadd.f32 %v968, %v992
        %v1009 = vadd.f32 %v969, %v993
        %v1010 = vadd.f32 %v970, %v994
        %v1011 = vadd.f32 %v971, %v995
        %v1012 = vadd.f32 %v972, %v996
        %v1013 = vadd.f32 %v973, %v997
        %v1014 = vadd.f32 %v974, %v998
        %v1015 = vadd.f32 %v975, %v999
        %v1016 = vadd.f32 %v976, %v1000
        %s1017 = scalar_lea.vmem %s5, 14
        %v1018 = vld [vmem:[%s1017] sm:$0x1]
        %v1020 = vlaneseq
        %v1021 = vshrl.u32 %v1020, 7
        %v1022 = vsub.s32 0, %v1021
        %v1023 = vrot.slane %v1018, %v1022
        %v1025 = vmul.f32 %v902, %v1023
        %v1026 = vmul.f32 %v903, %v1023
        %v1027 = vmul.f32 %v905, %v1023
        %v1028 = vmul.f32 %v906, %v1023
        %v1029 = vmul.f32 %v908, %v1023
        %v1030 = vmul.f32 %v909, %v1023
        %v1031 = vmul.f32 %v911, %v1023
        %v1032 = vmul.f32 %v912, %v1023
        %v1033 = vmul.f32 %v914, %v1023
        %v1034 = vmul.f32 %v915, %v1023
        %v1035 = vmul.f32 %v917, %v1023
        %v1036 = vmul.f32 %v918, %v1023
        %v1037 = vmul.f32 %v920, %v1023
        %v1038 = vmul.f32 %v921, %v1023
        %v1039 = vmul.f32 %v923, %v1023
        %v1040 = vmul.f32 %v924, %v1023
        %v1041 = vadd.f32 %v1001, %v1025
        %v1042 = vadd.f32 %v1002, %v1026
        %v1043 = vadd.f32 %v1003, %v1027
        %v1044 = vadd.f32 %v1004, %v1028
        %v1045 = vadd.f32 %v1005, %v1029
        %v1046 = vadd.f32 %v1006, %v1030
        %v1047 = vadd.f32 %v1007, %v1031
        %v1048 = vadd.f32 %v1008, %v1032
        %v1049 = vadd.f32 %v1009, %v1033
        %v1050 = vadd.f32 %v1010, %v1034
        %v1051 = vadd.f32 %v1011, %v1035
        %v1052 = vadd.f32 %v1012, %v1036
        %v1053 = vadd.f32 %v1013, %v1037
        %v1054 = vadd.f32 %v1014, %v1038
        %v1055 = vadd.f32 %v1015, %v1039
        %v1056 = vadd.f32 %v1016, %v1040
        %s1057 = scalar_lea.vmem %s5, 21
        %v1058 = vld [vmem:[%s1057] sm:$0x1]
        %v1060 = vlaneseq
        %v1061 = vshrl.u32 %v1060, 7
        %v1062 = vsub.s32 0, %v1061
        %v1063 = vrot.slane %v1058, %v1062
        %v1065 = vmul.f32 %v905, %v1063
        %v1066 = vmul.f32 %v906, %v1063
        %v1067 = vmul.f32 %v908, %v1063
        %v1068 = vmul.f32 %v909, %v1063
        %v1069 = vmul.f32 %v911, %v1063
        %v1070 = vmul.f32 %v912, %v1063
        %v1071 = vmul.f32 %v914, %v1063
        %v1072 = vmul.f32 %v915, %v1063
        %v1073 = vmul.f32 %v917, %v1063
        %v1074 = vmul.f32 %v918, %v1063
        %v1075 = vmul.f32 %v920, %v1063
        %v1076 = vmul.f32 %v921, %v1063
        %v1077 = vmul.f32 %v923, %v1063
        %v1078 = vmul.f32 %v924, %v1063
        %v1079 = vmul.f32 %v926, %v1063
        %v1080 = vmul.f32 %v927, %v1063
        %v1081 = vadd.f32 %v1041, %v1065
        %v1082 = vadd.f32 %v1042, %v1066
        %v1083 = vadd.f32 %v1043, %v1067
        %v1084 = vadd.f32 %v1044, %v1068
        %v1085 = vadd.f32 %v1045, %v1069
        %v1086 = vadd.f32 %v1046, %v1070
        %v1087 = vadd.f32 %v1047, %v1071
        %v1088 = vadd.f32 %v1048, %v1072
        %v1089 = vadd.f32 %v1049, %v1073
        %v1090 = vadd.f32 %v1050, %v1074
        %v1091 = vadd.f32 %v1051, %v1075
        %v1092 = vadd.f32 %v1052, %v1076
        %v1093 = vadd.f32 %v1053, %v1077
        %v1094 = vadd.f32 %v1054, %v1078
        %v1095 = vadd.f32 %v1055, %v1079
        %v1096 = vadd.f32 %v1056, %v1080
        %s1097 = scalar_lea.vmem %s5, 28
        %v1098 = vld [vmem:[%s1097] sm:$0x1]
        %v1100 = vlaneseq
        %v1101 = vshrl.u32 %v1100, 7
        %v1102 = vsub.s32 0, %v1101
        %v1103 = vrot.slane %v1098, %v1102
        %v1105 = vmul.f32 %v908, %v1103
        %v1106 = vmul.f32 %v909, %v1103
        %v1107 = vmul.f32 %v911, %v1103
        %v1108 = vmul.f32 %v912, %v1103
        %v1109 = vmul.f32 %v914, %v1103
        %v1110 = vmul.f32 %v915, %v1103
        %v1111 = vmul.f32 %v917, %v1103
        %v1112 = vmul.f32 %v918, %v1103
        %v1113 = vmul.f32 %v920, %v1103
        %v1114 = vmul.f32 %v921, %v1103
        %v1115 = vmul.f32 %v923, %v1103
        %v1116 = vmul.f32 %v924, %v1103
        %v1117 = vmul.f32 %v926, %v1103
        %v1118 = vmul.f32 %v927, %v1103
        %v1119 = vmul.f32 %v929, %v1103
        %v1120 = vmul.f32 %v930, %v1103
        %v1121 = vadd.f32 %v1081, %v1105
        %v1122 = vadd.f32 %v1082, %v1106
        %v1123 = vadd.f32 %v1083, %v1107
        %v1124 = vadd.f32 %v1084, %v1108
        %v1125 = vadd.f32 %v1085, %v1109
        %v1126 = vadd.f32 %v1086, %v1110
        %v1127 = vadd.f32 %v1087, %v1111
        %v1128 = vadd.f32 %v1088, %v1112
        %v1129 = vadd.f32 %v1089, %v1113
        %v1130 = vadd.f32 %v1090, %v1114
        %v1131 = vadd.f32 %v1091, %v1115
        %v1132 = vadd.f32 %v1092, %v1116
        %v1133 = vadd.f32 %v1093, %v1117
        %v1134 = vadd.f32 %v1094, %v1118
        %v1135 = vadd.f32 %v1095, %v1119
        %v1136 = vadd.f32 %v1096, %v1120
        %s1137 = scalar_lea.vmem %s5, 35
        %v1138 = vld [vmem:[%s1137] sm:$0x1]
        %v1140 = vlaneseq
        %v1141 = vshrl.u32 %v1140, 7
        %v1142 = vsub.s32 0, %v1141
        %v1143 = vrot.slane %v1138, %v1142
        %v1145 = vmul.f32 %v911, %v1143
        %v1146 = vmul.f32 %v912, %v1143
        %v1147 = vmul.f32 %v914, %v1143
        %v1148 = vmul.f32 %v915, %v1143
        %v1149 = vmul.f32 %v917, %v1143
        %v1150 = vmul.f32 %v918, %v1143
        %v1151 = vmul.f32 %v920, %v1143
        %v1152 = vmul.f32 %v921, %v1143
        %v1153 = vmul.f32 %v923, %v1143
        %v1154 = vmul.f32 %v924, %v1143
        %v1155 = vmul.f32 %v926, %v1143
        %v1156 = vmul.f32 %v927, %v1143
        %v1157 = vmul.f32 %v929, %v1143
        %v1158 = vmul.f32 %v930, %v1143
        %v1159 = vmul.f32 %v932, %v1143
        %v1160 = vmul.f32 %v933, %v1143
        %v1161 = vadd.f32 %v1121, %v1145
        %v1162 = vadd.f32 %v1122, %v1146
        %v1163 = vadd.f32 %v1123, %v1147
        %v1164 = vadd.f32 %v1124, %v1148
        %v1165 = vadd.f32 %v1125, %v1149
        %v1166 = vadd.f32 %v1126, %v1150
        %v1167 = vadd.f32 %v1127, %v1151
        %v1168 = vadd.f32 %v1128, %v1152
        %v1169 = vadd.f32 %v1129, %v1153
        %v1170 = vadd.f32 %v1130, %v1154
        %v1171 = vadd.f32 %v1131, %v1155
        %v1172 = vadd.f32 %v1132, %v1156
        %v1173 = vadd.f32 %v1133, %v1157
        %v1174 = vadd.f32 %v1134, %v1158
        %v1175 = vadd.f32 %v1135, %v1159
        %v1176 = vadd.f32 %v1136, %v1160
        %s1177 = scalar_lea.vmem %s5, 42
        %v1178 = vld [vmem:[%s1177] sm:$0x1]
        %v1180 = vlaneseq
        %v1181 = vshrl.u32 %v1180, 7
        %v1182 = vsub.s32 0, %v1181
        %v1183 = vrot.slane %v1178, %v1182
        %v1185 = vmul.f32 %v914, %v1183
        %v1186 = vmul.f32 %v915, %v1183
        %v1187 = vmul.f32 %v917, %v1183
        %v1188 = vmul.f32 %v918, %v1183
        %v1189 = vmul.f32 %v920, %v1183
        %v1190 = vmul.f32 %v921, %v1183
        %v1191 = vmul.f32 %v923, %v1183
        %v1192 = vmul.f32 %v924, %v1183
        %v1193 = vmul.f32 %v926, %v1183
        %v1194 = vmul.f32 %v927, %v1183
        %v1195 = vmul.f32 %v929, %v1183
        %v1196 = vmul.f32 %v930, %v1183
        %v1197 = vmul.f32 %v932, %v1183
        %v1198 = vmul.f32 %v933, %v1183
        %v1199 = vmul.f32 %v935, %v1183
        %v1200 = vmul.f32 %v936, %v1183
        %v1201 = vadd.f32 %v1161, %v1185
        %v1202 = vadd.f32 %v1162, %v1186
        %v1203 = vadd.f32 %v1163, %v1187
        %v1204 = vadd.f32 %v1164, %v1188
        %v1205 = vadd.f32 %v1165, %v1189
        %v1206 = vadd.f32 %v1166, %v1190
        %v1207 = vadd.f32 %v1167, %v1191
        %v1208 = vadd.f32 %v1168, %v1192
        %v1209 = vadd.f32 %v1169, %v1193
        %v1210 = vadd.f32 %v1170, %v1194
        %v1211 = vadd.f32 %v1171, %v1195
        %v1212 = vadd.f32 %v1172, %v1196
        %v1213 = vadd.f32 %v1173, %v1197
        %v1214 = vadd.f32 %v1174, %v1198
        %v1215 = vadd.f32 %v1175, %v1199
        %v1216 = vadd.f32 %v1176, %v1200
        %s1217 = scalar_lea.vmem %s5, 1
        %v1218 = vld [vmem:[%s1217] sm:$0x1]
        %v1220 = vlaneseq
        %v1221 = vshrl.u32 %v1220, 7
        %v1222 = vsub.s32 0, %v1221
        %v1223 = vrot.slane %v1218, %v1222
        %v1225 = vmul.f32 %v896, %v1223
        %v1226 = vmul.f32 %v897, %v1223
        %v1227 = vmul.f32 %v899, %v1223
        %v1228 = vmul.f32 %v900, %v1223
        %v1229 = vmul.f32 %v902, %v1223
        %v1230 = vmul.f32 %v903, %v1223
        %v1231 = vmul.f32 %v905, %v1223
        %v1232 = vmul.f32 %v906, %v1223
        %v1233 = vmul.f32 %v908, %v1223
        %v1234 = vmul.f32 %v909, %v1223
        %v1235 = vmul.f32 %v911, %v1223
        %v1236 = vmul.f32 %v912, %v1223
        %v1237 = vmul.f32 %v914, %v1223
        %v1238 = vmul.f32 %v915, %v1223
        %v1239 = vmul.f32 %v917, %v1223
        %v1240 = vmul.f32 %v918, %v1223
        %vm1257 = vcmask 1046528
        %v1258 = vrot.slane %v1225, 1
        %v1259 = vrot.slane %v1226, 1
        %v1260 = vsel %vm1257, %v1258, %v1259
        %v1261 = vrot.slane %v1227, 1
        %v1262 = vrot.slane %v1228, 1
        %v1263 = vsel %vm1257, %v1261, %v1262
        %v1264 = vrot.slane %v1229, 1
        %v1265 = vrot.slane %v1230, 1
        %v1266 = vsel %vm1257, %v1264, %v1265
        %v1267 = vrot.slane %v1231, 1
        %v1268 = vrot.slane %v1232, 1
        %v1269 = vsel %vm1257, %v1267, %v1268
        %v1270 = vrot.slane %v1233, 1
        %v1271 = vrot.slane %v1234, 1
        %v1272 = vsel %vm1257, %v1270, %v1271
        %v1273 = vrot.slane %v1235, 1
        %v1274 = vrot.slane %v1236, 1
        %v1275 = vsel %vm1257, %v1273, %v1274
        %v1276 = vrot.slane %v1237, 1
        %v1277 = vrot.slane %v1238, 1
        %v1278 = vsel %vm1257, %v1276, %v1277
        %v1279 = vrot.slane %v1239, 1
        %v1280 = vrot.slane %v1240, 1
        %v1281 = vsel %vm1257, %v1279, %v1280
        %v1298 = vadd.f32 %v1201, %v1260
        %v1299 = vadd.f32 %v1202, %v1259
        %v1300 = vadd.f32 %v1203, %v1263
        %v1301 = vadd.f32 %v1204, %v1262
        %v1302 = vadd.f32 %v1205, %v1266
        %v1303 = vadd.f32 %v1206, %v1265
        %v1304 = vadd.f32 %v1207, %v1269
        %v1305 = vadd.f32 %v1208, %v1268
        %v1306 = vadd.f32 %v1209, %v1272
        %v1307 = vadd.f32 %v1210, %v1271
        %v1308 = vadd.f32 %v1211, %v1275
        %v1309 = vadd.f32 %v1212, %v1274
        %v1310 = vadd.f32 %v1213, %v1278
        %v1311 = vadd.f32 %v1214, %v1277
        %v1312 = vadd.f32 %v1215, %v1281
        %v1313 = vadd.f32 %v1216, %v1280
        %s1314 = scalar_lea.vmem %s5, 8
        %v1315 = vld [vmem:[%s1314] sm:$0x1]
        %v1317 = vlaneseq
        %v1318 = vshrl.u32 %v1317, 7
        %v1319 = vsub.s32 0, %v1318
        %v1320 = vrot.slane %v1315, %v1319
        %v1322 = vmul.f32 %v899, %v1320
        %v1323 = vmul.f32 %v900, %v1320
        %v1324 = vmul.f32 %v902, %v1320
        %v1325 = vmul.f32 %v903, %v1320
        %v1326 = vmul.f32 %v905, %v1320
        %v1327 = vmul.f32 %v906, %v1320
        %v1328 = vmul.f32 %v908, %v1320
        %v1329 = vmul.f32 %v909, %v1320
        %v1330 = vmul.f32 %v911, %v1320
        %v1331 = vmul.f32 %v912, %v1320
        %v1332 = vmul.f32 %v914, %v1320
        %v1333 = vmul.f32 %v915, %v1320
        %v1334 = vmul.f32 %v917, %v1320
        %v1335 = vmul.f32 %v918, %v1320
        %v1336 = vmul.f32 %v920, %v1320
        %v1337 = vmul.f32 %v921, %v1320
        %v1354 = vrot.slane %v1322, 1
        %v1355 = vrot.slane %v1323, 1
        %v1356 = vsel %vm1257, %v1354, %v1355
        %v1357 = vrot.slane %v1324, 1
        %v1358 = vrot.slane %v1325, 1
        %v1359 = vsel %vm1257, %v1357, %v1358
        %v1360 = vrot.slane %v1326, 1
        %v1361 = vrot.slane %v1327, 1
        %v1362 = vsel %vm1257, %v1360, %v1361
        %v1363 = vrot.slane %v1328, 1
        %v1364 = vrot.slane %v1329, 1
        %v1365 = vsel %vm1257, %v1363, %v1364
        %v1366 = vrot.slane %v1330, 1
        %v1367 = vrot.slane %v1331, 1
        %v1368 = vsel %vm1257, %v1366, %v1367
        %v1369 = vrot.slane %v1332, 1
        %v1370 = vrot.slane %v1333, 1
        %v1371 = vsel %vm1257, %v1369, %v1370
        %v1372 = vrot.slane %v1334, 1
        %v1373 = vrot.slane %v1335, 1
        %v1374 = vsel %vm1257, %v1372, %v1373
        %v1375 = vrot.slane %v1336, 1
        %v1376 = vrot.slane %v1337, 1
        %v1377 = vsel %vm1257, %v1375, %v1376
        %v1394 = vadd.f32 %v1298, %v1356
        %v1395 = vadd.f32 %v1299, %v1355
        %v1396 = vadd.f32 %v1300, %v1359
        %v1397 = vadd.f32 %v1301, %v1358
        %v1398 = vadd.f32 %v1302, %v1362
        %v1399 = vadd.f32 %v1303, %v1361
        %v1400 = vadd.f32 %v1304, %v1365
        %v1401 = vadd.f32 %v1305, %v1364
        %v1402 = vadd.f32 %v1306, %v1368
        %v1403 = vadd.f32 %v1307, %v1367
        %v1404 = vadd.f32 %v1308, %v1371
        %v1405 = vadd.f32 %v1309, %v1370
        %v1406 = vadd.f32 %v1310, %v1374
        %v1407 = vadd.f32 %v1311, %v1373
        %v1408 = vadd.f32 %v1312, %v1377
        %v1409 = vadd.f32 %v1313, %v1376
        %s1410 = scalar_lea.vmem %s5, 15
        %v1411 = vld [vmem:[%s1410] sm:$0x1]
        %v1413 = vlaneseq
        %v1414 = vshrl.u32 %v1413, 7
        %v1415 = vsub.s32 0, %v1414
        %v1416 = vrot.slane %v1411, %v1415
        %v1418 = vmul.f32 %v902, %v1416
        %v1419 = vmul.f32 %v903, %v1416
        %v1420 = vmul.f32 %v905, %v1416
        %v1421 = vmul.f32 %v906, %v1416
        %v1422 = vmul.f32 %v908, %v1416
        %v1423 = vmul.f32 %v909, %v1416
        %v1424 = vmul.f32 %v911, %v1416
        %v1425 = vmul.f32 %v912, %v1416
        %v1426 = vmul.f32 %v914, %v1416
        %v1427 = vmul.f32 %v915, %v1416
        %v1428 = vmul.f32 %v917, %v1416
        %v1429 = vmul.f32 %v918, %v1416
        %v1430 = vmul.f32 %v920, %v1416
        %v1431 = vmul.f32 %v921, %v1416
        %v1432 = vmul.f32 %v923, %v1416
        %v1433 = vmul.f32 %v924, %v1416
        %v1450 = vrot.slane %v1418, 1
        %v1451 = vrot.slane %v1419, 1
        %v1452 = vsel %vm1257, %v1450, %v1451
        %v1453 = vrot.slane %v1420, 1
        %v1454 = vrot.slane %v1421, 1
        %v1455 = vsel %vm1257, %v1453, %v1454
        %v1456 = vrot.slane %v1422, 1
        %v1457 = vrot.slane %v1423, 1
        %v1458 = vsel %vm1257, %v1456, %v1457
        %v1459 = vrot.slane %v1424, 1
        %v1460 = vrot.slane %v1425, 1
        %v1461 = vsel %vm1257, %v1459, %v1460
        %v1462 = vrot.slane %v1426, 1
        %v1463 = vrot.slane %v1427, 1
        %v1464 = vsel %vm1257, %v1462, %v1463
        %v1465 = vrot.slane %v1428, 1
        %v1466 = vrot.slane %v1429, 1
        %v1467 = vsel %vm1257, %v1465, %v1466
        %v1468 = vrot.slane %v1430, 1
        %v1469 = vrot.slane %v1431, 1
        %v1470 = vsel %vm1257, %v1468, %v1469
        %v1471 = vrot.slane %v1432, 1
        %v1472 = vrot.slane %v1433, 1
        %v1473 = vsel %vm1257, %v1471, %v1472
        %v1490 = vadd.f32 %v1394, %v1452
        %v1491 = vadd.f32 %v1395, %v1451
        %v1492 = vadd.f32 %v1396, %v1455
        %v1493 = vadd.f32 %v1397, %v1454
        %v1494 = vadd.f32 %v1398, %v1458
        %v1495 = vadd.f32 %v1399, %v1457
        %v1496 = vadd.f32 %v1400, %v1461
        %v1497 = vadd.f32 %v1401, %v1460
        %v1498 = vadd.f32 %v1402, %v1464
        %v1499 = vadd.f32 %v1403, %v1463
        %v1500 = vadd.f32 %v1404, %v1467
        %v1501 = vadd.f32 %v1405, %v1466
        %v1502 = vadd.f32 %v1406, %v1470
        %v1503 = vadd.f32 %v1407, %v1469
        %v1504 = vadd.f32 %v1408, %v1473
        %v1505 = vadd.f32 %v1409, %v1472
        %s1506 = scalar_lea.vmem %s5, 22
        %v1507 = vld [vmem:[%s1506] sm:$0x1]
        %v1509 = vlaneseq
        %v1510 = vshrl.u32 %v1509, 7
        %v1511 = vsub.s32 0, %v1510
        %v1512 = vrot.slane %v1507, %v1511
        %v1514 = vmul.f32 %v905, %v1512
        %v1515 = vmul.f32 %v906, %v1512
        %v1516 = vmul.f32 %v908, %v1512
        %v1517 = vmul.f32 %v909, %v1512
        %v1518 = vmul.f32 %v911, %v1512
        %v1519 = vmul.f32 %v912, %v1512
        %v1520 = vmul.f32 %v914, %v1512
        %v1521 = vmul.f32 %v915, %v1512
        %v1522 = vmul.f32 %v917, %v1512
        %v1523 = vmul.f32 %v918, %v1512
        %v1524 = vmul.f32 %v920, %v1512
        %v1525 = vmul.f32 %v921, %v1512
        %v1526 = vmul.f32 %v923, %v1512
        %v1527 = vmul.f32 %v924, %v1512
        %v1528 = vmul.f32 %v926, %v1512
        %v1529 = vmul.f32 %v927, %v1512
        %v1546 = vrot.slane %v1514, 1
        %v1547 = vrot.slane %v1515, 1
        %v1548 = vsel %vm1257, %v1546, %v1547
        %v1549 = vrot.slane %v1516, 1
        %v1550 = vrot.slane %v1517, 1
        %v1551 = vsel %vm1257, %v1549, %v1550
        %v1552 = vrot.slane %v1518, 1
        %v1553 = vrot.slane %v1519, 1
        %v1554 = vsel %vm1257, %v1552, %v1553
        %v1555 = vrot.slane %v1520, 1
        %v1556 = vrot.slane %v1521, 1
        %v1557 = vsel %vm1257, %v1555, %v1556
        %v1558 = vrot.slane %v1522, 1
        %v1559 = vrot.slane %v1523, 1
        %v1560 = vsel %vm1257, %v1558, %v1559
        %v1561 = vrot.slane %v1524, 1
        %v1562 = vrot.slane %v1525, 1
        %v1563 = vsel %vm1257, %v1561, %v1562
        %v1564 = vrot.slane %v1526, 1
        %v1565 = vrot.slane %v1527, 1
        %v1566 = vsel %vm1257, %v1564, %v1565
        %v1567 = vrot.slane %v1528, 1
        %v1568 = vrot.slane %v1529, 1
        %v1569 = vsel %vm1257, %v1567, %v1568
        %v1586 = vadd.f32 %v1490, %v1548
        %v1587 = vadd.f32 %v1491, %v1547
        %v1588 = vadd.f32 %v1492, %v1551
        %v1589 = vadd.f32 %v1493, %v1550
        %v1590 = vadd.f32 %v1494, %v1554
        %v1591 = vadd.f32 %v1495, %v1553
        %v1592 = vadd.f32 %v1496, %v1557
        %v1593 = vadd.f32 %v1497, %v1556
        %v1594 = vadd.f32 %v1498, %v1560
        %v1595 = vadd.f32 %v1499, %v1559
        %v1596 = vadd.f32 %v1500, %v1563
        %v1597 = vadd.f32 %v1501, %v1562
        %v1598 = vadd.f32 %v1502, %v1566
        %v1599 = vadd.f32 %v1503, %v1565
        %v1600 = vadd.f32 %v1504, %v1569
        %v1601 = vadd.f32 %v1505, %v1568
        %s1602 = scalar_lea.vmem %s5, 29
        %v1603 = vld [vmem:[%s1602] sm:$0x1]
        %v1605 = vlaneseq
        %v1606 = vshrl.u32 %v1605, 7
        %v1607 = vsub.s32 0, %v1606
        %v1608 = vrot.slane %v1603, %v1607
        %v1610 = vmul.f32 %v908, %v1608
        %v1611 = vmul.f32 %v909, %v1608
        %v1612 = vmul.f32 %v911, %v1608
        %v1613 = vmul.f32 %v912, %v1608
        %v1614 = vmul.f32 %v914, %v1608
        %v1615 = vmul.f32 %v915, %v1608
        %v1616 = vmul.f32 %v917, %v1608
        %v1617 = vmul.f32 %v918, %v1608
        %v1618 = vmul.f32 %v920, %v1608
        %v1619 = vmul.f32 %v921, %v1608
        %v1620 = vmul.f32 %v923, %v1608
        %v1621 = vmul.f32 %v924, %v1608
        %v1622 = vmul.f32 %v926, %v1608
        %v1623 = vmul.f32 %v927, %v1608
        %v1624 = vmul.f32 %v929, %v1608
        %v1625 = vmul.f32 %v930, %v1608
        %v1642 = vrot.slane %v1610, 1
        %v1643 = vrot.slane %v1611, 1
        %v1644 = vsel %vm1257, %v1642, %v1643
        %v1645 = vrot.slane %v1612, 1
        %v1646 = vrot.slane %v1613, 1
        %v1647 = vsel %vm1257, %v1645, %v1646
        %v1648 = vrot.slane %v1614, 1
        %v1649 = vrot.slane %v1615, 1
        %v1650 = vsel %vm1257, %v1648, %v1649
        %v1651 = vrot.slane %v1616, 1
        %v1652 = vrot.slane %v1617, 1
        %v1653 = vsel %vm1257, %v1651, %v1652
        %v1654 = vrot.slane %v1618, 1
        %v1655 = vrot.slane %v1619, 1
        %v1656 = vsel %vm1257, %v1654, %v1655
        %v1657 = vrot.slane %v1620, 1
        %v1658 = vrot.slane %v1621, 1
        %v1659 = vsel %vm1257, %v1657, %v1658
        %v1660 = vrot.slane %v1622, 1
        %v1661 = vrot.slane %v1623, 1
        %v1662 = vsel %vm1257, %v1660, %v1661
        %v1663 = vrot.slane %v1624, 1
        %v1664 = vrot.slane %v1625, 1
        %v1665 = vsel %vm1257, %v1663, %v1664
        %v1682 = vadd.f32 %v1586, %v1644
        %v1683 = vadd.f32 %v1587, %v1643
        %v1684 = vadd.f32 %v1588, %v1647
        %v1685 = vadd.f32 %v1589, %v1646
        %v1686 = vadd.f32 %v1590, %v1650
        %v1687 = vadd.f32 %v1591, %v1649
        %v1688 = vadd.f32 %v1592, %v1653
        %v1689 = vadd.f32 %v1593, %v1652
        %v1690 = vadd.f32 %v1594, %v1656
        %v1691 = vadd.f32 %v1595, %v1655
        %v1692 = vadd.f32 %v1596, %v1659
        %v1693 = vadd.f32 %v1597, %v1658
        %v1694 = vadd.f32 %v1598, %v1662
        %v1695 = vadd.f32 %v1599, %v1661
        %v1696 = vadd.f32 %v1600, %v1665
        %v1697 = vadd.f32 %v1601, %v1664
        %s1698 = scalar_lea.vmem %s5, 36
        %v1699 = vld [vmem:[%s1698] sm:$0x1]
        %v1701 = vlaneseq
        %v1702 = vshrl.u32 %v1701, 7
        %v1703 = vsub.s32 0, %v1702
        %v1704 = vrot.slane %v1699, %v1703
        %v1706 = vmul.f32 %v911, %v1704
        %v1707 = vmul.f32 %v912, %v1704
        %v1708 = vmul.f32 %v914, %v1704
        %v1709 = vmul.f32 %v915, %v1704
        %v1710 = vmul.f32 %v917, %v1704
        %v1711 = vmul.f32 %v918, %v1704
        %v1712 = vmul.f32 %v920, %v1704
        %v1713 = vmul.f32 %v921, %v1704
        %v1714 = vmul.f32 %v923, %v1704
        %v1715 = vmul.f32 %v924, %v1704
        %v1716 = vmul.f32 %v926, %v1704
        %v1717 = vmul.f32 %v927, %v1704
        %v1718 = vmul.f32 %v929, %v1704
        %v1719 = vmul.f32 %v930, %v1704
        %v1720 = vmul.f32 %v932, %v1704
        %v1721 = vmul.f32 %v933, %v1704
        %v1738 = vrot.slane %v1706, 1
        %v1739 = vrot.slane %v1707, 1
        %v1740 = vsel %vm1257, %v1738, %v1739
        %v1741 = vrot.slane %v1708, 1
        %v1742 = vrot.slane %v1709, 1
        %v1743 = vsel %vm1257, %v1741, %v1742
        %v1744 = vrot.slane %v1710, 1
        %v1745 = vrot.slane %v1711, 1
        %v1746 = vsel %vm1257, %v1744, %v1745
        %v1747 = vrot.slane %v1712, 1
        %v1748 = vrot.slane %v1713, 1
        %v1749 = vsel %vm1257, %v1747, %v1748
        %v1750 = vrot.slane %v1714, 1
        %v1751 = vrot.slane %v1715, 1
        %v1752 = vsel %vm1257, %v1750, %v1751
        %v1753 = vrot.slane %v1716, 1
        %v1754 = vrot.slane %v1717, 1
        %v1755 = vsel %vm1257, %v1753, %v1754
        %v1756 = vrot.slane %v1718, 1
        %v1757 = vrot.slane %v1719, 1
        %v1758 = vsel %vm1257, %v1756, %v1757
        %v1759 = vrot.slane %v1720, 1
        %v1760 = vrot.slane %v1721, 1
        %v1761 = vsel %vm1257, %v1759, %v1760
        %v1778 = vadd.f32 %v1682, %v1740
        %v1779 = vadd.f32 %v1683, %v1739
        %v1780 = vadd.f32 %v1684, %v1743
        %v1781 = vadd.f32 %v1685, %v1742
        %v1782 = vadd.f32 %v1686, %v1746
        %v1783 = vadd.f32 %v1687, %v1745
        %v1784 = vadd.f32 %v1688, %v1749
        %v1785 = vadd.f32 %v1689, %v1748
        %v1786 = vadd.f32 %v1690, %v1752
        %v1787 = vadd.f32 %v1691, %v1751
        %v1788 = vadd.f32 %v1692, %v1755
        %v1789 = vadd.f32 %v1693, %v1754
        %v1790 = vadd.f32 %v1694, %v1758
        %v1791 = vadd.f32 %v1695, %v1757
        %v1792 = vadd.f32 %v1696, %v1761
        %v1793 = vadd.f32 %v1697, %v1760
        %s1794 = scalar_lea.vmem %s5, 43
        %v1795 = vld [vmem:[%s1794] sm:$0x1]
        %v1797 = vlaneseq
        %v1798 = vshrl.u32 %v1797, 7
        %v1799 = vsub.s32 0, %v1798
        %v1800 = vrot.slane %v1795, %v1799
        %v1802 = vmul.f32 %v914, %v1800
        %v1803 = vmul.f32 %v915, %v1800
        %v1804 = vmul.f32 %v917, %v1800
        %v1805 = vmul.f32 %v918, %v1800
        %v1806 = vmul.f32 %v920, %v1800
        %v1807 = vmul.f32 %v921, %v1800
        %v1808 = vmul.f32 %v923, %v1800
        %v1809 = vmul.f32 %v924, %v1800
        %v1810 = vmul.f32 %v926, %v1800
        %v1811 = vmul.f32 %v927, %v1800
        %v1812 = vmul.f32 %v929, %v1800
        %v1813 = vmul.f32 %v930, %v1800
        %v1814 = vmul.f32 %v932, %v1800
        %v1815 = vmul.f32 %v933, %v1800
        %v1816 = vmul.f32 %v935, %v1800
        %v1817 = vmul.f32 %v936, %v1800
        %v1834 = vrot.slane %v1802, 1
        %v1835 = vrot.slane %v1803, 1
        %v1836 = vsel %vm1257, %v1834, %v1835
        %v1837 = vrot.slane %v1804, 1
        %v1838 = vrot.slane %v1805, 1
        %v1839 = vsel %vm1257, %v1837, %v1838
        %v1840 = vrot.slane %v1806, 1
        %v1841 = vrot.slane %v1807, 1
        %v1842 = vsel %vm1257, %v1840, %v1841
        %v1843 = vrot.slane %v1808, 1
        %v1844 = vrot.slane %v1809, 1
        %v1845 = vsel %vm1257, %v1843, %v1844
        %v1846 = vrot.slane %v1810, 1
        %v1847 = vrot.slane %v1811, 1
        %v1848 = vsel %vm1257, %v1846, %v1847
        %v1849 = vrot.slane %v1812, 1
        %v1850 = vrot.slane %v1813, 1
        %v1851 = vsel %vm1257, %v1849, %v1850
        %v1852 = vrot.slane %v1814, 1
        %v1853 = vrot.slane %v1815, 1
        %v1854 = vsel %vm1257, %v1852, %v1853
        %v1855 = vrot.slane %v1816, 1
        %v1856 = vrot.slane %v1817, 1
        %v1857 = vsel %vm1257, %v1855, %v1856
        %v1874 = vadd.f32 %v1778, %v1836
        %v1875 = vadd.f32 %v1779, %v1835
        %v1876 = vadd.f32 %v1780, %v1839
        %v1877 = vadd.f32 %v1781, %v1838
        %v1878 = vadd.f32 %v1782, %v1842
        %v1879 = vadd.f32 %v1783, %v1841
        %v1880 = vadd.f32 %v1784, %v1845
        %v1881 = vadd.f32 %v1785, %v1844
        %v1882 = vadd.f32 %v1786, %v1848
        %v1883 = vadd.f32 %v1787, %v1847
        %v1884 = vadd.f32 %v1788, %v1851
        %v1885 = vadd.f32 %v1789, %v1850
        %v1886 = vadd.f32 %v1790, %v1854
        %v1887 = vadd.f32 %v1791, %v1853
        %v1888 = vadd.f32 %v1792, %v1857
        %v1889 = vadd.f32 %v1793, %v1856
        %s1890 = scalar_lea.vmem %s5, 2
        %v1891 = vld [vmem:[%s1890] sm:$0x1]
        %v1893 = vlaneseq
        %v1894 = vshrl.u32 %v1893, 7
        %v1895 = vsub.s32 0, %v1894
        %v1896 = vrot.slane %v1891, %v1895
        %v1898 = vmul.f32 %v896, %v1896
        %v1899 = vmul.f32 %v897, %v1896
        %v1900 = vmul.f32 %v899, %v1896
        %v1901 = vmul.f32 %v900, %v1896
        %v1902 = vmul.f32 %v902, %v1896
        %v1903 = vmul.f32 %v903, %v1896
        %v1904 = vmul.f32 %v905, %v1896
        %v1905 = vmul.f32 %v906, %v1896
        %v1906 = vmul.f32 %v908, %v1896
        %v1907 = vmul.f32 %v909, %v1896
        %v1908 = vmul.f32 %v911, %v1896
        %v1909 = vmul.f32 %v912, %v1896
        %v1910 = vmul.f32 %v914, %v1896
        %v1911 = vmul.f32 %v915, %v1896
        %v1912 = vmul.f32 %v917, %v1896
        %v1913 = vmul.f32 %v918, %v1896
        %vm1930 = vcmask 1045504
        %v1931 = vrot.slane %v1898, 2
        %v1932 = vrot.slane %v1899, 2
        %v1933 = vsel %vm1930, %v1931, %v1932
        %v1934 = vrot.slane %v1900, 2
        %v1935 = vrot.slane %v1901, 2
        %v1936 = vsel %vm1930, %v1934, %v1935
        %v1937 = vrot.slane %v1902, 2
        %v1938 = vrot.slane %v1903, 2
        %v1939 = vsel %vm1930, %v1937, %v1938
        %v1940 = vrot.slane %v1904, 2
        %v1941 = vrot.slane %v1905, 2
        %v1942 = vsel %vm1930, %v1940, %v1941
        %v1943 = vrot.slane %v1906, 2
        %v1944 = vrot.slane %v1907, 2
        %v1945 = vsel %vm1930, %v1943, %v1944
        %v1946 = vrot.slane %v1908, 2
        %v1947 = vrot.slane %v1909, 2
        %v1948 = vsel %vm1930, %v1946, %v1947
        %v1949 = vrot.slane %v1910, 2
        %v1950 = vrot.slane %v1911, 2
        %v1951 = vsel %vm1930, %v1949, %v1950
        %v1952 = vrot.slane %v1912, 2
        %v1953 = vrot.slane %v1913, 2
        %v1954 = vsel %vm1930, %v1952, %v1953
        %v1971 = vadd.f32 %v1874, %v1933
        %v1972 = vadd.f32 %v1875, %v1932
        %v1973 = vadd.f32 %v1876, %v1936
        %v1974 = vadd.f32 %v1877, %v1935
        %v1975 = vadd.f32 %v1878, %v1939
        %v1976 = vadd.f32 %v1879, %v1938
        %v1977 = vadd.f32 %v1880, %v1942
        %v1978 = vadd.f32 %v1881, %v1941
        %v1979 = vadd.f32 %v1882, %v1945
        %v1980 = vadd.f32 %v1883, %v1944
        %v1981 = vadd.f32 %v1884, %v1948
        %v1982 = vadd.f32 %v1885, %v1947
        %v1983 = vadd.f32 %v1886, %v1951
        %v1984 = vadd.f32 %v1887, %v1950
        %v1985 = vadd.f32 %v1888, %v1954
        %v1986 = vadd.f32 %v1889, %v1953
        %s1987 = scalar_lea.vmem %s5, 9
        %v1988 = vld [vmem:[%s1987] sm:$0x1]
        %v1990 = vlaneseq
        %v1991 = vshrl.u32 %v1990, 7
        %v1992 = vsub.s32 0, %v1991
        %v1993 = vrot.slane %v1988, %v1992
        %v1995 = vmul.f32 %v899, %v1993
        %v1996 = vmul.f32 %v900, %v1993
        %v1997 = vmul.f32 %v902, %v1993
        %v1998 = vmul.f32 %v903, %v1993
        %v1999 = vmul.f32 %v905, %v1993
        %v2000 = vmul.f32 %v906, %v1993
        %v2001 = vmul.f32 %v908, %v1993
        %v2002 = vmul.f32 %v909, %v1993
        %v2003 = vmul.f32 %v911, %v1993
        %v2004 = vmul.f32 %v912, %v1993
        %v2005 = vmul.f32 %v914, %v1993
        %v2006 = vmul.f32 %v915, %v1993
        %v2007 = vmul.f32 %v917, %v1993
        %v2008 = vmul.f32 %v918, %v1993
        %v2009 = vmul.f32 %v920, %v1993
        %v2010 = vmul.f32 %v921, %v1993
        %v2027 = vrot.slane %v1995, 2
        %v2028 = vrot.slane %v1996, 2
        %v2029 = vsel %vm1930, %v2027, %v2028
        %v2030 = vrot.slane %v1997, 2
        %v2031 = vrot.slane %v1998, 2
        %v2032 = vsel %vm1930, %v2030, %v2031
        %v2033 = vrot.slane %v1999, 2
        %v2034 = vrot.slane %v2000, 2
        %v2035 = vsel %vm1930, %v2033, %v2034
        %v2036 = vrot.slane %v2001, 2
        %v2037 = vrot.slane %v2002, 2
        %v2038 = vsel %vm1930, %v2036, %v2037
        %v2039 = vrot.slane %v2003, 2
        %v2040 = vrot.slane %v2004, 2
        %v2041 = vsel %vm1930, %v2039, %v2040
        %v2042 = vrot.slane %v2005, 2
        %v2043 = vrot.slane %v2006, 2
        %v2044 = vsel %vm1930, %v2042, %v2043
        %v2045 = vrot.slane %v2007, 2
        %v2046 = vrot.slane %v2008, 2
        %v2047 = vsel %vm1930, %v2045, %v2046
        %v2048 = vrot.slane %v2009, 2
        %v2049 = vrot.slane %v2010, 2
        %v2050 = vsel %vm1930, %v2048, %v2049
        %v2067 = vadd.f32 %v1971, %v2029
        %v2068 = vadd.f32 %v1972, %v2028
        %v2069 = vadd.f32 %v1973, %v2032
        %v2070 = vadd.f32 %v1974, %v2031
        %v2071 = vadd.f32 %v1975, %v2035
        %v2072 = vadd.f32 %v1976, %v2034
        %v2073 = vadd.f32 %v1977, %v2038
        %v2074 = vadd.f32 %v1978, %v2037
        %v2075 = vadd.f32 %v1979, %v2041
        %v2076 = vadd.f32 %v1980, %v2040
        %v2077 = vadd.f32 %v1981, %v2044
        %v2078 = vadd.f32 %v1982, %v2043
        %v2079 = vadd.f32 %v1983, %v2047
        %v2080 = vadd.f32 %v1984, %v2046
        %v2081 = vadd.f32 %v1985, %v2050
        %v2082 = vadd.f32 %v1986, %v2049
        %s2083 = scalar_lea.vmem %s5, 16
        %v2084 = vld [vmem:[%s2083] sm:$0x1]
        %v2086 = vlaneseq
        %v2087 = vshrl.u32 %v2086, 7
        %v2088 = vsub.s32 0, %v2087
        %v2089 = vrot.slane %v2084, %v2088
        %v2091 = vmul.f32 %v902, %v2089
        %v2092 = vmul.f32 %v903, %v2089
        %v2093 = vmul.f32 %v905, %v2089
        %v2094 = vmul.f32 %v906, %v2089
        %v2095 = vmul.f32 %v908, %v2089
        %v2096 = vmul.f32 %v909, %v2089
        %v2097 = vmul.f32 %v911, %v2089
        %v2098 = vmul.f32 %v912, %v2089
        %v2099 = vmul.f32 %v914, %v2089
        %v2100 = vmul.f32 %v915, %v2089
        %v2101 = vmul.f32 %v917, %v2089
        %v2102 = vmul.f32 %v918, %v2089
        %v2103 = vmul.f32 %v920, %v2089
        %v2104 = vmul.f32 %v921, %v2089
        %v2105 = vmul.f32 %v923, %v2089
        %v2106 = vmul.f32 %v924, %v2089
        %v2123 = vrot.slane %v2091, 2
        %v2124 = vrot.slane %v2092, 2
        %v2125 = vsel %vm1930, %v2123, %v2124
        %v2126 = vrot.slane %v2093, 2
        %v2127 = vrot.slane %v2094, 2
        %v2128 = vsel %vm1930, %v2126, %v2127
        %v2129 = vrot.slane %v2095, 2
        %v2130 = vrot.slane %v2096, 2
        %v2131 = vsel %vm1930, %v2129, %v2130
        %v2132 = vrot.slane %v2097, 2
        %v2133 = vrot.slane %v2098, 2
        %v2134 = vsel %vm1930, %v2132, %v2133
        %v2135 = vrot.slane %v2099, 2
        %v2136 = vrot.slane %v2100, 2
        %v2137 = vsel %vm1930, %v2135, %v2136
        %v2138 = vrot.slane %v2101, 2
        %v2139 = vrot.slane %v2102, 2
        %v2140 = vsel %vm1930, %v2138, %v2139
        %v2141 = vrot.slane %v2103, 2
        %v2142 = vrot.slane %v2104, 2
        %v2143 = vsel %vm1930, %v2141, %v2142
        %v2144 = vrot.slane %v2105, 2
        %v2145 = vrot.slane %v2106, 2
        %v2146 = vsel %vm1930, %v2144, %v2145
        %v2163 = vadd.f32 %v2067, %v2125
        %v2164 = vadd.f32 %v2068, %v2124
        %v2165 = vadd.f32 %v2069, %v2128
        %v2166 = vadd.f32 %v2070, %v2127
        %v2167 = vadd.f32 %v2071, %v2131
        %v2168 = vadd.f32 %v2072, %v2130
        %v2169 = vadd.f32 %v2073, %v2134
        %v2170 = vadd.f32 %v2074, %v2133
        %v2171 = vadd.f32 %v2075, %v2137
        %v2172 = vadd.f32 %v2076, %v2136
        %v2173 = vadd.f32 %v2077, %v2140
        %v2174 = vadd.f32 %v2078, %v2139
        %v2175 = vadd.f32 %v2079, %v2143
        %v2176 = vadd.f32 %v2080, %v2142
        %v2177 = vadd.f32 %v2081, %v2146
        %v2178 = vadd.f32 %v2082, %v2145
        %s2179 = scalar_lea.vmem %s5, 23
        %v2180 = vld [vmem:[%s2179] sm:$0x1]
        %v2182 = vlaneseq
        %v2183 = vshrl.u32 %v2182, 7
        %v2184 = vsub.s32 0, %v2183
        %v2185 = vrot.slane %v2180, %v2184
        %v2187 = vmul.f32 %v905, %v2185
        %v2188 = vmul.f32 %v906, %v2185
        %v2189 = vmul.f32 %v908, %v2185
        %v2190 = vmul.f32 %v909, %v2185
        %v2191 = vmul.f32 %v911, %v2185
        %v2192 = vmul.f32 %v912, %v2185
        %v2193 = vmul.f32 %v914, %v2185
        %v2194 = vmul.f32 %v915, %v2185
        %v2195 = vmul.f32 %v917, %v2185
        %v2196 = vmul.f32 %v918, %v2185
        %v2197 = vmul.f32 %v920, %v2185
        %v2198 = vmul.f32 %v921, %v2185
        %v2199 = vmul.f32 %v923, %v2185
        %v2200 = vmul.f32 %v924, %v2185
        %v2201 = vmul.f32 %v926, %v2185
        %v2202 = vmul.f32 %v927, %v2185
        %v2219 = vrot.slane %v2187, 2
        %v2220 = vrot.slane %v2188, 2
        %v2221 = vsel %vm1930, %v2219, %v2220
        %v2222 = vrot.slane %v2189, 2
        %v2223 = vrot.slane %v2190, 2
        %v2224 = vsel %vm1930, %v2222, %v2223
        %v2225 = vrot.slane %v2191, 2
        %v2226 = vrot.slane %v2192, 2
        %v2227 = vsel %vm1930, %v2225, %v2226
        %v2228 = vrot.slane %v2193, 2
        %v2229 = vrot.slane %v2194, 2
        %v2230 = vsel %vm1930, %v2228, %v2229
        %v2231 = vrot.slane %v2195, 2
        %v2232 = vrot.slane %v2196, 2
        %v2233 = vsel %vm1930, %v2231, %v2232
        %v2234 = vrot.slane %v2197, 2
        %v2235 = vrot.slane %v2198, 2
        %v2236 = vsel %vm1930, %v2234, %v2235
        %v2237 = vrot.slane %v2199, 2
        %v2238 = vrot.slane %v2200, 2
        %v2239 = vsel %vm1930, %v2237, %v2238
        %v2240 = vrot.slane %v2201, 2
        %v2241 = vrot.slane %v2202, 2
        %v2242 = vsel %vm1930, %v2240, %v2241
        %v2259 = vadd.f32 %v2163, %v2221
        %v2260 = vadd.f32 %v2164, %v2220
        %v2261 = vadd.f32 %v2165, %v2224
        %v2262 = vadd.f32 %v2166, %v2223
        %v2263 = vadd.f32 %v2167, %v2227
        %v2264 = vadd.f32 %v2168, %v2226
        %v2265 = vadd.f32 %v2169, %v2230
        %v2266 = vadd.f32 %v2170, %v2229
        %v2267 = vadd.f32 %v2171, %v2233
        %v2268 = vadd.f32 %v2172, %v2232
        %v2269 = vadd.f32 %v2173, %v2236
        %v2270 = vadd.f32 %v2174, %v2235
        %v2271 = vadd.f32 %v2175, %v2239
        %v2272 = vadd.f32 %v2176, %v2238
        %v2273 = vadd.f32 %v2177, %v2242
        %v2274 = vadd.f32 %v2178, %v2241
        %s2275 = scalar_lea.vmem %s5, 30
        %v2276 = vld [vmem:[%s2275] sm:$0x1]
        %v2278 = vlaneseq
        %v2279 = vshrl.u32 %v2278, 7
        %v2280 = vsub.s32 0, %v2279
        %v2281 = vrot.slane %v2276, %v2280
        %v2283 = vmul.f32 %v908, %v2281
        %v2284 = vmul.f32 %v909, %v2281
        %v2285 = vmul.f32 %v911, %v2281
        %v2286 = vmul.f32 %v912, %v2281
        %v2287 = vmul.f32 %v914, %v2281
        %v2288 = vmul.f32 %v915, %v2281
        %v2289 = vmul.f32 %v917, %v2281
        %v2290 = vmul.f32 %v918, %v2281
        %v2291 = vmul.f32 %v920, %v2281
        %v2292 = vmul.f32 %v921, %v2281
        %v2293 = vmul.f32 %v923, %v2281
        %v2294 = vmul.f32 %v924, %v2281
        %v2295 = vmul.f32 %v926, %v2281
        %v2296 = vmul.f32 %v927, %v2281
        %v2297 = vmul.f32 %v929, %v2281
        %v2298 = vmul.f32 %v930, %v2281
        %v2315 = vrot.slane %v2283, 2
        %v2316 = vrot.slane %v2284, 2
        %v2317 = vsel %vm1930, %v2315, %v2316
        %v2318 = vrot.slane %v2285, 2
        %v2319 = vrot.slane %v2286, 2
        %v2320 = vsel %vm1930, %v2318, %v2319
        %v2321 = vrot.slane %v2287, 2
        %v2322 = vrot.slane %v2288, 2
        %v2323 = vsel %vm1930, %v2321, %v2322
        %v2324 = vrot.slane %v2289, 2
        %v2325 = vrot.slane %v2290, 2
        %v2326 = vsel %vm1930, %v2324, %v2325
        %v2327 = vrot.slane %v2291, 2
        %v2328 = vrot.slane %v2292, 2
        %v2329 = vsel %vm1930, %v2327, %v2328
        %v2330 = vrot.slane %v2293, 2
        %v2331 = vrot.slane %v2294, 2
        %v2332 = vsel %vm1930, %v2330, %v2331
        %v2333 = vrot.slane %v2295, 2
        %v2334 = vrot.slane %v2296, 2
        %v2335 = vsel %vm1930, %v2333, %v2334
        %v2336 = vrot.slane %v2297, 2
        %v2337 = vrot.slane %v2298, 2
        %v2338 = vsel %vm1930, %v2336, %v2337
        %v2355 = vadd.f32 %v2259, %v2317
        %v2356 = vadd.f32 %v2260, %v2316
        %v2357 = vadd.f32 %v2261, %v2320
        %v2358 = vadd.f32 %v2262, %v2319
        %v2359 = vadd.f32 %v2263, %v2323
        %v2360 = vadd.f32 %v2264, %v2322
        %v2361 = vadd.f32 %v2265, %v2326
        %v2362 = vadd.f32 %v2266, %v2325
        %v2363 = vadd.f32 %v2267, %v2329
        %v2364 = vadd.f32 %v2268, %v2328
        %v2365 = vadd.f32 %v2269, %v2332
        %v2366 = vadd.f32 %v2270, %v2331
        %v2367 = vadd.f32 %v2271, %v2335
        %v2368 = vadd.f32 %v2272, %v2334
        %v2369 = vadd.f32 %v2273, %v2338
        %v2370 = vadd.f32 %v2274, %v2337
        %s2371 = scalar_lea.vmem %s5, 37
        %v2372 = vld [vmem:[%s2371] sm:$0x1]
        %v2374 = vlaneseq
        %v2375 = vshrl.u32 %v2374, 7
        %v2376 = vsub.s32 0, %v2375
        %v2377 = vrot.slane %v2372, %v2376
        %v2379 = vmul.f32 %v911, %v2377
        %v2380 = vmul.f32 %v912, %v2377
        %v2381 = vmul.f32 %v914, %v2377
        %v2382 = vmul.f32 %v915, %v2377
        %v2383 = vmul.f32 %v917, %v2377
        %v2384 = vmul.f32 %v918, %v2377
        %v2385 = vmul.f32 %v920, %v2377
        %v2386 = vmul.f32 %v921, %v2377
        %v2387 = vmul.f32 %v923, %v2377
        %v2388 = vmul.f32 %v924, %v2377
        %v2389 = vmul.f32 %v926, %v2377
        %v2390 = vmul.f32 %v927, %v2377
        %v2391 = vmul.f32 %v929, %v2377
        %v2392 = vmul.f32 %v930, %v2377
        %v2393 = vmul.f32 %v932, %v2377
        %v2394 = vmul.f32 %v933, %v2377
        %v2411 = vrot.slane %v2379, 2
        %v2412 = vrot.slane %v2380, 2
        %v2413 = vsel %vm1930, %v2411, %v2412
        %v2414 = vrot.slane %v2381, 2
        %v2415 = vrot.slane %v2382, 2
        %v2416 = vsel %vm1930, %v2414, %v2415
        %v2417 = vrot.slane %v2383, 2
        %v2418 = vrot.slane %v2384, 2
        %v2419 = vsel %vm1930, %v2417, %v2418
        %v2420 = vrot.slane %v2385, 2
        %v2421 = vrot.slane %v2386, 2
        %v2422 = vsel %vm1930, %v2420, %v2421
        %v2423 = vrot.slane %v2387, 2
        %v2424 = vrot.slane %v2388, 2
        %v2425 = vsel %vm1930, %v2423, %v2424
        %v2426 = vrot.slane %v2389, 2
        %v2427 = vrot.slane %v2390, 2
        %v2428 = vsel %vm1930, %v2426, %v2427
        %v2429 = vrot.slane %v2391, 2
        %v2430 = vrot.slane %v2392, 2
        %v2431 = vsel %vm1930, %v2429, %v2430
        %v2432 = vrot.slane %v2393, 2
        %v2433 = vrot.slane %v2394, 2
        %v2434 = vsel %vm1930, %v2432, %v2433
        %v2451 = vadd.f32 %v2355, %v2413
        %v2452 = vadd.f32 %v2356, %v2412
        %v2453 = vadd.f32 %v2357, %v2416
        %v2454 = vadd.f32 %v2358, %v2415
        %v2455 = vadd.f32 %v2359, %v2419
        %v2456 = vadd.f32 %v2360, %v2418
        %v2457 = vadd.f32 %v2361, %v2422
        %v2458 = vadd.f32 %v2362, %v2421
        %v2459 = vadd.f32 %v2363, %v2425
        %v2460 = vadd.f32 %v2364, %v2424
        %v2461 = vadd.f32 %v2365, %v2428
        %v2462 = vadd.f32 %v2366, %v2427
        %v2463 = vadd.f32 %v2367, %v2431
        %v2464 = vadd.f32 %v2368, %v2430
        %v2465 = vadd.f32 %v2369, %v2434
        %v2466 = vadd.f32 %v2370, %v2433
        %s2467 = scalar_lea.vmem %s5, 44
        %v2468 = vld [vmem:[%s2467] sm:$0x1]
        %v2470 = vlaneseq
        %v2471 = vshrl.u32 %v2470, 7
        %v2472 = vsub.s32 0, %v2471
        %v2473 = vrot.slane %v2468, %v2472
        %v2475 = vmul.f32 %v914, %v2473
        %v2476 = vmul.f32 %v915, %v2473
        %v2477 = vmul.f32 %v917, %v2473
        %v2478 = vmul.f32 %v918, %v2473
        %v2479 = vmul.f32 %v920, %v2473
        %v2480 = vmul.f32 %v921, %v2473
        %v2481 = vmul.f32 %v923, %v2473
        %v2482 = vmul.f32 %v924, %v2473
        %v2483 = vmul.f32 %v926, %v2473
        %v2484 = vmul.f32 %v927, %v2473
        %v2485 = vmul.f32 %v929, %v2473
        %v2486 = vmul.f32 %v930, %v2473
        %v2487 = vmul.f32 %v932, %v2473
        %v2488 = vmul.f32 %v933, %v2473
        %v2489 = vmul.f32 %v935, %v2473
        %v2490 = vmul.f32 %v936, %v2473
        %v2507 = vrot.slane %v2475, 2
        %v2508 = vrot.slane %v2476, 2
        %v2509 = vsel %vm1930, %v2507, %v2508
        %v2510 = vrot.slane %v2477, 2
        %v2511 = vrot.slane %v2478, 2
        %v2512 = vsel %vm1930, %v2510, %v2511
        %v2513 = vrot.slane %v2479, 2
        %v2514 = vrot.slane %v2480, 2
        %v2515 = vsel %vm1930, %v2513, %v2514
        %v2516 = vrot.slane %v2481, 2
        %v2517 = vrot.slane %v2482, 2
        %v2518 = vsel %vm1930, %v2516, %v2517
        %v2519 = vrot.slane %v2483, 2
        %v2520 = vrot.slane %v2484, 2
        %v2521 = vsel %vm1930, %v2519, %v2520
        %v2522 = vrot.slane %v2485, 2
        %v2523 = vrot.slane %v2486, 2
        %v2524 = vsel %vm1930, %v2522, %v2523
        %v2525 = vrot.slane %v2487, 2
        %v2526 = vrot.slane %v2488, 2
        %v2527 = vsel %vm1930, %v2525, %v2526
        %v2528 = vrot.slane %v2489, 2
        %v2529 = vrot.slane %v2490, 2
        %v2530 = vsel %vm1930, %v2528, %v2529
        %v2547 = vadd.f32 %v2451, %v2509
        %v2548 = vadd.f32 %v2452, %v2508
        %v2549 = vadd.f32 %v2453, %v2512
        %v2550 = vadd.f32 %v2454, %v2511
        %v2551 = vadd.f32 %v2455, %v2515
        %v2552 = vadd.f32 %v2456, %v2514
        %v2553 = vadd.f32 %v2457, %v2518
        %v2554 = vadd.f32 %v2458, %v2517
        %v2555 = vadd.f32 %v2459, %v2521
        %v2556 = vadd.f32 %v2460, %v2520
        %v2557 = vadd.f32 %v2461, %v2524
        %v2558 = vadd.f32 %v2462, %v2523
        %v2559 = vadd.f32 %v2463, %v2527
        %v2560 = vadd.f32 %v2464, %v2526
        %v2561 = vadd.f32 %v2465, %v2530
        %v2562 = vadd.f32 %v2466, %v2529
        %s2563 = scalar_lea.vmem %s5, 3
        %v2564 = vld [vmem:[%s2563] sm:$0x1]
        %v2566 = vlaneseq
        %v2567 = vshrl.u32 %v2566, 7
        %v2568 = vsub.s32 0, %v2567
        %v2569 = vrot.slane %v2564, %v2568
        %v2571 = vmul.f32 %v897, %v2569
        %v2572 = vmul.f32 %v900, %v2569
        %v2573 = vmul.f32 %v903, %v2569
        %v2574 = vmul.f32 %v906, %v2569
        %v2575 = vmul.f32 %v909, %v2569
        %v2576 = vmul.f32 %v912, %v2569
        %v2577 = vmul.f32 %v915, %v2569
        %v2578 = vmul.f32 %v918, %v2569
        %v2587 = vrot.slane %v2571, 3
        %v2588 = vrot.slane %v2572, 3
        %v2589 = vrot.slane %v2573, 3
        %v2590 = vrot.slane %v2574, 3
        %v2591 = vrot.slane %v2575, 3
        %v2592 = vrot.slane %v2576, 3
        %v2593 = vrot.slane %v2577, 3
        %v2594 = vrot.slane %v2578, 3
        %v2603 = vadd.f32 %v2547, %v2587
        %v2604 = vadd.f32 %v2548, %v2587
        %v2605 = vadd.f32 %v2549, %v2588
        %v2606 = vadd.f32 %v2550, %v2588
        %v2607 = vadd.f32 %v2551, %v2589
        %v2608 = vadd.f32 %v2552, %v2589
        %v2609 = vadd.f32 %v2553, %v2590
        %v2610 = vadd.f32 %v2554, %v2590
        %v2611 = vadd.f32 %v2555, %v2591
        %v2612 = vadd.f32 %v2556, %v2591
        %v2613 = vadd.f32 %v2557, %v2592
        %v2614 = vadd.f32 %v2558, %v2592
        %v2615 = vadd.f32 %v2559, %v2593
        %v2616 = vadd.f32 %v2560, %v2593
        %v2617 = vadd.f32 %v2561, %v2594
        %v2618 = vadd.f32 %v2562, %v2594
        %s2619 = scalar_lea.vmem %s5, 10
        %v2620 = vld [vmem:[%s2619] sm:$0x1]
        %v2622 = vlaneseq
        %v2623 = vshrl.u32 %v2622, 7
        %v2624 = vsub.s32 0, %v2623
        %v2625 = vrot.slane %v2620, %v2624
        %v2627 = vmul.f32 %v900, %v2625
        %v2628 = vmul.f32 %v903, %v2625
        %v2629 = vmul.f32 %v906, %v2625
        %v2630 = vmul.f32 %v909, %v2625
        %v2631 = vmul.f32 %v912, %v2625
        %v2632 = vmul.f32 %v915, %v2625
        %v2633 = vmul.f32 %v918, %v2625
        %v2634 = vmul.f32 %v921, %v2625
        %v2643 = vrot.slane %v2627, 3
        %v2644 = vrot.slane %v2628, 3
        %v2645 = vrot.slane %v2629, 3
        %v2646 = vrot.slane %v2630, 3
        %v2647 = vrot.slane %v2631, 3
        %v2648 = vrot.slane %v2632, 3
        %v2649 = vrot.slane %v2633, 3
        %v2650 = vrot.slane %v2634, 3
        %v2659 = vadd.f32 %v2603, %v2643
        %v2660 = vadd.f32 %v2604, %v2643
        %v2661 = vadd.f32 %v2605, %v2644
        %v2662 = vadd.f32 %v2606, %v2644
        %v2663 = vadd.f32 %v2607, %v2645
        %v2664 = vadd.f32 %v2608, %v2645
        %v2665 = vadd.f32 %v2609, %v2646
        %v2666 = vadd.f32 %v2610, %v2646
        %v2667 = vadd.f32 %v2611, %v2647
        %v2668 = vadd.f32 %v2612, %v2647
        %v2669 = vadd.f32 %v2613, %v2648
        %v2670 = vadd.f32 %v2614, %v2648
        %v2671 = vadd.f32 %v2615, %v2649
        %v2672 = vadd.f32 %v2616, %v2649
        %v2673 = vadd.f32 %v2617, %v2650
        %v2674 = vadd.f32 %v2618, %v2650
        %s2675 = scalar_lea.vmem %s5, 17
        %v2676 = vld [vmem:[%s2675] sm:$0x1]
        %v2678 = vlaneseq
        %v2679 = vshrl.u32 %v2678, 7
        %v2680 = vsub.s32 0, %v2679
        %v2681 = vrot.slane %v2676, %v2680
        %v2683 = vmul.f32 %v903, %v2681
        %v2684 = vmul.f32 %v906, %v2681
        %v2685 = vmul.f32 %v909, %v2681
        %v2686 = vmul.f32 %v912, %v2681
        %v2687 = vmul.f32 %v915, %v2681
        %v2688 = vmul.f32 %v918, %v2681
        %v2689 = vmul.f32 %v921, %v2681
        %v2690 = vmul.f32 %v924, %v2681
        %v2699 = vrot.slane %v2683, 3
        %v2700 = vrot.slane %v2684, 3
        %v2701 = vrot.slane %v2685, 3
        %v2702 = vrot.slane %v2686, 3
        %v2703 = vrot.slane %v2687, 3
        %v2704 = vrot.slane %v2688, 3
        %v2705 = vrot.slane %v2689, 3
        %v2706 = vrot.slane %v2690, 3
        %v2715 = vadd.f32 %v2659, %v2699
        %v2716 = vadd.f32 %v2660, %v2699
        %v2717 = vadd.f32 %v2661, %v2700
        %v2718 = vadd.f32 %v2662, %v2700
        %v2719 = vadd.f32 %v2663, %v2701
        %v2720 = vadd.f32 %v2664, %v2701
        %v2721 = vadd.f32 %v2665, %v2702
        %v2722 = vadd.f32 %v2666, %v2702
        %v2723 = vadd.f32 %v2667, %v2703
        %v2724 = vadd.f32 %v2668, %v2703
        %v2725 = vadd.f32 %v2669, %v2704
        %v2726 = vadd.f32 %v2670, %v2704
        %v2727 = vadd.f32 %v2671, %v2705
        %v2728 = vadd.f32 %v2672, %v2705
        %v2729 = vadd.f32 %v2673, %v2706
        %v2730 = vadd.f32 %v2674, %v2706
        %s2731 = scalar_lea.vmem %s5, 24
        %v2732 = vld [vmem:[%s2731] sm:$0x1]
        %v2734 = vlaneseq
        %v2735 = vshrl.u32 %v2734, 7
        %v2736 = vsub.s32 0, %v2735
        %v2737 = vrot.slane %v2732, %v2736
        %v2739 = vmul.f32 %v906, %v2737
        %v2740 = vmul.f32 %v909, %v2737
        %v2741 = vmul.f32 %v912, %v2737
        %v2742 = vmul.f32 %v915, %v2737
        %v2743 = vmul.f32 %v918, %v2737
        %v2744 = vmul.f32 %v921, %v2737
        %v2745 = vmul.f32 %v924, %v2737
        %v2746 = vmul.f32 %v927, %v2737
        %v2755 = vrot.slane %v2739, 3
        %v2756 = vrot.slane %v2740, 3
        %v2757 = vrot.slane %v2741, 3
        %v2758 = vrot.slane %v2742, 3
        %v2759 = vrot.slane %v2743, 3
        %v2760 = vrot.slane %v2744, 3
        %v2761 = vrot.slane %v2745, 3
        %v2762 = vrot.slane %v2746, 3
        %v2771 = vadd.f32 %v2715, %v2755
        %v2772 = vadd.f32 %v2716, %v2755
        %v2773 = vadd.f32 %v2717, %v2756
        %v2774 = vadd.f32 %v2718, %v2756
        %v2775 = vadd.f32 %v2719, %v2757
        %v2776 = vadd.f32 %v2720, %v2757
        %v2777 = vadd.f32 %v2721, %v2758
        %v2778 = vadd.f32 %v2722, %v2758
        %v2779 = vadd.f32 %v2723, %v2759
        %v2780 = vadd.f32 %v2724, %v2759
        %v2781 = vadd.f32 %v2725, %v2760
        %v2782 = vadd.f32 %v2726, %v2760
        %v2783 = vadd.f32 %v2727, %v2761
        %v2784 = vadd.f32 %v2728, %v2761
        %v2785 = vadd.f32 %v2729, %v2762
        %v2786 = vadd.f32 %v2730, %v2762
        %s2787 = scalar_lea.vmem %s5, 31
        %v2788 = vld [vmem:[%s2787] sm:$0x1]
        %v2790 = vlaneseq
        %v2791 = vshrl.u32 %v2790, 7
        %v2792 = vsub.s32 0, %v2791
        %v2793 = vrot.slane %v2788, %v2792
        %v2795 = vmul.f32 %v909, %v2793
        %v2796 = vmul.f32 %v912, %v2793
        %v2797 = vmul.f32 %v915, %v2793
        %v2798 = vmul.f32 %v918, %v2793
        %v2799 = vmul.f32 %v921, %v2793
        %v2800 = vmul.f32 %v924, %v2793
        %v2801 = vmul.f32 %v927, %v2793
        %v2802 = vmul.f32 %v930, %v2793
        %v2811 = vrot.slane %v2795, 3
        %v2812 = vrot.slane %v2796, 3
        %v2813 = vrot.slane %v2797, 3
        %v2814 = vrot.slane %v2798, 3
        %v2815 = vrot.slane %v2799, 3
        %v2816 = vrot.slane %v2800, 3
        %v2817 = vrot.slane %v2801, 3
        %v2818 = vrot.slane %v2802, 3
        %v2827 = vadd.f32 %v2771, %v2811
        %v2828 = vadd.f32 %v2772, %v2811
        %v2829 = vadd.f32 %v2773, %v2812
        %v2830 = vadd.f32 %v2774, %v2812
        %v2831 = vadd.f32 %v2775, %v2813
        %v2832 = vadd.f32 %v2776, %v2813
        %v2833 = vadd.f32 %v2777, %v2814
        %v2834 = vadd.f32 %v2778, %v2814
        %v2835 = vadd.f32 %v2779, %v2815
        %v2836 = vadd.f32 %v2780, %v2815
        %v2837 = vadd.f32 %v2781, %v2816
        %v2838 = vadd.f32 %v2782, %v2816
        %v2839 = vadd.f32 %v2783, %v2817
        %v2840 = vadd.f32 %v2784, %v2817
        %v2841 = vadd.f32 %v2785, %v2818
        %v2842 = vadd.f32 %v2786, %v2818
        %s2843 = scalar_lea.vmem %s5, 38
        %v2844 = vld [vmem:[%s2843] sm:$0x1]
        %v2846 = vlaneseq
        %v2847 = vshrl.u32 %v2846, 7
        %v2848 = vsub.s32 0, %v2847
        %v2849 = vrot.slane %v2844, %v2848
        %v2851 = vmul.f32 %v912, %v2849
        %v2852 = vmul.f32 %v915, %v2849
        %v2853 = vmul.f32 %v918, %v2849
        %v2854 = vmul.f32 %v921, %v2849
        %v2855 = vmul.f32 %v924, %v2849
        %v2856 = vmul.f32 %v927, %v2849
        %v2857 = vmul.f32 %v930, %v2849
        %v2858 = vmul.f32 %v933, %v2849
        %v2867 = vrot.slane %v2851, 3
        %v2868 = vrot.slane %v2852, 3
        %v2869 = vrot.slane %v2853, 3
        %v2870 = vrot.slane %v2854, 3
        %v2871 = vrot.slane %v2855, 3
        %v2872 = vrot.slane %v2856, 3
        %v2873 = vrot.slane %v2857, 3
        %v2874 = vrot.slane %v2858, 3
        %v2883 = vadd.f32 %v2827, %v2867
        %v2884 = vadd.f32 %v2828, %v2867
        %v2885 = vadd.f32 %v2829, %v2868
        %v2886 = vadd.f32 %v2830, %v2868
        %v2887 = vadd.f32 %v2831, %v2869
        %v2888 = vadd.f32 %v2832, %v2869
        %v2889 = vadd.f32 %v2833, %v2870
        %v2890 = vadd.f32 %v2834, %v2870
        %v2891 = vadd.f32 %v2835, %v2871
        %v2892 = vadd.f32 %v2836, %v2871
        %v2893 = vadd.f32 %v2837, %v2872
        %v2894 = vadd.f32 %v2838, %v2872
        %v2895 = vadd.f32 %v2839, %v2873
        %v2896 = vadd.f32 %v2840, %v2873
        %v2897 = vadd.f32 %v2841, %v2874
        %v2898 = vadd.f32 %v2842, %v2874
        %s2899 = scalar_lea.vmem %s5, 45
        %v2900 = vld [vmem:[%s2899] sm:$0x1]
        %v2902 = vlaneseq
        %v2903 = vshrl.u32 %v2902, 7
        %v2904 = vsub.s32 0, %v2903
        %v2905 = vrot.slane %v2900, %v2904
        %v2907 = vmul.f32 %v915, %v2905
        %v2908 = vmul.f32 %v918, %v2905
        %v2909 = vmul.f32 %v921, %v2905
        %v2910 = vmul.f32 %v924, %v2905
        %v2911 = vmul.f32 %v927, %v2905
        %v2912 = vmul.f32 %v930, %v2905
        %v2913 = vmul.f32 %v933, %v2905
        %v2914 = vmul.f32 %v936, %v2905
        %v2923 = vrot.slane %v2907, 3
        %v2924 = vrot.slane %v2908, 3
        %v2925 = vrot.slane %v2909, 3
        %v2926 = vrot.slane %v2910, 3
        %v2927 = vrot.slane %v2911, 3
        %v2928 = vrot.slane %v2912, 3
        %v2929 = vrot.slane %v2913, 3
        %v2930 = vrot.slane %v2914, 3
        %v2939 = vadd.f32 %v2883, %v2923
        %v2940 = vadd.f32 %v2884, %v2923
        %v2941 = vadd.f32 %v2885, %v2924
        %v2942 = vadd.f32 %v2886, %v2924
        %v2943 = vadd.f32 %v2887, %v2925
        %v2944 = vadd.f32 %v2888, %v2925
        %v2945 = vadd.f32 %v2889, %v2926
        %v2946 = vadd.f32 %v2890, %v2926
        %v2947 = vadd.f32 %v2891, %v2927
        %v2948 = vadd.f32 %v2892, %v2927
        %v2949 = vadd.f32 %v2893, %v2928
        %v2950 = vadd.f32 %v2894, %v2928
        %v2951 = vadd.f32 %v2895, %v2929
        %v2952 = vadd.f32 %v2896, %v2929
        %v2953 = vadd.f32 %v2897, %v2930
        %v2954 = vadd.f32 %v2898, %v2930
        %s2955 = scalar_lea.vmem %s5, 4
        %v2956 = vld [vmem:[%s2955] sm:$0x1]
        %v2958 = vlaneseq
        %v2959 = vshrl.u32 %v2958, 7
        %v2960 = vsub.s32 0, %v2959
        %v2961 = vrot.slane %v2956, %v2960
        %v2963 = vmul.f32 %v897, %v2961
        %v2964 = vmul.f32 %v898, %v2961
        %v2965 = vmul.f32 %v900, %v2961
        %v2966 = vmul.f32 %v901, %v2961
        %v2967 = vmul.f32 %v903, %v2961
        %v2968 = vmul.f32 %v904, %v2961
        %v2969 = vmul.f32 %v906, %v2961
        %v2970 = vmul.f32 %v907, %v2961
        %v2971 = vmul.f32 %v909, %v2961
        %v2972 = vmul.f32 %v910, %v2961
        %v2973 = vmul.f32 %v912, %v2961
        %v2974 = vmul.f32 %v913, %v2961
        %v2975 = vmul.f32 %v915, %v2961
        %v2976 = vmul.f32 %v916, %v2961
        %v2977 = vmul.f32 %v918, %v2961
        %v2978 = vmul.f32 %v919, %v2961
        %vm2995 = vcmask 1043456
        %v2996 = vrot.slane %v2963, 4
        %v2997 = vrot.slane %v2964, 4
        %v2998 = vsel %vm2995, %v2996, %v2997
        %v2999 = vrot.slane %v2965, 4
        %v3000 = vrot.slane %v2966, 4
        %v3001 = vsel %vm2995, %v2999, %v3000
        %v3002 = vrot.slane %v2967, 4
        %v3003 = vrot.slane %v2968, 4
        %v3004 = vsel %vm2995, %v3002, %v3003
        %v3005 = vrot.slane %v2969, 4
        %v3006 = vrot.slane %v2970, 4
        %v3007 = vsel %vm2995, %v3005, %v3006
        %v3008 = vrot.slane %v2971, 4
        %v3009 = vrot.slane %v2972, 4
        %v3010 = vsel %vm2995, %v3008, %v3009
        %v3011 = vrot.slane %v2973, 4
        %v3012 = vrot.slane %v2974, 4
        %v3013 = vsel %vm2995, %v3011, %v3012
        %v3014 = vrot.slane %v2975, 4
        %v3015 = vrot.slane %v2976, 4
        %v3016 = vsel %vm2995, %v3014, %v3015
        %v3017 = vrot.slane %v2977, 4
        %v3018 = vrot.slane %v2978, 4
        %v3019 = vsel %vm2995, %v3017, %v3018
        %v3036 = vadd.f32 %v2939, %v2996
        %v3037 = vadd.f32 %v2940, %v2998
        %v3038 = vadd.f32 %v2941, %v2999
        %v3039 = vadd.f32 %v2942, %v3001
        %v3040 = vadd.f32 %v2943, %v3002
        %v3041 = vadd.f32 %v2944, %v3004
        %v3042 = vadd.f32 %v2945, %v3005
        %v3043 = vadd.f32 %v2946, %v3007
        %v3044 = vadd.f32 %v2947, %v3008
        %v3045 = vadd.f32 %v2948, %v3010
        %v3046 = vadd.f32 %v2949, %v3011
        %v3047 = vadd.f32 %v2950, %v3013
        %v3048 = vadd.f32 %v2951, %v3014
        %v3049 = vadd.f32 %v2952, %v3016
        %v3050 = vadd.f32 %v2953, %v3017
        %v3051 = vadd.f32 %v2954, %v3019
        %s3052 = scalar_lea.vmem %s5, 11
        %v3053 = vld [vmem:[%s3052] sm:$0x1]
        %v3055 = vlaneseq
        %v3056 = vshrl.u32 %v3055, 7
        %v3057 = vsub.s32 0, %v3056
        %v3058 = vrot.slane %v3053, %v3057
        %v3060 = vmul.f32 %v900, %v3058
        %v3061 = vmul.f32 %v901, %v3058
        %v3062 = vmul.f32 %v903, %v3058
        %v3063 = vmul.f32 %v904, %v3058
        %v3064 = vmul.f32 %v906, %v3058
        %v3065 = vmul.f32 %v907, %v3058
        %v3066 = vmul.f32 %v909, %v3058
        %v3067 = vmul.f32 %v910, %v3058
        %v3068 = vmul.f32 %v912, %v3058
        %v3069 = vmul.f32 %v913, %v3058
        %v3070 = vmul.f32 %v915, %v3058
        %v3071 = vmul.f32 %v916, %v3058
        %v3072 = vmul.f32 %v918, %v3058
        %v3073 = vmul.f32 %v919, %v3058
        %v3074 = vmul.f32 %v921, %v3058
        %v3075 = vmul.f32 %v922, %v3058
        %v3092 = vrot.slane %v3060, 4
        %v3093 = vrot.slane %v3061, 4
        %v3094 = vsel %vm2995, %v3092, %v3093
        %v3095 = vrot.slane %v3062, 4
        %v3096 = vrot.slane %v3063, 4
        %v3097 = vsel %vm2995, %v3095, %v3096
        %v3098 = vrot.slane %v3064, 4
        %v3099 = vrot.slane %v3065, 4
        %v3100 = vsel %vm2995, %v3098, %v3099
        %v3101 = vrot.slane %v3066, 4
        %v3102 = vrot.slane %v3067, 4
        %v3103 = vsel %vm2995, %v3101, %v3102
        %v3104 = vrot.slane %v3068, 4
        %v3105 = vrot.slane %v3069, 4
        %v3106 = vsel %vm2995, %v3104, %v3105
        %v3107 = vrot.slane %v3070, 4
        %v3108 = vrot.slane %v3071, 4
        %v3109 = vsel %vm2995, %v3107, %v3108
        %v3110 = vrot.slane %v3072, 4
        %v3111 = vrot.slane %v3073, 4
        %v3112 = vsel %vm2995, %v3110, %v3111
        %v3113 = vrot.slane %v3074, 4
        %v3114 = vrot.slane %v3075, 4
        %v3115 = vsel %vm2995, %v3113, %v3114
        %v3132 = vadd.f32 %v3036, %v3092
        %v3133 = vadd.f32 %v3037, %v3094
        %v3134 = vadd.f32 %v3038, %v3095
        %v3135 = vadd.f32 %v3039, %v3097
        %v3136 = vadd.f32 %v3040, %v3098
        %v3137 = vadd.f32 %v3041, %v3100
        %v3138 = vadd.f32 %v3042, %v3101
        %v3139 = vadd.f32 %v3043, %v3103
        %v3140 = vadd.f32 %v3044, %v3104
        %v3141 = vadd.f32 %v3045, %v3106
        %v3142 = vadd.f32 %v3046, %v3107
        %v3143 = vadd.f32 %v3047, %v3109
        %v3144 = vadd.f32 %v3048, %v3110
        %v3145 = vadd.f32 %v3049, %v3112
        %v3146 = vadd.f32 %v3050, %v3113
        %v3147 = vadd.f32 %v3051, %v3115
        %s3148 = scalar_lea.vmem %s5, 18
        %v3149 = vld [vmem:[%s3148] sm:$0x1]
        %v3151 = vlaneseq
        %v3152 = vshrl.u32 %v3151, 7
        %v3153 = vsub.s32 0, %v3152
        %v3154 = vrot.slane %v3149, %v3153
        %v3156 = vmul.f32 %v903, %v3154
        %v3157 = vmul.f32 %v904, %v3154
        %v3158 = vmul.f32 %v906, %v3154
        %v3159 = vmul.f32 %v907, %v3154
        %v3160 = vmul.f32 %v909, %v3154
        %v3161 = vmul.f32 %v910, %v3154
        %v3162 = vmul.f32 %v912, %v3154
        %v3163 = vmul.f32 %v913, %v3154
        %v3164 = vmul.f32 %v915, %v3154
        %v3165 = vmul.f32 %v916, %v3154
        %v3166 = vmul.f32 %v918, %v3154
        %v3167 = vmul.f32 %v919, %v3154
        %v3168 = vmul.f32 %v921, %v3154
        %v3169 = vmul.f32 %v922, %v3154
        %v3170 = vmul.f32 %v924, %v3154
        %v3171 = vmul.f32 %v925, %v3154
        %v3188 = vrot.slane %v3156, 4
        %v3189 = vrot.slane %v3157, 4
        %v3190 = vsel %vm2995, %v3188, %v3189
        %v3191 = vrot.slane %v3158, 4
        %v3192 = vrot.slane %v3159, 4
        %v3193 = vsel %vm2995, %v3191, %v3192
        %v3194 = vrot.slane %v3160, 4
        %v3195 = vrot.slane %v3161, 4
        %v3196 = vsel %vm2995, %v3194, %v3195
        %v3197 = vrot.slane %v3162, 4
        %v3198 = vrot.slane %v3163, 4
        %v3199 = vsel %vm2995, %v3197, %v3198
        %v3200 = vrot.slane %v3164, 4
        %v3201 = vrot.slane %v3165, 4
        %v3202 = vsel %vm2995, %v3200, %v3201
        %v3203 = vrot.slane %v3166, 4
        %v3204 = vrot.slane %v3167, 4
        %v3205 = vsel %vm2995, %v3203, %v3204
        %v3206 = vrot.slane %v3168, 4
        %v3207 = vrot.slane %v3169, 4
        %v3208 = vsel %vm2995, %v3206, %v3207
        %v3209 = vrot.slane %v3170, 4
        %v3210 = vrot.slane %v3171, 4
        %v3211 = vsel %vm2995, %v3209, %v3210
        %v3228 = vadd.f32 %v3132, %v3188
        %v3229 = vadd.f32 %v3133, %v3190
        %v3230 = vadd.f32 %v3134, %v3191
        %v3231 = vadd.f32 %v3135, %v3193
        %v3232 = vadd.f32 %v3136, %v3194
        %v3233 = vadd.f32 %v3137, %v3196
        %v3234 = vadd.f32 %v3138, %v3197
        %v3235 = vadd.f32 %v3139, %v3199
        %v3236 = vadd.f32 %v3140, %v3200
        %v3237 = vadd.f32 %v3141, %v3202
        %v3238 = vadd.f32 %v3142, %v3203
        %v3239 = vadd.f32 %v3143, %v3205
        %v3240 = vadd.f32 %v3144, %v3206
        %v3241 = vadd.f32 %v3145, %v3208
        %v3242 = vadd.f32 %v3146, %v3209
        %v3243 = vadd.f32 %v3147, %v3211
        %s3244 = scalar_lea.vmem %s5, 25
        %v3245 = vld [vmem:[%s3244] sm:$0x1]
        %v3247 = vlaneseq
        %v3248 = vshrl.u32 %v3247, 7
        %v3249 = vsub.s32 0, %v3248
        %v3250 = vrot.slane %v3245, %v3249
        %v3252 = vmul.f32 %v906, %v3250
        %v3253 = vmul.f32 %v907, %v3250
        %v3254 = vmul.f32 %v909, %v3250
        %v3255 = vmul.f32 %v910, %v3250
        %v3256 = vmul.f32 %v912, %v3250
        %v3257 = vmul.f32 %v913, %v3250
        %v3258 = vmul.f32 %v915, %v3250
        %v3259 = vmul.f32 %v916, %v3250
        %v3260 = vmul.f32 %v918, %v3250
        %v3261 = vmul.f32 %v919, %v3250
        %v3262 = vmul.f32 %v921, %v3250
        %v3263 = vmul.f32 %v922, %v3250
        %v3264 = vmul.f32 %v924, %v3250
        %v3265 = vmul.f32 %v925, %v3250
        %v3266 = vmul.f32 %v927, %v3250
        %v3267 = vmul.f32 %v928, %v3250
        %v3284 = vrot.slane %v3252, 4
        %v3285 = vrot.slane %v3253, 4
        %v3286 = vsel %vm2995, %v3284, %v3285
        %v3287 = vrot.slane %v3254, 4
        %v3288 = vrot.slane %v3255, 4
        %v3289 = vsel %vm2995, %v3287, %v3288
        %v3290 = vrot.slane %v3256, 4
        %v3291 = vrot.slane %v3257, 4
        %v3292 = vsel %vm2995, %v3290, %v3291
        %v3293 = vrot.slane %v3258, 4
        %v3294 = vrot.slane %v3259, 4
        %v3295 = vsel %vm2995, %v3293, %v3294
        %v3296 = vrot.slane %v3260, 4
        %v3297 = vrot.slane %v3261, 4
        %v3298 = vsel %vm2995, %v3296, %v3297
        %v3299 = vrot.slane %v3262, 4
        %v3300 = vrot.slane %v3263, 4
        %v3301 = vsel %vm2995, %v3299, %v3300
        %v3302 = vrot.slane %v3264, 4
        %v3303 = vrot.slane %v3265, 4
        %v3304 = vsel %vm2995, %v3302, %v3303
        %v3305 = vrot.slane %v3266, 4
        %v3306 = vrot.slane %v3267, 4
        %v3307 = vsel %vm2995, %v3305, %v3306
        %v3324 = vadd.f32 %v3228, %v3284
        %v3325 = vadd.f32 %v3229, %v3286
        %v3326 = vadd.f32 %v3230, %v3287
        %v3327 = vadd.f32 %v3231, %v3289
        %v3328 = vadd.f32 %v3232, %v3290
        %v3329 = vadd.f32 %v3233, %v3292
        %v3330 = vadd.f32 %v3234, %v3293
        %v3331 = vadd.f32 %v3235, %v3295
        %v3332 = vadd.f32 %v3236, %v3296
        %v3333 = vadd.f32 %v3237, %v3298
        %v3334 = vadd.f32 %v3238, %v3299
        %v3335 = vadd.f32 %v3239, %v3301
        %v3336 = vadd.f32 %v3240, %v3302
        %v3337 = vadd.f32 %v3241, %v3304
        %v3338 = vadd.f32 %v3242, %v3305
        %v3339 = vadd.f32 %v3243, %v3307
        %s3340 = scalar_lea.vmem %s5, 32
        %v3341 = vld [vmem:[%s3340] sm:$0x1]
        %v3343 = vlaneseq
        %v3344 = vshrl.u32 %v3343, 7
        %v3345 = vsub.s32 0, %v3344
        %v3346 = vrot.slane %v3341, %v3345
        %v3348 = vmul.f32 %v909, %v3346
        %v3349 = vmul.f32 %v910, %v3346
        %v3350 = vmul.f32 %v912, %v3346
        %v3351 = vmul.f32 %v913, %v3346
        %v3352 = vmul.f32 %v915, %v3346
        %v3353 = vmul.f32 %v916, %v3346
        %v3354 = vmul.f32 %v918, %v3346
        %v3355 = vmul.f32 %v919, %v3346
        %v3356 = vmul.f32 %v921, %v3346
        %v3357 = vmul.f32 %v922, %v3346
        %v3358 = vmul.f32 %v924, %v3346
        %v3359 = vmul.f32 %v925, %v3346
        %v3360 = vmul.f32 %v927, %v3346
        %v3361 = vmul.f32 %v928, %v3346
        %v3362 = vmul.f32 %v930, %v3346
        %v3363 = vmul.f32 %v931, %v3346
        %v3380 = vrot.slane %v3348, 4
        %v3381 = vrot.slane %v3349, 4
        %v3382 = vsel %vm2995, %v3380, %v3381
        %v3383 = vrot.slane %v3350, 4
        %v3384 = vrot.slane %v3351, 4
        %v3385 = vsel %vm2995, %v3383, %v3384
        %v3386 = vrot.slane %v3352, 4
        %v3387 = vrot.slane %v3353, 4
        %v3388 = vsel %vm2995, %v3386, %v3387
        %v3389 = vrot.slane %v3354, 4
        %v3390 = vrot.slane %v3355, 4
        %v3391 = vsel %vm2995, %v3389, %v3390
        %v3392 = vrot.slane %v3356, 4
        %v3393 = vrot.slane %v3357, 4
        %v3394 = vsel %vm2995, %v3392, %v3393
        %v3395 = vrot.slane %v3358, 4
        %v3396 = vrot.slane %v3359, 4
        %v3397 = vsel %vm2995, %v3395, %v3396
        %v3398 = vrot.slane %v3360, 4
        %v3399 = vrot.slane %v3361, 4
        %v3400 = vsel %vm2995, %v3398, %v3399
        %v3401 = vrot.slane %v3362, 4
        %v3402 = vrot.slane %v3363, 4
        %v3403 = vsel %vm2995, %v3401, %v3402
        %v3420 = vadd.f32 %v3324, %v3380
        %v3421 = vadd.f32 %v3325, %v3382
        %v3422 = vadd.f32 %v3326, %v3383
        %v3423 = vadd.f32 %v3327, %v3385
        %v3424 = vadd.f32 %v3328, %v3386
        %v3425 = vadd.f32 %v3329, %v3388
        %v3426 = vadd.f32 %v3330, %v3389
        %v3427 = vadd.f32 %v3331, %v3391
        %v3428 = vadd.f32 %v3332, %v3392
        %v3429 = vadd.f32 %v3333, %v3394
        %v3430 = vadd.f32 %v3334, %v3395
        %v3431 = vadd.f32 %v3335, %v3397
        %v3432 = vadd.f32 %v3336, %v3398
        %v3433 = vadd.f32 %v3337, %v3400
        %v3434 = vadd.f32 %v3338, %v3401
        %v3435 = vadd.f32 %v3339, %v3403
        %s3436 = scalar_lea.vmem %s5, 39
        %v3437 = vld [vmem:[%s3436] sm:$0x1]
        %v3439 = vlaneseq
        %v3440 = vshrl.u32 %v3439, 7
        %v3441 = vsub.s32 0, %v3440
        %v3442 = vrot.slane %v3437, %v3441
        %v3444 = vmul.f32 %v912, %v3442
        %v3445 = vmul.f32 %v913, %v3442
        %v3446 = vmul.f32 %v915, %v3442
        %v3447 = vmul.f32 %v916, %v3442
        %v3448 = vmul.f32 %v918, %v3442
        %v3449 = vmul.f32 %v919, %v3442
        %v3450 = vmul.f32 %v921, %v3442
        %v3451 = vmul.f32 %v922, %v3442
        %v3452 = vmul.f32 %v924, %v3442
        %v3453 = vmul.f32 %v925, %v3442
        %v3454 = vmul.f32 %v927, %v3442
        %v3455 = vmul.f32 %v928, %v3442
        %v3456 = vmul.f32 %v930, %v3442
        %v3457 = vmul.f32 %v931, %v3442
        %v3458 = vmul.f32 %v933, %v3442
        %v3459 = vmul.f32 %v934, %v3442
        %v3476 = vrot.slane %v3444, 4
        %v3477 = vrot.slane %v3445, 4
        %v3478 = vsel %vm2995, %v3476, %v3477
        %v3479 = vrot.slane %v3446, 4
        %v3480 = vrot.slane %v3447, 4
        %v3481 = vsel %vm2995, %v3479, %v3480
        %v3482 = vrot.slane %v3448, 4
        %v3483 = vrot.slane %v3449, 4
        %v3484 = vsel %vm2995, %v3482, %v3483
        %v3485 = vrot.slane %v3450, 4
        %v3486 = vrot.slane %v3451, 4
        %v3487 = vsel %vm2995, %v3485, %v3486
        %v3488 = vrot.slane %v3452, 4
        %v3489 = vrot.slane %v3453, 4
        %v3490 = vsel %vm2995, %v3488, %v3489
        %v3491 = vrot.slane %v3454, 4
        %v3492 = vrot.slane %v3455, 4
        %v3493 = vsel %vm2995, %v3491, %v3492
        %v3494 = vrot.slane %v3456, 4
        %v3495 = vrot.slane %v3457, 4
        %v3496 = vsel %vm2995, %v3494, %v3495
        %v3497 = vrot.slane %v3458, 4
        %v3498 = vrot.slane %v3459, 4
        %v3499 = vsel %vm2995, %v3497, %v3498
        %v3516 = vadd.f32 %v3420, %v3476
        %v3517 = vadd.f32 %v3421, %v3478
        %v3518 = vadd.f32 %v3422, %v3479
        %v3519 = vadd.f32 %v3423, %v3481
        %v3520 = vadd.f32 %v3424, %v3482
        %v3521 = vadd.f32 %v3425, %v3484
        %v3522 = vadd.f32 %v3426, %v3485
        %v3523 = vadd.f32 %v3427, %v3487
        %v3524 = vadd.f32 %v3428, %v3488
        %v3525 = vadd.f32 %v3429, %v3490
        %v3526 = vadd.f32 %v3430, %v3491
        %v3527 = vadd.f32 %v3431, %v3493
        %v3528 = vadd.f32 %v3432, %v3494
        %v3529 = vadd.f32 %v3433, %v3496
        %v3530 = vadd.f32 %v3434, %v3497
        %v3531 = vadd.f32 %v3435, %v3499
        %s3532 = scalar_lea.vmem %s5, 46
        %v3533 = vld [vmem:[%s3532] sm:$0x1]
        %v3535 = vlaneseq
        %v3536 = vshrl.u32 %v3535, 7
        %v3537 = vsub.s32 0, %v3536
        %v3538 = vrot.slane %v3533, %v3537
        %v3540 = vmul.f32 %v915, %v3538
        %v3541 = vmul.f32 %v916, %v3538
        %v3542 = vmul.f32 %v918, %v3538
        %v3543 = vmul.f32 %v919, %v3538
        %v3544 = vmul.f32 %v921, %v3538
        %v3545 = vmul.f32 %v922, %v3538
        %v3546 = vmul.f32 %v924, %v3538
        %v3547 = vmul.f32 %v925, %v3538
        %v3548 = vmul.f32 %v927, %v3538
        %v3549 = vmul.f32 %v928, %v3538
        %v3550 = vmul.f32 %v930, %v3538
        %v3551 = vmul.f32 %v931, %v3538
        %v3552 = vmul.f32 %v933, %v3538
        %v3553 = vmul.f32 %v934, %v3538
        %v3554 = vmul.f32 %v936, %v3538
        %v3555 = vmul.f32 %v937, %v3538
        %v3572 = vrot.slane %v3540, 4
        %v3573 = vrot.slane %v3541, 4
        %v3574 = vsel %vm2995, %v3572, %v3573
        %v3575 = vrot.slane %v3542, 4
        %v3576 = vrot.slane %v3543, 4
        %v3577 = vsel %vm2995, %v3575, %v3576
        %v3578 = vrot.slane %v3544, 4
        %v3579 = vrot.slane %v3545, 4
        %v3580 = vsel %vm2995, %v3578, %v3579
        %v3581 = vrot.slane %v3546, 4
        %v3582 = vrot.slane %v3547, 4
        %v3583 = vsel %vm2995, %v3581, %v3582
        %v3584 = vrot.slane %v3548, 4
        %v3585 = vrot.slane %v3549, 4
        %v3586 = vsel %vm2995, %v3584, %v3585
        %v3587 = vrot.slane %v3550, 4
        %v3588 = vrot.slane %v3551, 4
        %v3589 = vsel %vm2995, %v3587, %v3588
        %v3590 = vrot.slane %v3552, 4
        %v3591 = vrot.slane %v3553, 4
        %v3592 = vsel %vm2995, %v3590, %v3591
        %v3593 = vrot.slane %v3554, 4
        %v3594 = vrot.slane %v3555, 4
        %v3595 = vsel %vm2995, %v3593, %v3594
        %v3612 = vadd.f32 %v3516, %v3572
        %v3613 = vadd.f32 %v3517, %v3574
        %v3614 = vadd.f32 %v3518, %v3575
        %v3615 = vadd.f32 %v3519, %v3577
        %v3616 = vadd.f32 %v3520, %v3578
        %v3617 = vadd.f32 %v3521, %v3580
        %v3618 = vadd.f32 %v3522, %v3581
        %v3619 = vadd.f32 %v3523, %v3583
        %v3620 = vadd.f32 %v3524, %v3584
        %v3621 = vadd.f32 %v3525, %v3586
        %v3622 = vadd.f32 %v3526, %v3587
        %v3623 = vadd.f32 %v3527, %v3589
        %v3624 = vadd.f32 %v3528, %v3590
        %v3625 = vadd.f32 %v3529, %v3592
        %v3626 = vadd.f32 %v3530, %v3593
        %v3627 = vadd.f32 %v3531, %v3595
        %s3628 = scalar_lea.vmem %s5, 5
        %v3629 = vld [vmem:[%s3628] sm:$0x1]
        %v3631 = vlaneseq
        %v3632 = vshrl.u32 %v3631, 7
        %v3633 = vsub.s32 0, %v3632
        %v3634 = vrot.slane %v3629, %v3633
        %v3636 = vmul.f32 %v897, %v3634
        %v3637 = vmul.f32 %v898, %v3634
        %v3638 = vmul.f32 %v900, %v3634
        %v3639 = vmul.f32 %v901, %v3634
        %v3640 = vmul.f32 %v903, %v3634
        %v3641 = vmul.f32 %v904, %v3634
        %v3642 = vmul.f32 %v906, %v3634
        %v3643 = vmul.f32 %v907, %v3634
        %v3644 = vmul.f32 %v909, %v3634
        %v3645 = vmul.f32 %v910, %v3634
        %v3646 = vmul.f32 %v912, %v3634
        %v3647 = vmul.f32 %v913, %v3634
        %v3648 = vmul.f32 %v915, %v3634
        %v3649 = vmul.f32 %v916, %v3634
        %v3650 = vmul.f32 %v918, %v3634
        %v3651 = vmul.f32 %v919, %v3634
        %vm3668 = vcmask 1042432
        %v3669 = vrot.slane %v3636, 5
        %v3670 = vrot.slane %v3637, 5
        %v3671 = vsel %vm3668, %v3669, %v3670
        %v3672 = vrot.slane %v3638, 5
        %v3673 = vrot.slane %v3639, 5
        %v3674 = vsel %vm3668, %v3672, %v3673
        %v3675 = vrot.slane %v3640, 5
        %v3676 = vrot.slane %v3641, 5
        %v3677 = vsel %vm3668, %v3675, %v3676
        %v3678 = vrot.slane %v3642, 5
        %v3679 = vrot.slane %v3643, 5
        %v3680 = vsel %vm3668, %v3678, %v3679
        %v3681 = vrot.slane %v3644, 5
        %v3682 = vrot.slane %v3645, 5
        %v3683 = vsel %vm3668, %v3681, %v3682
        %v3684 = vrot.slane %v3646, 5
        %v3685 = vrot.slane %v3647, 5
        %v3686 = vsel %vm3668, %v3684, %v3685
        %v3687 = vrot.slane %v3648, 5
        %v3688 = vrot.slane %v3649, 5
        %v3689 = vsel %vm3668, %v3687, %v3688
        %v3690 = vrot.slane %v3650, 5
        %v3691 = vrot.slane %v3651, 5
        %v3692 = vsel %vm3668, %v3690, %v3691
        %v3709 = vadd.f32 %v3612, %v3669
        %v3710 = vadd.f32 %v3613, %v3671
        %v3711 = vadd.f32 %v3614, %v3672
        %v3712 = vadd.f32 %v3615, %v3674
        %v3713 = vadd.f32 %v3616, %v3675
        %v3714 = vadd.f32 %v3617, %v3677
        %v3715 = vadd.f32 %v3618, %v3678
        %v3716 = vadd.f32 %v3619, %v3680
        %v3717 = vadd.f32 %v3620, %v3681
        %v3718 = vadd.f32 %v3621, %v3683
        %v3719 = vadd.f32 %v3622, %v3684
        %v3720 = vadd.f32 %v3623, %v3686
        %v3721 = vadd.f32 %v3624, %v3687
        %v3722 = vadd.f32 %v3625, %v3689
        %v3723 = vadd.f32 %v3626, %v3690
        %v3724 = vadd.f32 %v3627, %v3692
        %s3725 = scalar_lea.vmem %s5, 12
        %v3726 = vld [vmem:[%s3725] sm:$0x1]
        %v3728 = vlaneseq
        %v3729 = vshrl.u32 %v3728, 7
        %v3730 = vsub.s32 0, %v3729
        %v3731 = vrot.slane %v3726, %v3730
        %v3733 = vmul.f32 %v900, %v3731
        %v3734 = vmul.f32 %v901, %v3731
        %v3735 = vmul.f32 %v903, %v3731
        %v3736 = vmul.f32 %v904, %v3731
        %v3737 = vmul.f32 %v906, %v3731
        %v3738 = vmul.f32 %v907, %v3731
        %v3739 = vmul.f32 %v909, %v3731
        %v3740 = vmul.f32 %v910, %v3731
        %v3741 = vmul.f32 %v912, %v3731
        %v3742 = vmul.f32 %v913, %v3731
        %v3743 = vmul.f32 %v915, %v3731
        %v3744 = vmul.f32 %v916, %v3731
        %v3745 = vmul.f32 %v918, %v3731
        %v3746 = vmul.f32 %v919, %v3731
        %v3747 = vmul.f32 %v921, %v3731
        %v3748 = vmul.f32 %v922, %v3731
        %v3765 = vrot.slane %v3733, 5
        %v3766 = vrot.slane %v3734, 5
        %v3767 = vsel %vm3668, %v3765, %v3766
        %v3768 = vrot.slane %v3735, 5
        %v3769 = vrot.slane %v3736, 5
        %v3770 = vsel %vm3668, %v3768, %v3769
        %v3771 = vrot.slane %v3737, 5
        %v3772 = vrot.slane %v3738, 5
        %v3773 = vsel %vm3668, %v3771, %v3772
        %v3774 = vrot.slane %v3739, 5
        %v3775 = vrot.slane %v3740, 5
        %v3776 = vsel %vm3668, %v3774, %v3775
        %v3777 = vrot.slane %v3741, 5
        %v3778 = vrot.slane %v3742, 5
        %v3779 = vsel %vm3668, %v3777, %v3778
        %v3780 = vrot.slane %v3743, 5
        %v3781 = vrot.slane %v3744, 5
        %v3782 = vsel %vm3668, %v3780, %v3781
        %v3783 = vrot.slane %v3745, 5
        %v3784 = vrot.slane %v3746, 5
        %v3785 = vsel %vm3668, %v3783, %v3784
        %v3786 = vrot.slane %v3747, 5
        %v3787 = vrot.slane %v3748, 5
        %v3788 = vsel %vm3668, %v3786, %v3787
        %v3805 = vadd.f32 %v3709, %v3765
        %v3806 = vadd.f32 %v3710, %v3767
        %v3807 = vadd.f32 %v3711, %v3768
        %v3808 = vadd.f32 %v3712, %v3770
        %v3809 = vadd.f32 %v3713, %v3771
        %v3810 = vadd.f32 %v3714, %v3773
        %v3811 = vadd.f32 %v3715, %v3774
        %v3812 = vadd.f32 %v3716, %v3776
        %v3813 = vadd.f32 %v3717, %v3777
        %v3814 = vadd.f32 %v3718, %v3779
        %v3815 = vadd.f32 %v3719, %v3780
        %v3816 = vadd.f32 %v3720, %v3782
        %v3817 = vadd.f32 %v3721, %v3783
        %v3818 = vadd.f32 %v3722, %v3785
        %v3819 = vadd.f32 %v3723, %v3786
        %v3820 = vadd.f32 %v3724, %v3788
        %s3821 = scalar_lea.vmem %s5, 19
        %v3822 = vld [vmem:[%s3821] sm:$0x1]
        %v3824 = vlaneseq
        %v3825 = vshrl.u32 %v3824, 7
        %v3826 = vsub.s32 0, %v3825
        %v3827 = vrot.slane %v3822, %v3826
        %v3829 = vmul.f32 %v903, %v3827
        %v3830 = vmul.f32 %v904, %v3827
        %v3831 = vmul.f32 %v906, %v3827
        %v3832 = vmul.f32 %v907, %v3827
        %v3833 = vmul.f32 %v909, %v3827
        %v3834 = vmul.f32 %v910, %v3827
        %v3835 = vmul.f32 %v912, %v3827
        %v3836 = vmul.f32 %v913, %v3827
        %v3837 = vmul.f32 %v915, %v3827
        %v3838 = vmul.f32 %v916, %v3827
        %v3839 = vmul.f32 %v918, %v3827
        %v3840 = vmul.f32 %v919, %v3827
        %v3841 = vmul.f32 %v921, %v3827
        %v3842 = vmul.f32 %v922, %v3827
        %v3843 = vmul.f32 %v924, %v3827
        %v3844 = vmul.f32 %v925, %v3827
        %v3861 = vrot.slane %v3829, 5
        %v3862 = vrot.slane %v3830, 5
        %v3863 = vsel %vm3668, %v3861, %v3862
        %v3864 = vrot.slane %v3831, 5
        %v3865 = vrot.slane %v3832, 5
        %v3866 = vsel %vm3668, %v3864, %v3865
        %v3867 = vrot.slane %v3833, 5
        %v3868 = vrot.slane %v3834, 5
        %v3869 = vsel %vm3668, %v3867, %v3868
        %v3870 = vrot.slane %v3835, 5
        %v3871 = vrot.slane %v3836, 5
        %v3872 = vsel %vm3668, %v3870, %v3871
        %v3873 = vrot.slane %v3837, 5
        %v3874 = vrot.slane %v3838, 5
        %v3875 = vsel %vm3668, %v3873, %v3874
        %v3876 = vrot.slane %v3839, 5
        %v3877 = vrot.slane %v3840, 5
        %v3878 = vsel %vm3668, %v3876, %v3877
        %v3879 = vrot.slane %v3841, 5
        %v3880 = vrot.slane %v3842, 5
        %v3881 = vsel %vm3668, %v3879, %v3880
        %v3882 = vrot.slane %v3843, 5
        %v3883 = vrot.slane %v3844, 5
        %v3884 = vsel %vm3668, %v3882, %v3883
        %v3901 = vadd.f32 %v3805, %v3861
        %v3902 = vadd.f32 %v3806, %v3863
        %v3903 = vadd.f32 %v3807, %v3864
        %v3904 = vadd.f32 %v3808, %v3866
        %v3905 = vadd.f32 %v3809, %v3867
        %v3906 = vadd.f32 %v3810, %v3869
        %v3907 = vadd.f32 %v3811, %v3870
        %v3908 = vadd.f32 %v3812, %v3872
        %v3909 = vadd.f32 %v3813, %v3873
        %v3910 = vadd.f32 %v3814, %v3875
        %v3911 = vadd.f32 %v3815, %v3876
        %v3912 = vadd.f32 %v3816, %v3878
        %v3913 = vadd.f32 %v3817, %v3879
        %v3914 = vadd.f32 %v3818, %v3881
        %v3915 = vadd.f32 %v3819, %v3882
        %v3916 = vadd.f32 %v3820, %v3884
        %s3917 = scalar_lea.vmem %s5, 26
        %v3918 = vld [vmem:[%s3917] sm:$0x1]
        %v3920 = vlaneseq
        %v3921 = vshrl.u32 %v3920, 7
        %v3922 = vsub.s32 0, %v3921
        %v3923 = vrot.slane %v3918, %v3922
        %v3925 = vmul.f32 %v906, %v3923
        %v3926 = vmul.f32 %v907, %v3923
        %v3927 = vmul.f32 %v909, %v3923
        %v3928 = vmul.f32 %v910, %v3923
        %v3929 = vmul.f32 %v912, %v3923
        %v3930 = vmul.f32 %v913, %v3923
        %v3931 = vmul.f32 %v915, %v3923
        %v3932 = vmul.f32 %v916, %v3923
        %v3933 = vmul.f32 %v918, %v3923
        %v3934 = vmul.f32 %v919, %v3923
        %v3935 = vmul.f32 %v921, %v3923
        %v3936 = vmul.f32 %v922, %v3923
        %v3937 = vmul.f32 %v924, %v3923
        %v3938 = vmul.f32 %v925, %v3923
        %v3939 = vmul.f32 %v927, %v3923
        %v3940 = vmul.f32 %v928, %v3923
        %v3957 = vrot.slane %v3925, 5
        %v3958 = vrot.slane %v3926, 5
        %v3959 = vsel %vm3668, %v3957, %v3958
        %v3960 = vrot.slane %v3927, 5
        %v3961 = vrot.slane %v3928, 5
        %v3962 = vsel %vm3668, %v3960, %v3961
        %v3963 = vrot.slane %v3929, 5
        %v3964 = vrot.slane %v3930, 5
        %v3965 = vsel %vm3668, %v3963, %v3964
        %v3966 = vrot.slane %v3931, 5
        %v3967 = vrot.slane %v3932, 5
        %v3968 = vsel %vm3668, %v3966, %v3967
        %v3969 = vrot.slane %v3933, 5
        %v3970 = vrot.slane %v3934, 5
        %v3971 = vsel %vm3668, %v3969, %v3970
        %v3972 = vrot.slane %v3935, 5
        %v3973 = vrot.slane %v3936, 5
        %v3974 = vsel %vm3668, %v3972, %v3973
        %v3975 = vrot.slane %v3937, 5
        %v3976 = vrot.slane %v3938, 5
        %v3977 = vsel %vm3668, %v3975, %v3976
        %v3978 = vrot.slane %v3939, 5
        %v3979 = vrot.slane %v3940, 5
        %v3980 = vsel %vm3668, %v3978, %v3979
        %v3997 = vadd.f32 %v3901, %v3957
        %v3998 = vadd.f32 %v3902, %v3959
        %v3999 = vadd.f32 %v3903, %v3960
        %v4000 = vadd.f32 %v3904, %v3962
        %v4001 = vadd.f32 %v3905, %v3963
        %v4002 = vadd.f32 %v3906, %v3965
        %v4003 = vadd.f32 %v3907, %v3966
        %v4004 = vadd.f32 %v3908, %v3968
        %v4005 = vadd.f32 %v3909, %v3969
        %v4006 = vadd.f32 %v3910, %v3971
        %v4007 = vadd.f32 %v3911, %v3972
        %v4008 = vadd.f32 %v3912, %v3974
        %v4009 = vadd.f32 %v3913, %v3975
        %v4010 = vadd.f32 %v3914, %v3977
        %v4011 = vadd.f32 %v3915, %v3978
        %v4012 = vadd.f32 %v3916, %v3980
        %s4013 = scalar_lea.vmem %s5, 33
        %v4014 = vld [vmem:[%s4013] sm:$0x1]
        %v4016 = vlaneseq
        %v4017 = vshrl.u32 %v4016, 7
        %v4018 = vsub.s32 0, %v4017
        %v4019 = vrot.slane %v4014, %v4018
        %v4021 = vmul.f32 %v909, %v4019
        %v4022 = vmul.f32 %v910, %v4019
        %v4023 = vmul.f32 %v912, %v4019
        %v4024 = vmul.f32 %v913, %v4019
        %v4025 = vmul.f32 %v915, %v4019
        %v4026 = vmul.f32 %v916, %v4019
        %v4027 = vmul.f32 %v918, %v4019
        %v4028 = vmul.f32 %v919, %v4019
        %v4029 = vmul.f32 %v921, %v4019
        %v4030 = vmul.f32 %v922, %v4019
        %v4031 = vmul.f32 %v924, %v4019
        %v4032 = vmul.f32 %v925, %v4019
        %v4033 = vmul.f32 %v927, %v4019
        %v4034 = vmul.f32 %v928, %v4019
        %v4035 = vmul.f32 %v930, %v4019
        %v4036 = vmul.f32 %v931, %v4019
        %v4053 = vrot.slane %v4021, 5
        %v4054 = vrot.slane %v4022, 5
        %v4055 = vsel %vm3668, %v4053, %v4054
        %v4056 = vrot.slane %v4023, 5
        %v4057 = vrot.slane %v4024, 5
        %v4058 = vsel %vm3668, %v4056, %v4057
        %v4059 = vrot.slane %v4025, 5
        %v4060 = vrot.slane %v4026, 5
        %v4061 = vsel %vm3668, %v4059, %v4060
        %v4062 = vrot.slane %v4027, 5
        %v4063 = vrot.slane %v4028, 5
        %v4064 = vsel %vm3668, %v4062, %v4063
        %v4065 = vrot.slane %v4029, 5
        %v4066 = vrot.slane %v4030, 5
        %v4067 = vsel %vm3668, %v4065, %v4066
        %v4068 = vrot.slane %v4031, 5
        %v4069 = vrot.slane %v4032, 5
        %v4070 = vsel %vm3668, %v4068, %v4069
        %v4071 = vrot.slane %v4033, 5
        %v4072 = vrot.slane %v4034, 5
        %v4073 = vsel %vm3668, %v4071, %v4072
        %v4074 = vrot.slane %v4035, 5
        %v4075 = vrot.slane %v4036, 5
        %v4076 = vsel %vm3668, %v4074, %v4075
        %v4093 = vadd.f32 %v3997, %v4053
        %v4094 = vadd.f32 %v3998, %v4055
        %v4095 = vadd.f32 %v3999, %v4056
        %v4096 = vadd.f32 %v4000, %v4058
        %v4097 = vadd.f32 %v4001, %v4059
        %v4098 = vadd.f32 %v4002, %v4061
        %v4099 = vadd.f32 %v4003, %v4062
        %v4100 = vadd.f32 %v4004, %v4064
        %v4101 = vadd.f32 %v4005, %v4065
        %v4102 = vadd.f32 %v4006, %v4067
        %v4103 = vadd.f32 %v4007, %v4068
        %v4104 = vadd.f32 %v4008, %v4070
        %v4105 = vadd.f32 %v4009, %v4071
        %v4106 = vadd.f32 %v4010, %v4073
        %v4107 = vadd.f32 %v4011, %v4074
        %v4108 = vadd.f32 %v4012, %v4076
        %s4109 = scalar_lea.vmem %s5, 40
        %v4110 = vld [vmem:[%s4109] sm:$0x1]
        %v4112 = vlaneseq
        %v4113 = vshrl.u32 %v4112, 7
        %v4114 = vsub.s32 0, %v4113
        %v4115 = vrot.slane %v4110, %v4114
        %v4117 = vmul.f32 %v912, %v4115
        %v4118 = vmul.f32 %v913, %v4115
        %v4119 = vmul.f32 %v915, %v4115
        %v4120 = vmul.f32 %v916, %v4115
        %v4121 = vmul.f32 %v918, %v4115
        %v4122 = vmul.f32 %v919, %v4115
        %v4123 = vmul.f32 %v921, %v4115
        %v4124 = vmul.f32 %v922, %v4115
        %v4125 = vmul.f32 %v924, %v4115
        %v4126 = vmul.f32 %v925, %v4115
        %v4127 = vmul.f32 %v927, %v4115
        %v4128 = vmul.f32 %v928, %v4115
        %v4129 = vmul.f32 %v930, %v4115
        %v4130 = vmul.f32 %v931, %v4115
        %v4131 = vmul.f32 %v933, %v4115
        %v4132 = vmul.f32 %v934, %v4115
        %v4149 = vrot.slane %v4117, 5
        %v4150 = vrot.slane %v4118, 5
        %v4151 = vsel %vm3668, %v4149, %v4150
        %v4152 = vrot.slane %v4119, 5
        %v4153 = vrot.slane %v4120, 5
        %v4154 = vsel %vm3668, %v4152, %v4153
        %v4155 = vrot.slane %v4121, 5
        %v4156 = vrot.slane %v4122, 5
        %v4157 = vsel %vm3668, %v4155, %v4156
        %v4158 = vrot.slane %v4123, 5
        %v4159 = vrot.slane %v4124, 5
        %v4160 = vsel %vm3668, %v4158, %v4159
        %v4161 = vrot.slane %v4125, 5
        %v4162 = vrot.slane %v4126, 5
        %v4163 = vsel %vm3668, %v4161, %v4162
        %v4164 = vrot.slane %v4127, 5
        %v4165 = vrot.slane %v4128, 5
        %v4166 = vsel %vm3668, %v4164, %v4165
        %v4167 = vrot.slane %v4129, 5
        %v4168 = vrot.slane %v4130, 5
        %v4169 = vsel %vm3668, %v4167, %v4168
        %v4170 = vrot.slane %v4131, 5
        %v4171 = vrot.slane %v4132, 5
        %v4172 = vsel %vm3668, %v4170, %v4171
        %v4189 = vadd.f32 %v4093, %v4149
        %v4190 = vadd.f32 %v4094, %v4151
        %v4191 = vadd.f32 %v4095, %v4152
        %v4192 = vadd.f32 %v4096, %v4154
        %v4193 = vadd.f32 %v4097, %v4155
        %v4194 = vadd.f32 %v4098, %v4157
        %v4195 = vadd.f32 %v4099, %v4158
        %v4196 = vadd.f32 %v4100, %v4160
        %v4197 = vadd.f32 %v4101, %v4161
        %v4198 = vadd.f32 %v4102, %v4163
        %v4199 = vadd.f32 %v4103, %v4164
        %v4200 = vadd.f32 %v4104, %v4166
        %v4201 = vadd.f32 %v4105, %v4167
        %v4202 = vadd.f32 %v4106, %v4169
        %v4203 = vadd.f32 %v4107, %v4170
        %v4204 = vadd.f32 %v4108, %v4172
        %s4205 = scalar_lea.vmem %s5, 47
        %v4206 = vld [vmem:[%s4205] sm:$0x1]
        %v4208 = vlaneseq
        %v4209 = vshrl.u32 %v4208, 7
        %v4210 = vsub.s32 0, %v4209
        %v4211 = vrot.slane %v4206, %v4210
        %v4213 = vmul.f32 %v915, %v4211
        %v4214 = vmul.f32 %v916, %v4211
        %v4215 = vmul.f32 %v918, %v4211
        %v4216 = vmul.f32 %v919, %v4211
        %v4217 = vmul.f32 %v921, %v4211
        %v4218 = vmul.f32 %v922, %v4211
        %v4219 = vmul.f32 %v924, %v4211
        %v4220 = vmul.f32 %v925, %v4211
        %v4221 = vmul.f32 %v927, %v4211
        %v4222 = vmul.f32 %v928, %v4211
        %v4223 = vmul.f32 %v930, %v4211
        %v4224 = vmul.f32 %v931, %v4211
        %v4225 = vmul.f32 %v933, %v4211
        %v4226 = vmul.f32 %v934, %v4211
        %v4227 = vmul.f32 %v936, %v4211
        %v4228 = vmul.f32 %v937, %v4211
        %v4245 = vrot.slane %v4213, 5
        %v4246 = vrot.slane %v4214, 5
        %v4247 = vsel %vm3668, %v4245, %v4246
        %v4248 = vrot.slane %v4215, 5
        %v4249 = vrot.slane %v4216, 5
        %v4250 = vsel %vm3668, %v4248, %v4249
        %v4251 = vrot.slane %v4217, 5
        %v4252 = vrot.slane %v4218, 5
        %v4253 = vsel %vm3668, %v4251, %v4252
        %v4254 = vrot.slane %v4219, 5
        %v4255 = vrot.slane %v4220, 5
        %v4256 = vsel %vm3668, %v4254, %v4255
        %v4257 = vrot.slane %v4221, 5
        %v4258 = vrot.slane %v4222, 5
        %v4259 = vsel %vm3668, %v4257, %v4258
        %v4260 = vrot.slane %v4223, 5
        %v4261 = vrot.slane %v4224, 5
        %v4262 = vsel %vm3668, %v4260, %v4261
        %v4263 = vrot.slane %v4225, 5
        %v4264 = vrot.slane %v4226, 5
        %v4265 = vsel %vm3668, %v4263, %v4264
        %v4266 = vrot.slane %v4227, 5
        %v4267 = vrot.slane %v4228, 5
        %v4268 = vsel %vm3668, %v4266, %v4267
        %v4285 = vadd.f32 %v4189, %v4245
        %v4286 = vadd.f32 %v4190, %v4247
        %v4287 = vadd.f32 %v4191, %v4248
        %v4288 = vadd.f32 %v4192, %v4250
        %v4289 = vadd.f32 %v4193, %v4251
        %v4290 = vadd.f32 %v4194, %v4253
        %v4291 = vadd.f32 %v4195, %v4254
        %v4292 = vadd.f32 %v4196, %v4256
        %v4293 = vadd.f32 %v4197, %v4257
        %v4294 = vadd.f32 %v4198, %v4259
        %v4295 = vadd.f32 %v4199, %v4260
        %v4296 = vadd.f32 %v4200, %v4262
        %v4297 = vadd.f32 %v4201, %v4263
        %v4298 = vadd.f32 %v4202, %v4265
        %v4299 = vadd.f32 %v4203, %v4266
        %v4300 = vadd.f32 %v4204, %v4268
        %s4301 = scalar_lea.vmem %s5, 6
        %v4302 = vld [vmem:[%s4301] sm:$0x1]
        %v4304 = vlaneseq
        %v4305 = vshrl.u32 %v4304, 7
        %v4306 = vsub.s32 0, %v4305
        %v4307 = vrot.slane %v4302, %v4306
        %v4309 = vmul.f32 %v897, %v4307
        %v4310 = vmul.f32 %v898, %v4307
        %v4311 = vmul.f32 %v900, %v4307
        %v4312 = vmul.f32 %v901, %v4307
        %v4313 = vmul.f32 %v903, %v4307
        %v4314 = vmul.f32 %v904, %v4307
        %v4315 = vmul.f32 %v906, %v4307
        %v4316 = vmul.f32 %v907, %v4307
        %v4317 = vmul.f32 %v909, %v4307
        %v4318 = vmul.f32 %v910, %v4307
        %v4319 = vmul.f32 %v912, %v4307
        %v4320 = vmul.f32 %v913, %v4307
        %v4321 = vmul.f32 %v915, %v4307
        %v4322 = vmul.f32 %v916, %v4307
        %v4323 = vmul.f32 %v918, %v4307
        %v4324 = vmul.f32 %v919, %v4307
        %vm4341 = vcmask 1041408
        %v4342 = vrot.slane %v4309, 6
        %v4343 = vrot.slane %v4310, 6
        %v4344 = vsel %vm4341, %v4342, %v4343
        %v4345 = vrot.slane %v4311, 6
        %v4346 = vrot.slane %v4312, 6
        %v4347 = vsel %vm4341, %v4345, %v4346
        %v4348 = vrot.slane %v4313, 6
        %v4349 = vrot.slane %v4314, 6
        %v4350 = vsel %vm4341, %v4348, %v4349
        %v4351 = vrot.slane %v4315, 6
        %v4352 = vrot.slane %v4316, 6
        %v4353 = vsel %vm4341, %v4351, %v4352
        %v4354 = vrot.slane %v4317, 6
        %v4355 = vrot.slane %v4318, 6
        %v4356 = vsel %vm4341, %v4354, %v4355
        %v4357 = vrot.slane %v4319, 6
        %v4358 = vrot.slane %v4320, 6
        %v4359 = vsel %vm4341, %v4357, %v4358
        %v4360 = vrot.slane %v4321, 6
        %v4361 = vrot.slane %v4322, 6
        %v4362 = vsel %vm4341, %v4360, %v4361
        %v4363 = vrot.slane %v4323, 6
        %v4364 = vrot.slane %v4324, 6
        %v4365 = vsel %vm4341, %v4363, %v4364
        %v4382 = vadd.f32 %v4285, %v4342
        %v4383 = vadd.f32 %v4286, %v4344
        %v4384 = vadd.f32 %v4287, %v4345
        %v4385 = vadd.f32 %v4288, %v4347
        %v4386 = vadd.f32 %v4289, %v4348
        %v4387 = vadd.f32 %v4290, %v4350
        %v4388 = vadd.f32 %v4291, %v4351
        %v4389 = vadd.f32 %v4292, %v4353
        %v4390 = vadd.f32 %v4293, %v4354
        %v4391 = vadd.f32 %v4294, %v4356
        %v4392 = vadd.f32 %v4295, %v4357
        %v4393 = vadd.f32 %v4296, %v4359
        %v4394 = vadd.f32 %v4297, %v4360
        %v4395 = vadd.f32 %v4298, %v4362
        %v4396 = vadd.f32 %v4299, %v4363
        %v4397 = vadd.f32 %v4300, %v4365
        %s4398 = scalar_lea.vmem %s5, 13
        %v4399 = vld [vmem:[%s4398] sm:$0x1]
        %v4401 = vlaneseq
        %v4402 = vshrl.u32 %v4401, 7
        %v4403 = vsub.s32 0, %v4402
        %v4404 = vrot.slane %v4399, %v4403
        %v4406 = vmul.f32 %v900, %v4404
        %v4407 = vmul.f32 %v901, %v4404
        %v4408 = vmul.f32 %v903, %v4404
        %v4409 = vmul.f32 %v904, %v4404
        %v4410 = vmul.f32 %v906, %v4404
        %v4411 = vmul.f32 %v907, %v4404
        %v4412 = vmul.f32 %v909, %v4404
        %v4413 = vmul.f32 %v910, %v4404
        %v4414 = vmul.f32 %v912, %v4404
        %v4415 = vmul.f32 %v913, %v4404
        %v4416 = vmul.f32 %v915, %v4404
        %v4417 = vmul.f32 %v916, %v4404
        %v4418 = vmul.f32 %v918, %v4404
        %v4419 = vmul.f32 %v919, %v4404
        %v4420 = vmul.f32 %v921, %v4404
        %v4421 = vmul.f32 %v922, %v4404
        %v4438 = vrot.slane %v4406, 6
        %v4439 = vrot.slane %v4407, 6
        %v4440 = vsel %vm4341, %v4438, %v4439
        %v4441 = vrot.slane %v4408, 6
        %v4442 = vrot.slane %v4409, 6
        %v4443 = vsel %vm4341, %v4441, %v4442
        %v4444 = vrot.slane %v4410, 6
        %v4445 = vrot.slane %v4411, 6
        %v4446 = vsel %vm4341, %v4444, %v4445
        %v4447 = vrot.slane %v4412, 6
        %v4448 = vrot.slane %v4413, 6
        %v4449 = vsel %vm4341, %v4447, %v4448
        %v4450 = vrot.slane %v4414, 6
        %v4451 = vrot.slane %v4415, 6
        %v4452 = vsel %vm4341, %v4450, %v4451
        %v4453 = vrot.slane %v4416, 6
        %v4454 = vrot.slane %v4417, 6
        %v4455 = vsel %vm4341, %v4453, %v4454
        %v4456 = vrot.slane %v4418, 6
        %v4457 = vrot.slane %v4419, 6
        %v4458 = vsel %vm4341, %v4456, %v4457
        %v4459 = vrot.slane %v4420, 6
        %v4460 = vrot.slane %v4421, 6
        %v4461 = vsel %vm4341, %v4459, %v4460
        %v4478 = vadd.f32 %v4382, %v4438
        %v4479 = vadd.f32 %v4383, %v4440
        %v4480 = vadd.f32 %v4384, %v4441
        %v4481 = vadd.f32 %v4385, %v4443
        %v4482 = vadd.f32 %v4386, %v4444
        %v4483 = vadd.f32 %v4387, %v4446
        %v4484 = vadd.f32 %v4388, %v4447
        %v4485 = vadd.f32 %v4389, %v4449
        %v4486 = vadd.f32 %v4390, %v4450
        %v4487 = vadd.f32 %v4391, %v4452
        %v4488 = vadd.f32 %v4392, %v4453
        %v4489 = vadd.f32 %v4393, %v4455
        %v4490 = vadd.f32 %v4394, %v4456
        %v4491 = vadd.f32 %v4395, %v4458
        %v4492 = vadd.f32 %v4396, %v4459
        %v4493 = vadd.f32 %v4397, %v4461
        %s4494 = scalar_lea.vmem %s5, 20
        %v4495 = vld [vmem:[%s4494] sm:$0x1]
        %v4497 = vlaneseq
        %v4498 = vshrl.u32 %v4497, 7
        %v4499 = vsub.s32 0, %v4498
        %v4500 = vrot.slane %v4495, %v4499
        %v4502 = vmul.f32 %v903, %v4500
        %v4503 = vmul.f32 %v904, %v4500
        %v4504 = vmul.f32 %v906, %v4500
        %v4505 = vmul.f32 %v907, %v4500
        %v4506 = vmul.f32 %v909, %v4500
        %v4507 = vmul.f32 %v910, %v4500
        %v4508 = vmul.f32 %v912, %v4500
        %v4509 = vmul.f32 %v913, %v4500
        %v4510 = vmul.f32 %v915, %v4500
        %v4511 = vmul.f32 %v916, %v4500
        %v4512 = vmul.f32 %v918, %v4500
        %v4513 = vmul.f32 %v919, %v4500
        %v4514 = vmul.f32 %v921, %v4500
        %v4515 = vmul.f32 %v922, %v4500
        %v4516 = vmul.f32 %v924, %v4500
        %v4517 = vmul.f32 %v925, %v4500
        %v4534 = vrot.slane %v4502, 6
        %v4535 = vrot.slane %v4503, 6
        %v4536 = vsel %vm4341, %v4534, %v4535
        %v4537 = vrot.slane %v4504, 6
        %v4538 = vrot.slane %v4505, 6
        %v4539 = vsel %vm4341, %v4537, %v4538
        %v4540 = vrot.slane %v4506, 6
        %v4541 = vrot.slane %v4507, 6
        %v4542 = vsel %vm4341, %v4540, %v4541
        %v4543 = vrot.slane %v4508, 6
        %v4544 = vrot.slane %v4509, 6
        %v4545 = vsel %vm4341, %v4543, %v4544
        %v4546 = vrot.slane %v4510, 6
        %v4547 = vrot.slane %v4511, 6
        %v4548 = vsel %vm4341, %v4546, %v4547
        %v4549 = vrot.slane %v4512, 6
        %v4550 = vrot.slane %v4513, 6
        %v4551 = vsel %vm4341, %v4549, %v4550
        %v4552 = vrot.slane %v4514, 6
        %v4553 = vrot.slane %v4515, 6
        %v4554 = vsel %vm4341, %v4552, %v4553
        %v4555 = vrot.slane %v4516, 6
        %v4556 = vrot.slane %v4517, 6
        %v4557 = vsel %vm4341, %v4555, %v4556
        %v4574 = vadd.f32 %v4478, %v4534
        %v4575 = vadd.f32 %v4479, %v4536
        %v4576 = vadd.f32 %v4480, %v4537
        %v4577 = vadd.f32 %v4481, %v4539
        %v4578 = vadd.f32 %v4482, %v4540
        %v4579 = vadd.f32 %v4483, %v4542
        %v4580 = vadd.f32 %v4484, %v4543
        %v4581 = vadd.f32 %v4485, %v4545
        %v4582 = vadd.f32 %v4486, %v4546
        %v4583 = vadd.f32 %v4487, %v4548
        %v4584 = vadd.f32 %v4488, %v4549
        %v4585 = vadd.f32 %v4489, %v4551
        %v4586 = vadd.f32 %v4490, %v4552
        %v4587 = vadd.f32 %v4491, %v4554
        %v4588 = vadd.f32 %v4492, %v4555
        %v4589 = vadd.f32 %v4493, %v4557
        %s4590 = scalar_lea.vmem %s5, 27
        %v4591 = vld [vmem:[%s4590] sm:$0x1]
        %v4593 = vlaneseq
        %v4594 = vshrl.u32 %v4593, 7
        %v4595 = vsub.s32 0, %v4594
        %v4596 = vrot.slane %v4591, %v4595
        %v4598 = vmul.f32 %v906, %v4596
        %v4599 = vmul.f32 %v907, %v4596
        %v4600 = vmul.f32 %v909, %v4596
        %v4601 = vmul.f32 %v910, %v4596
        %v4602 = vmul.f32 %v912, %v4596
        %v4603 = vmul.f32 %v913, %v4596
        %v4604 = vmul.f32 %v915, %v4596
        %v4605 = vmul.f32 %v916, %v4596
        %v4606 = vmul.f32 %v918, %v4596
        %v4607 = vmul.f32 %v919, %v4596
        %v4608 = vmul.f32 %v921, %v4596
        %v4609 = vmul.f32 %v922, %v4596
        %v4610 = vmul.f32 %v924, %v4596
        %v4611 = vmul.f32 %v925, %v4596
        %v4612 = vmul.f32 %v927, %v4596
        %v4613 = vmul.f32 %v928, %v4596
        %v4630 = vrot.slane %v4598, 6
        %v4631 = vrot.slane %v4599, 6
        %v4632 = vsel %vm4341, %v4630, %v4631
        %v4633 = vrot.slane %v4600, 6
        %v4634 = vrot.slane %v4601, 6
        %v4635 = vsel %vm4341, %v4633, %v4634
        %v4636 = vrot.slane %v4602, 6
        %v4637 = vrot.slane %v4603, 6
        %v4638 = vsel %vm4341, %v4636, %v4637
        %v4639 = vrot.slane %v4604, 6
        %v4640 = vrot.slane %v4605, 6
        %v4641 = vsel %vm4341, %v4639, %v4640
        %v4642 = vrot.slane %v4606, 6
        %v4643 = vrot.slane %v4607, 6
        %v4644 = vsel %vm4341, %v4642, %v4643
        %v4645 = vrot.slane %v4608, 6
        %v4646 = vrot.slane %v4609, 6
        %v4647 = vsel %vm4341, %v4645, %v4646
        %v4648 = vrot.slane %v4610, 6
        %v4649 = vrot.slane %v4611, 6
        %v4650 = vsel %vm4341, %v4648, %v4649
        %v4651 = vrot.slane %v4612, 6
        %v4652 = vrot.slane %v4613, 6
        %v4653 = vsel %vm4341, %v4651, %v4652
        %v4670 = vadd.f32 %v4574, %v4630
        %v4671 = vadd.f32 %v4575, %v4632
        %v4672 = vadd.f32 %v4576, %v4633
        %v4673 = vadd.f32 %v4577, %v4635
        %v4674 = vadd.f32 %v4578, %v4636
        %v4675 = vadd.f32 %v4579, %v4638
        %v4676 = vadd.f32 %v4580, %v4639
        %v4677 = vadd.f32 %v4581, %v4641
        %v4678 = vadd.f32 %v4582, %v4642
        %v4679 = vadd.f32 %v4583, %v4644
        %v4680 = vadd.f32 %v4584, %v4645
        %v4681 = vadd.f32 %v4585, %v4647
        %v4682 = vadd.f32 %v4586, %v4648
        %v4683 = vadd.f32 %v4587, %v4650
        %v4684 = vadd.f32 %v4588, %v4651
        %v4685 = vadd.f32 %v4589, %v4653
        %s4686 = scalar_lea.vmem %s5, 34
        %v4687 = vld [vmem:[%s4686] sm:$0x1]
        %v4689 = vlaneseq
        %v4690 = vshrl.u32 %v4689, 7
        %v4691 = vsub.s32 0, %v4690
        %v4692 = vrot.slane %v4687, %v4691
        %v4694 = vmul.f32 %v909, %v4692
        %v4695 = vmul.f32 %v910, %v4692
        %v4696 = vmul.f32 %v912, %v4692
        %v4697 = vmul.f32 %v913, %v4692
        %v4698 = vmul.f32 %v915, %v4692
        %v4699 = vmul.f32 %v916, %v4692
        %v4700 = vmul.f32 %v918, %v4692
        %v4701 = vmul.f32 %v919, %v4692
        %v4702 = vmul.f32 %v921, %v4692
        %v4703 = vmul.f32 %v922, %v4692
        %v4704 = vmul.f32 %v924, %v4692
        %v4705 = vmul.f32 %v925, %v4692
        %v4706 = vmul.f32 %v927, %v4692
        %v4707 = vmul.f32 %v928, %v4692
        %v4708 = vmul.f32 %v930, %v4692
        %v4709 = vmul.f32 %v931, %v4692
        %v4726 = vrot.slane %v4694, 6
        %v4727 = vrot.slane %v4695, 6
        %v4728 = vsel %vm4341, %v4726, %v4727
        %v4729 = vrot.slane %v4696, 6
        %v4730 = vrot.slane %v4697, 6
        %v4731 = vsel %vm4341, %v4729, %v4730
        %v4732 = vrot.slane %v4698, 6
        %v4733 = vrot.slane %v4699, 6
        %v4734 = vsel %vm4341, %v4732, %v4733
        %v4735 = vrot.slane %v4700, 6
        %v4736 = vrot.slane %v4701, 6
        %v4737 = vsel %vm4341, %v4735, %v4736
        %v4738 = vrot.slane %v4702, 6
        %v4739 = vrot.slane %v4703, 6
        %v4740 = vsel %vm4341, %v4738, %v4739
        %v4741 = vrot.slane %v4704, 6
        %v4742 = vrot.slane %v4705, 6
        %v4743 = vsel %vm4341, %v4741, %v4742
        %v4744 = vrot.slane %v4706, 6
        %v4745 = vrot.slane %v4707, 6
        %v4746 = vsel %vm4341, %v4744, %v4745
        %v4747 = vrot.slane %v4708, 6
        %v4748 = vrot.slane %v4709, 6
        %v4749 = vsel %vm4341, %v4747, %v4748
        %v4766 = vadd.f32 %v4670, %v4726
        %v4767 = vadd.f32 %v4671, %v4728
        %v4768 = vadd.f32 %v4672, %v4729
        %v4769 = vadd.f32 %v4673, %v4731
        %v4770 = vadd.f32 %v4674, %v4732
        %v4771 = vadd.f32 %v4675, %v4734
        %v4772 = vadd.f32 %v4676, %v4735
        %v4773 = vadd.f32 %v4677, %v4737
        %v4774 = vadd.f32 %v4678, %v4738
        %v4775 = vadd.f32 %v4679, %v4740
        %v4776 = vadd.f32 %v4680, %v4741
        %v4777 = vadd.f32 %v4681, %v4743
        %v4778 = vadd.f32 %v4682, %v4744
        %v4779 = vadd.f32 %v4683, %v4746
        %v4780 = vadd.f32 %v4684, %v4747
        %v4781 = vadd.f32 %v4685, %v4749
        %s4782 = scalar_lea.vmem %s5, 41
        %v4783 = vld [vmem:[%s4782] sm:$0x1]
        %v4785 = vlaneseq
        %v4786 = vshrl.u32 %v4785, 7
        %v4787 = vsub.s32 0, %v4786
        %v4788 = vrot.slane %v4783, %v4787
        %v4790 = vmul.f32 %v912, %v4788
        %v4791 = vmul.f32 %v913, %v4788
        %v4792 = vmul.f32 %v915, %v4788
        %v4793 = vmul.f32 %v916, %v4788
        %v4794 = vmul.f32 %v918, %v4788
        %v4795 = vmul.f32 %v919, %v4788
        %v4796 = vmul.f32 %v921, %v4788
        %v4797 = vmul.f32 %v922, %v4788
        %v4798 = vmul.f32 %v924, %v4788
        %v4799 = vmul.f32 %v925, %v4788
        %v4800 = vmul.f32 %v927, %v4788
        %v4801 = vmul.f32 %v928, %v4788
        %v4802 = vmul.f32 %v930, %v4788
        %v4803 = vmul.f32 %v931, %v4788
        %v4804 = vmul.f32 %v933, %v4788
        %v4805 = vmul.f32 %v934, %v4788
        %v4822 = vrot.slane %v4790, 6
        %v4823 = vrot.slane %v4791, 6
        %v4824 = vsel %vm4341, %v4822, %v4823
        %v4825 = vrot.slane %v4792, 6
        %v4826 = vrot.slane %v4793, 6
        %v4827 = vsel %vm4341, %v4825, %v4826
        %v4828 = vrot.slane %v4794, 6
        %v4829 = vrot.slane %v4795, 6
        %v4830 = vsel %vm4341, %v4828, %v4829
        %v4831 = vrot.slane %v4796, 6
        %v4832 = vrot.slane %v4797, 6
        %v4833 = vsel %vm4341, %v4831, %v4832
        %v4834 = vrot.slane %v4798, 6
        %v4835 = vrot.slane %v4799, 6
        %v4836 = vsel %vm4341, %v4834, %v4835
        %v4837 = vrot.slane %v4800, 6
        %v4838 = vrot.slane %v4801, 6
        %v4839 = vsel %vm4341, %v4837, %v4838
        %v4840 = vrot.slane %v4802, 6
        %v4841 = vrot.slane %v4803, 6
        %v4842 = vsel %vm4341, %v4840, %v4841
        %v4843 = vrot.slane %v4804, 6
        %v4844 = vrot.slane %v4805, 6
        %v4845 = vsel %vm4341, %v4843, %v4844
        %v4862 = vadd.f32 %v4766, %v4822
        %v4863 = vadd.f32 %v4767, %v4824
        %v4864 = vadd.f32 %v4768, %v4825
        %v4865 = vadd.f32 %v4769, %v4827
        %v4866 = vadd.f32 %v4770, %v4828
        %v4867 = vadd.f32 %v4771, %v4830
        %v4868 = vadd.f32 %v4772, %v4831
        %v4869 = vadd.f32 %v4773, %v4833
        %v4870 = vadd.f32 %v4774, %v4834
        %v4871 = vadd.f32 %v4775, %v4836
        %v4872 = vadd.f32 %v4776, %v4837
        %v4873 = vadd.f32 %v4777, %v4839
        %v4874 = vadd.f32 %v4778, %v4840
        %v4875 = vadd.f32 %v4779, %v4842
        %v4876 = vadd.f32 %v4780, %v4843
        %v4877 = vadd.f32 %v4781, %v4845
        %s4878 = scalar_lea.vmem %s5, 48
        %v4879 = vld [vmem:[%s4878] sm:$0x1]
        %v4881 = vlaneseq
        %v4882 = vshrl.u32 %v4881, 7
        %v4883 = vsub.s32 0, %v4882
        %v4884 = vrot.slane %v4879, %v4883
        %v4886 = vmul.f32 %v915, %v4884
        %v4887 = vmul.f32 %v916, %v4884
        %v4888 = vmul.f32 %v918, %v4884
        %v4889 = vmul.f32 %v919, %v4884
        %v4890 = vmul.f32 %v921, %v4884
        %v4891 = vmul.f32 %v922, %v4884
        %v4892 = vmul.f32 %v924, %v4884
        %v4893 = vmul.f32 %v925, %v4884
        %v4894 = vmul.f32 %v927, %v4884
        %v4895 = vmul.f32 %v928, %v4884
        %v4896 = vmul.f32 %v930, %v4884
        %v4897 = vmul.f32 %v931, %v4884
        %v4898 = vmul.f32 %v933, %v4884
        %v4899 = vmul.f32 %v934, %v4884
        %v4900 = vmul.f32 %v936, %v4884
        %v4901 = vmul.f32 %v937, %v4884
        %v4918 = vrot.slane %v4886, 6
        %v4919 = vrot.slane %v4887, 6
        %v4920 = vsel %vm4341, %v4918, %v4919
        %v4921 = vrot.slane %v4888, 6
        %v4922 = vrot.slane %v4889, 6
        %v4923 = vsel %vm4341, %v4921, %v4922
        %v4924 = vrot.slane %v4890, 6
        %v4925 = vrot.slane %v4891, 6
        %v4926 = vsel %vm4341, %v4924, %v4925
        %v4927 = vrot.slane %v4892, 6
        %v4928 = vrot.slane %v4893, 6
        %v4929 = vsel %vm4341, %v4927, %v4928
        %v4930 = vrot.slane %v4894, 6
        %v4931 = vrot.slane %v4895, 6
        %v4932 = vsel %vm4341, %v4930, %v4931
        %v4933 = vrot.slane %v4896, 6
        %v4934 = vrot.slane %v4897, 6
        %v4935 = vsel %vm4341, %v4933, %v4934
        %v4936 = vrot.slane %v4898, 6
        %v4937 = vrot.slane %v4899, 6
        %v4938 = vsel %vm4341, %v4936, %v4937
        %v4939 = vrot.slane %v4900, 6
        %v4940 = vrot.slane %v4901, 6
        %v4941 = vsel %vm4341, %v4939, %v4940
        %v4958 = vadd.f32 %v4862, %v4918
        %v4959 = vadd.f32 %v4863, %v4920
        %v4960 = vadd.f32 %v4864, %v4921
        %v4961 = vadd.f32 %v4865, %v4923
        %v4962 = vadd.f32 %v4866, %v4924
        %v4963 = vadd.f32 %v4867, %v4926
        %v4964 = vadd.f32 %v4868, %v4927
        %v4965 = vadd.f32 %v4869, %v4929
        %v4966 = vadd.f32 %v4870, %v4930
        %v4967 = vadd.f32 %v4871, %v4932
        %v4968 = vadd.f32 %v4872, %v4933
        %v4969 = vadd.f32 %v4873, %v4935
        %v4970 = vadd.f32 %v4874, %v4936
        %v4971 = vadd.f32 %v4875, %v4938
        %v4972 = vadd.f32 %v4876, %v4939
        %v4973 = vadd.f32 %v4877, %v4941
        %v4974 = vld [vmem:[%s6] sm:$0x1]
        %v4976 = vlaneseq
        %v4977 = vshrl.u32 %v4976, 7
        %v4978 = vsub.s32 0, %v4977
        %v4979 = vrot.slane %v4974, %v4978
        %v4981 = vadd.f32 %v4958, %v4979
        %v4982 = vadd.f32 %v4959, %v4979
        %v4983 = vadd.f32 %v4960, %v4979
        %v4984 = vadd.f32 %v4961, %v4979
        %v4985 = vadd.f32 %v4962, %v4979
        %v4986 = vadd.f32 %v4963, %v4979
        %v4987 = vadd.f32 %v4964, %v4979
        %v4988 = vadd.f32 %v4965, %v4979
        %v4989 = vadd.f32 %v4966, %v4979
        %v4990 = vadd.f32 %v4967, %v4979
        %v4991 = vadd.f32 %v4968, %v4979
        %v4992 = vadd.f32 %v4969, %v4979
        %v4993 = vadd.f32 %v4970, %v4979
        %v4994 = vadd.f32 %v4971, %v4979
        %v4995 = vadd.f32 %v4972, %v4979
        %v4996 = vadd.f32 %v4973, %v4979
        %v5013 = vrot.slane %v4981, 5
        %v5014 = vrot.slane %v4982, 5
        %v5015 = vsel %vm3668, %v5013, %v5014
        %v5016 = vrot.slane %v4983, 5
        %v5017 = vrot.slane %v4984, 5
        %v5018 = vsel %vm3668, %v5016, %v5017
        %v5019 = vrot.slane %v4985, 5
        %v5020 = vrot.slane %v4986, 5
        %v5021 = vsel %vm3668, %v5019, %v5020
        %v5022 = vrot.slane %v4987, 5
        %v5023 = vrot.slane %v4988, 5
        %v5024 = vsel %vm3668, %v5022, %v5023
        %v5025 = vrot.slane %v4989, 5
        %v5026 = vrot.slane %v4990, 5
        %v5027 = vsel %vm3668, %v5025, %v5026
        %v5028 = vrot.slane %v4991, 5
        %v5029 = vrot.slane %v4992, 5
        %v5030 = vsel %vm3668, %v5028, %v5029
        %v5031 = vrot.slane %v4993, 5
        %v5032 = vrot.slane %v4994, 5
        %v5033 = vsel %vm3668, %v5031, %v5032
        %v5034 = vrot.slane %v4995, 5
        %v5035 = vrot.slane %v4996, 5
        %v5036 = vsel %vm3668, %v5034, %v5035
        %v5045 = vld [vmem:[%s7] sm:$0x1]
        %v5046 = vld [vmem:[%s8] sm:$0x1]
        %5047 = vadd.xlane.f32.xlu0 %v5015
        %v5048 = vpop.xlane.xlu0 %5047
        %5049 = vadd.xlane.f32.xlu0 %v5018
        %v5050 = vpop.xlane.xlu0 %5049
        %5051 = vadd.xlane.f32.xlu0 %v5021
        %v5052 = vpop.xlane.xlu0 %5051
        %5053 = vadd.xlane.f32.xlu0 %v5024
        %v5054 = vpop.xlane.xlu0 %5053
        %5055 = vadd.xlane.f32.xlu0 %v5027
        %v5056 = vpop.xlane.xlu0 %5055
        %5057 = vadd.xlane.f32.xlu0 %v5030
        %v5058 = vpop.xlane.xlu0 %5057
        %5059 = vadd.xlane.f32.xlu0 %v5033
        %v5060 = vpop.xlane.xlu0 %5059
        %5061 = vadd.xlane.f32.xlu0 %v5036
        %v5062 = vpop.xlane.xlu0 %5061
        %v5063 = vmul.f32 %v5048, %v729
        %v5064 = vmul.f32 %v5050, %v729
        %v5065 = vmul.f32 %v5052, %v729
        %v5066 = vmul.f32 %v5054, %v729
        %v5067 = vmul.f32 %v5056, %v729
        %v5068 = vmul.f32 %v5058, %v729
        %v5069 = vmul.f32 %v5060, %v729
        %v5070 = vmul.f32 %v5062, %v729
        %v5071 = vsub.f32 %v5015, %v5063
        %v5072 = vsub.f32 %v5018, %v5064
        %v5073 = vsub.f32 %v5021, %v5065
        %v5074 = vsub.f32 %v5024, %v5066
        %v5075 = vsub.f32 %v5027, %v5067
        %v5076 = vsub.f32 %v5030, %v5068
        %v5077 = vsub.f32 %v5033, %v5069
        %v5078 = vsub.f32 %v5036, %v5070
        %v5079 = vmul.f32 %v5071, %v5071
        %v5080 = vmul.f32 %v5072, %v5072
        %v5081 = vmul.f32 %v5073, %v5073
        %v5082 = vmul.f32 %v5074, %v5074
        %v5083 = vmul.f32 %v5075, %v5075
        %v5084 = vmul.f32 %v5076, %v5076
        %v5085 = vmul.f32 %v5077, %v5077
        %v5086 = vmul.f32 %v5078, %v5078
        %5087 = vadd.xlane.f32.xlu0 %v5079
        %v5088 = vpop.xlane.xlu0 %5087
        %5089 = vadd.xlane.f32.xlu0 %v5080
        %v5090 = vpop.xlane.xlu0 %5089
        %5091 = vadd.xlane.f32.xlu0 %v5081
        %v5092 = vpop.xlane.xlu0 %5091
        %5093 = vadd.xlane.f32.xlu0 %v5082
        %v5094 = vpop.xlane.xlu0 %5093
        %5095 = vadd.xlane.f32.xlu0 %v5083
        %v5096 = vpop.xlane.xlu0 %5095
        %5097 = vadd.xlane.f32.xlu0 %v5084
        %v5098 = vpop.xlane.xlu0 %5097
        %5099 = vadd.xlane.f32.xlu0 %v5085
        %v5100 = vpop.xlane.xlu0 %5099
        %5101 = vadd.xlane.f32.xlu0 %v5086
        %v5102 = vpop.xlane.xlu0 %5101
        %v5103 = vmul.f32 %v5088, %v729
        %v5104 = vmul.f32 %v5090, %v729
        %v5105 = vmul.f32 %v5092, %v729
        %v5106 = vmul.f32 %v5094, %v729
        %v5107 = vmul.f32 %v5096, %v729
        %v5108 = vmul.f32 %v5098, %v729
        %v5109 = vmul.f32 %v5100, %v729
        %v5110 = vmul.f32 %v5102, %v729
        %v5111 = vadd.f32 %v5103, 1e-06
        %v5112 = vadd.f32 %v5104, 1e-06
        %v5113 = vadd.f32 %v5105, 1e-06
        %v5114 = vadd.f32 %v5106, 1e-06
        %v5115 = vadd.f32 %v5107, 1e-06
        %v5116 = vadd.f32 %v5108, 1e-06
        %v5117 = vadd.f32 %v5109, 1e-06
        %v5118 = vadd.f32 %v5110, 1e-06
        %v5119 = vrsqrt.pop %v5111
        %v5120 = vrsqrt.pop %v5112
        %v5121 = vrsqrt.pop %v5113
        %v5122 = vrsqrt.pop %v5114
        %v5123 = vrsqrt.pop %v5115
        %v5124 = vrsqrt.pop %v5116
        %v5125 = vrsqrt.pop %v5117
        %v5126 = vrsqrt.pop %v5118
        %v5127 = vmul.f32 %v5071, %v5119
        %v5128 = vmul.f32 %v5072, %v5120
        %v5129 = vmul.f32 %v5073, %v5121
        %v5130 = vmul.f32 %v5074, %v5122
        %v5131 = vmul.f32 %v5075, %v5123
        %v5132 = vmul.f32 %v5076, %v5124
        %v5133 = vmul.f32 %v5077, %v5125
        %v5134 = vmul.f32 %v5078, %v5126
        %v5136 = vlaneseq
        %v5137 = vshrl.u32 %v5136, 7
        %v5138 = vsub.s32 0, %v5137
        %v5139 = vrot.slane %v5045, %v5138
        %v5141 = vmul.f32 %v5127, %v5139
        %v5142 = vmul.f32 %v5128, %v5139
        %v5143 = vmul.f32 %v5129, %v5139
        %v5144 = vmul.f32 %v5130, %v5139
        %v5145 = vmul.f32 %v5131, %v5139
        %v5146 = vmul.f32 %v5132, %v5139
        %v5147 = vmul.f32 %v5133, %v5139
        %v5148 = vmul.f32 %v5134, %v5139
        %v5150 = vlaneseq
        %v5151 = vshrl.u32 %v5150, 7
        %v5152 = vsub.s32 0, %v5151
        %v5153 = vrot.slane %v5046, %v5152
        %v5155 = vadd.f32 %v5141, %v5153
        %v5156 = vadd.f32 %v5142, %v5153
        %v5157 = vadd.f32 %v5143, %v5153
        %v5158 = vadd.f32 %v5144, %v5153
        %v5159 = vadd.f32 %v5145, %v5153
        %v5160 = vadd.f32 %v5146, %v5153
        %v5161 = vadd.f32 %v5147, %v5153
        %v5162 = vadd.f32 %v5148, %v5153
        %v5163 = vpack.c.bf16 %v5156, %v5155
        %v5164 = vpack.c.bf16 %v5158, %v5157
        %v5165 = vpack.c.bf16 %v5160, %v5159
        %v5166 = vpack.c.bf16 %v5162, %v5161
        %v5167 = vld [vmem:[%s9] sm:$0xff]
        %v5168 = vld [vmem:[%s9 + $0x8] sm:$0xff]
        %v5169 = vld [vmem:[%s9 + $0x10] sm:$0xff]
        %v5170 = vld [vmem:[%s9 + $0x18] sm:$0xff]
        %v5171 = vld [vmem:[%s9 + $0x20] sm:$0xff]
        %v5172 = vld [vmem:[%s9 + $0x28] sm:$0xff]
        %v5173 = vld [vmem:[%s9 + $0x30] sm:$0xff]
        %v5174 = vld [vmem:[%s9 + $0x38] sm:$0xff]
        %v5175 = vld [vmem:[%s9 + $0x40] sm:$0xff]
        %v5176 = vld [vmem:[%s9 + $0x48] sm:$0xff]
        %v5177 = vld [vmem:[%s9 + $0x50] sm:$0xff]
        %v5178 = vld [vmem:[%s9 + $0x58] sm:$0xff]
        %v5179 = vld [vmem:[%s9 + $0x60] sm:$0xff]
        %v5180 = vld [vmem:[%s9 + $0x68] sm:$0xff]
        %v5181 = vld [vmem:[%s9 + $0x70] sm:$0xff]
        %v5182 = vld [vmem:[%s9 + $0x78] sm:$0xff]
        %v5183 = vld [vmem:[%s9 + $0x80] sm:$0xff]
        %v5184 = vld [vmem:[%s9 + $0x88] sm:$0xff]
        %v5185 = vld [vmem:[%s9 + $0x90] sm:$0xff]
        %v5186 = vld [vmem:[%s9 + $0x98] sm:$0xff]
        %v5187 = vld [vmem:[%s9 + $0xa0] sm:$0xff]
        %v5188 = vld [vmem:[%s9 + $0xa8] sm:$0xff]
        %v5189 = vld [vmem:[%s9 + $0xb0] sm:$0xff]
        %v5190 = vld [vmem:[%s9 + $0xb8] sm:$0xff]
        %v5191 = vld [vmem:[%s9 + $0xc0] sm:$0xff]
        %v5192 = vld [vmem:[%s9 + $0xc8] sm:$0xff]
        %v5193 = vld [vmem:[%s9 + $0xd0] sm:$0xff]
        %v5194 = vld [vmem:[%s9 + $0xd8] sm:$0xff]
        %v5195 = vld [vmem:[%s9 + $0xe0] sm:$0xff]
        %v5196 = vld [vmem:[%s9 + $0xe8] sm:$0xff]
        %v5197 = vld [vmem:[%s9 + $0xf0] sm:$0xff]
        %v5198 = vld [vmem:[%s9 + $0xf8] sm:$0xff]
        %v5199 = vld [vmem:[%s10] sm:$0xf]
        %v5201 = vlaneseq
        %v5202 = vshrl.u32 %v5201, 7
        %v5203 = vsub.s32 0, %v5202
        %v5204 = vrot.slane %v5199, %v5203
        %v5205 = vlaneseq
        %v5206 = vshrl.u32 %v5205, 7
        %v5207 = vsub.s32 1, %v5206
        %v5208 = vrot.slane %v5199, %v5207
        %v5209 = vlaneseq
        %v5210 = vshrl.u32 %v5209, 7
        %v5211 = vsub.s32 2, %v5210
        %v5212 = vrot.slane %v5199, %v5211
        %v5213 = vlaneseq
        %v5214 = vshrl.u32 %v5213, 7
        %v5215 = vsub.s32 3, %v5214
        %v5216 = vrot.slane %v5199, %v5215
        %v5253 = vunpack.c.l.b16 %v5167
        %v5254 = vunpack.c.h.b16 %v5167
        %v5255 = vunpack.c.l.b16 %v5168
        %v5256 = vunpack.c.h.b16 %v5168
        %v5257 = vunpack.c.l.b16 %v5169
        %v5258 = vunpack.c.h.b16 %v5169
        %v5259 = vunpack.c.l.b16 %v5170
        %v5260 = vunpack.c.h.b16 %v5170
        %v5261 = vunpack.c.l.b16 %v5171
        %v5262 = vunpack.c.h.b16 %v5171
        %v5263 = vunpack.c.l.b16 %v5172
        %v5264 = vunpack.c.h.b16 %v5172
        %v5265 = vunpack.c.l.b16 %v5173
        %v5266 = vunpack.c.h.b16 %v5173
        %v5267 = vunpack.c.l.b16 %v5174
        %v5268 = vunpack.c.h.b16 %v5174
        %v5269 = vunpack.c.l.b16 %v5175
        %v5270 = vunpack.c.h.b16 %v5175
        %v5271 = vunpack.c.l.b16 %v5176
        %v5272 = vunpack.c.h.b16 %v5176
        %v5273 = vunpack.c.l.b16 %v5177
        %v5274 = vunpack.c.h.b16 %v5177
        %v5275 = vunpack.c.l.b16 %v5178
        %v5276 = vunpack.c.h.b16 %v5178
        %v5277 = vunpack.c.l.b16 %v5179
        %v5278 = vunpack.c.h.b16 %v5179
        %v5279 = vunpack.c.l.b16 %v5180
        %v5280 = vunpack.c.h.b16 %v5180
        %v5281 = vunpack.c.l.b16 %v5181
        %v5282 = vunpack.c.h.b16 %v5181
        %v5283 = vunpack.c.l.b16 %v5182
        %v5284 = vunpack.c.h.b16 %v5182
        %v5285 = vunpack.c.l.b16 %v5183
        %v5286 = vunpack.c.h.b16 %v5183
        %v5287 = vunpack.c.l.b16 %v5184
        %v5288 = vunpack.c.h.b16 %v5184
        %v5289 = vunpack.c.l.b16 %v5185
        %v5290 = vunpack.c.h.b16 %v5185
        %v5291 = vunpack.c.l.b16 %v5186
        %v5292 = vunpack.c.h.b16 %v5186
        %v5293 = vunpack.c.l.b16 %v5187
        %v5294 = vunpack.c.h.b16 %v5187
        %v5295 = vunpack.c.l.b16 %v5188
        %v5296 = vunpack.c.h.b16 %v5188
        %v5297 = vunpack.c.l.b16 %v5189
        %v5298 = vunpack.c.h.b16 %v5189
        %v5299 = vunpack.c.l.b16 %v5190
        %v5300 = vunpack.c.h.b16 %v5190
        %v5301 = vunpack.c.l.b16 %v5191
        %v5302 = vunpack.c.h.b16 %v5191
        %v5303 = vunpack.c.l.b16 %v5192
        %v5304 = vunpack.c.h.b16 %v5192
        %v5305 = vunpack.c.l.b16 %v5193
        %v5306 = vunpack.c.h.b16 %v5193
        %v5307 = vunpack.c.l.b16 %v5194
        %v5308 = vunpack.c.h.b16 %v5194
        %v5309 = vunpack.c.l.b16 %v5195
        %v5310 = vunpack.c.h.b16 %v5195
        %v5311 = vunpack.c.l.b16 %v5196
        %v5312 = vunpack.c.h.b16 %v5196
        %v5313 = vunpack.c.l.b16 %v5197
        %v5314 = vunpack.c.h.b16 %v5197
        %v5315 = vunpack.c.l.b16 %v5198
        %v5316 = vunpack.c.h.b16 %v5198
        %v5317 = vpack.c.b16 %v5257, %v5253
        %v5318 = vpack.c.b16 %v5258, %v5254
        %v5319 = vpack.c.b16 %v5259, %v5255
        %v5320 = vpack.c.b16 %v5260, %v5256
        %v5321 = vpack.c.b16 %v5265, %v5261
        %v5322 = vpack.c.b16 %v5266, %v5262
        %v5323 = vpack.c.b16 %v5267, %v5263
        %v5324 = vpack.c.b16 %v5268, %v5264
        %v5325 = vpack.c.b16 %v5273, %v5269
        %v5326 = vpack.c.b16 %v5274, %v5270
        %v5327 = vpack.c.b16 %v5275, %v5271
        %v5328 = vpack.c.b16 %v5276, %v5272
        %v5329 = vpack.c.b16 %v5281, %v5277
        %v5330 = vpack.c.b16 %v5282, %v5278
        %v5331 = vpack.c.b16 %v5283, %v5279
        %v5332 = vpack.c.b16 %v5284, %v5280
        %v5333 = vpack.c.b16 %v5289, %v5285
        %v5334 = vpack.c.b16 %v5290, %v5286
        %v5335 = vpack.c.b16 %v5291, %v5287
        %v5336 = vpack.c.b16 %v5292, %v5288
        %v5337 = vpack.c.b16 %v5297, %v5293
        %v5338 = vpack.c.b16 %v5298, %v5294
        %v5339 = vpack.c.b16 %v5299, %v5295
        %v5340 = vpack.c.b16 %v5300, %v5296
        %v5341 = vpack.c.b16 %v5305, %v5301
        %v5342 = vpack.c.b16 %v5306, %v5302
        %v5343 = vpack.c.b16 %v5307, %v5303
        %v5344 = vpack.c.b16 %v5308, %v5304
        %v5345 = vpack.c.b16 %v5313, %v5309
        %v5346 = vpack.c.b16 %v5314, %v5310
        %v5347 = vpack.c.b16 %v5315, %v5311
        %v5348 = vpack.c.b16 %v5316, %v5312
        %5381 = vmatprep.subr.bf16.mxu0 %v5318
        %5382 = vmatpush1.bf16.msra.mxu0 %v5317
        %5383 = vmatprep.subr.bf16.mxu0 %v5322
        %5384 = vmatpush1.bf16.msra.mxu0 %v5321
        %5385 = vmatprep.subr.bf16.mxu0 %v5326
        %5386 = vmatpush1.bf16.msra.mxu0 %v5325
        %5387 = vmatprep.subr.bf16.mxu0 %v5330
        %5388 = vmatpush1.bf16.msra.mxu0 %v5329
        %5389 = vmatprep.subr.bf16.mxu0 %v5334
        %5390 = vmatpush1.bf16.msra.mxu0 %v5333
        %5391 = vmatprep.subr.bf16.mxu0 %v5338
        %5392 = vmatpush1.bf16.msra.mxu0 %v5337
        %5393 = vmatprep.subr.bf16.mxu0 %v5342
        %5394 = vmatpush1.bf16.msra.mxu0 %v5341
        %5395 = vmatprep.subr.bf16.mxu0 %v5346
        %5396 = vmatpush1.bf16.msra.mxu0 %v5345
        %5397 = vmatprep.subr.bf16.mxu0 0
        %5398 = vmatpush1.bf16.msra.mxu0 0
        %5399 = vmatprep.subr.bf16.mxu0 0
        %5400 = vmatpush1.bf16.msra.mxu0 0
        %5401 = vmatprep.subr.bf16.mxu0 0
        %5402 = vmatpush1.bf16.msra.mxu0 0
        %5403 = vmatprep.subr.bf16.mxu0 0
        %5404 = vmatpush1.bf16.msra.mxu0 0
        %5405 = vmatprep.subr.bf16.mxu0 0
        %5406 = vmatpush1.bf16.msra.mxu0 0
        %5407 = vmatprep.subr.bf16.mxu0 0
        %5408 = vmatpush1.bf16.msra.mxu0 0
        %5409 = vmatprep.subr.bf16.mxu0 0
        %5410 = vmatpush1.bf16.msra.mxu0 0
        %5411 = vmatprep.subr.bf16.mxu0 0
        %5412 = vmatpush1.bf16.msra.mxu0 0
        %5413 = vmatprep.mubr.bf16.mxu0 0
        %5414 = vmatmul.mubr.bf16.gmra.mrb[0].mxu0 %v5163
        %v5415 = vpop.f32.mrb[0].mxu0
        %v5416 = vadd.f32 %v5204, %v5415
        %v5417 = vpop.f32.mrb[0].mxu0
        %v5418 = vadd.f32 %v5208, %v5417
        %v5419 = vpop.f32.mrb[0].mxu0
        %v5420 = vadd.f32 %v5204, %v5419
        %v5421 = vpop.f32.mrb[0].mxu0
        %v5422 = vadd.f32 %v5208, %v5421
        %5423 = vmatprep.mubr.bf16.mxu0 0
        %5424 = vmatmul.mubr.bf16.gmra.mrb[0].mxu0 %v5164
        %v5425 = vpop.f32.mrb[0].mxu0
        %v5426 = vadd.f32 %v5204, %v5425
        %v5427 = vpop.f32.mrb[0].mxu0
        %v5428 = vadd.f32 %v5208, %v5427
        %v5429 = vpop.f32.mrb[0].mxu0
        %v5430 = vadd.f32 %v5204, %v5429
        %v5431 = vpop.f32.mrb[0].mxu0
        %v5432 = vadd.f32 %v5208, %v5431
        %5433 = vmatprep.mubr.bf16.mxu0 0
        %5434 = vmatmul.mubr.bf16.gmra.mrb[0].mxu0 %v5165
        %v5435 = vpop.f32.mrb[0].mxu0
        %v5436 = vadd.f32 %v5204, %v5435
        %v5437 = vpop.f32.mrb[0].mxu0
        %v5438 = vadd.f32 %v5208, %v5437
        %v5439 = vpop.f32.mrb[0].mxu0
        %v5440 = vadd.f32 %v5204, %v5439
        %v5441 = vpop.f32.mrb[0].mxu0
        %v5442 = vadd.f32 %v5208, %v5441
        %5443 = vmatprep.mubr.bf16.mxu0 0
        %5444 = vmatmul.mubr.bf16.gmra.mrb[0].mxu0 %v5166
        %v5445 = vpop.f32.mrb[0].mxu0
        %v5446 = vadd.f32 %v5204, %v5445
        %v5447 = vpop.f32.mrb[0].mxu0
        %v5448 = vadd.f32 %v5208, %v5447
        %v5449 = vpop.f32.mrb[0].mxu0
        %v5450 = vadd.f32 %v5204, %v5449
        %v5451 = vpop.f32.mrb[0].mxu0
        %v5452 = vadd.f32 %v5208, %v5451
        %5453 = vdwg.mxu0
        %5454 = vmatprep.subr.bf16.mxu0 %v5320
        %5455 = vmatpush1.bf16.msra.mxu0 %v5319
        %5456 = vmatprep.subr.bf16.mxu0 %v5324
        %5457 = vmatpush1.bf16.msra.mxu0 %v5323
        %5458 = vmatprep.subr.bf16.mxu0 %v5328
        %5459 = vmatpush1.bf16.msra.mxu0 %v5327
        %5460 = vmatprep.subr.bf16.mxu0 %v5332
        %5461 = vmatpush1.bf16.msra.mxu0 %v5331
        %5462 = vmatprep.subr.bf16.mxu0 %v5336
        %5463 = vmatpush1.bf16.msra.mxu0 %v5335
        %5464 = vmatprep.subr.bf16.mxu0 %v5340
        %5465 = vmatpush1.bf16.msra.mxu0 %v5339
        %5466 = vmatprep.subr.bf16.mxu0 %v5344
        %5467 = vmatpush1.bf16.msra.mxu0 %v5343
        %5468 = vmatprep.subr.bf16.mxu0 %v5348
        %5469 = vmatpush1.bf16.msra.mxu0 %v5347
        %5470 = vmatprep.subr.bf16.mxu0 0
        %5471 = vmatpush1.bf16.msra.mxu0 0
        %5472 = vmatprep.subr.bf16.mxu0 0
        %5473 = vmatpush1.bf16.msra.mxu0 0
        %5474 = vmatprep.subr.bf16.mxu0 0
        %5475 = vmatpush1.bf16.msra.mxu0 0
        %5476 = vmatprep.subr.bf16.mxu0 0
        %5477 = vmatpush1.bf16.msra.mxu0 0
        %5478 = vmatprep.subr.bf16.mxu0 0
        %5479 = vmatpush1.bf16.msra.mxu0 0
        %5480 = vmatprep.subr.bf16.mxu0 0
        %5481 = vmatpush1.bf16.msra.mxu0 0
        %5482 = vmatprep.subr.bf16.mxu0 0
        %5483 = vmatpush1.bf16.msra.mxu0 0
        %5484 = vmatprep.subr.bf16.mxu0 0
        %5485 = vmatpush1.bf16.msra.mxu0 0
        %5486 = vmatprep.mubr.bf16.mxu0 0
        %5487 = vmatmul.mubr.bf16.gmra.mrb[0].mxu0 %v5163
        %v5488 = vpop.f32.mrb[0].mxu0
        %v5489 = vadd.f32 %v5212, %v5488
        %v5490 = vpop.f32.mrb[0].mxu0
        %v5491 = vadd.f32 %v5216, %v5490
        %v5492 = vpop.f32.mrb[0].mxu0
        %v5493 = vadd.f32 %v5212, %v5492
        %v5494 = vpop.f32.mrb[0].mxu0
        %v5495 = vadd.f32 %v5216, %v5494
        %5496 = vmatprep.mubr.bf16.mxu0 0
        %5497 = vmatmul.mubr.bf16.gmra.mrb[0].mxu0 %v5164
        %v5498 = vpop.f32.mrb[0].mxu0
        %v5499 = vadd.f32 %v5212, %v5498
        %v5500 = vpop.f32.mrb[0].mxu0
        %v5501 = vadd.f32 %v5216, %v5500
        %v5502 = vpop.f32.mrb[0].mxu0
        %v5503 = vadd.f32 %v5212, %v5502
        %v5504 = vpop.f32.mrb[0].mxu0
        %v5505 = vadd.f32 %v5216, %v5504
        %5506 = vmatprep.mubr.bf16.mxu0 0
        %5507 = vmatmul.mubr.bf16.gmra.mrb[0].mxu0 %v5165
        %v5508 = vpop.f32.mrb[0].mxu0
        %v5509 = vadd.f32 %v5212, %v5508
        %v5510 = vpop.f32.mrb[0].mxu0
        %v5511 = vadd.f32 %v5216, %v5510
        %v5512 = vpop.f32.mrb[0].mxu0
        %v5513 = vadd.f32 %v5212, %v5512
        %v5514 = vpop.f32.mrb[0].mxu0
        %v5515 = vadd.f32 %v5216, %v5514
        %5516 = vmatprep.mubr.bf16.mxu0 0
        %5517 = vmatmul.mubr.bf16.gmra.mrb[0].mxu0 %v5166
        %v5518 = vpop.f32.mrb[0].mxu0
        %v5519 = vadd.f32 %v5212, %v5518
        %v5520 = vpop.f32.mrb[0].mxu0
        %v5521 = vadd.f32 %v5216, %v5520
        %v5522 = vpop.f32.mrb[0].mxu0
        %v5523 = vadd.f32 %v5212, %v5522
        %v5524 = vpop.f32.mrb[0].mxu0
        %v5525 = vadd.f32 %v5216, %v5524
        %5526 = vdwg.mxu0
        %v5527 = vmul.f32 %v5416, %v5416
        %v5528 = vmul.f32 %v5418, %v5418
        %v5529 = vmul.f32 %v5489, %v5489
        %v5530 = vmul.f32 %v5491, %v5491
        %v5531 = vmul.f32 %v5420, %v5420
        %v5532 = vmul.f32 %v5422, %v5422
        %v5533 = vmul.f32 %v5493, %v5493
        %v5534 = vmul.f32 %v5495, %v5495
        %v5535 = vmul.f32 %v5426, %v5426
        %v5536 = vmul.f32 %v5428, %v5428
        %v5537 = vmul.f32 %v5499, %v5499
        %v5538 = vmul.f32 %v5501, %v5501
        %v5539 = vmul.f32 %v5430, %v5430
        %v5540 = vmul.f32 %v5432, %v5432
        %v5541 = vmul.f32 %v5503, %v5503
        %v5542 = vmul.f32 %v5505, %v5505
        %v5543 = vmul.f32 %v5436, %v5436
        %v5544 = vmul.f32 %v5438, %v5438
        %v5545 = vmul.f32 %v5509, %v5509
        %v5546 = vmul.f32 %v5511, %v5511
        %v5547 = vmul.f32 %v5440, %v5440
        %v5548 = vmul.f32 %v5442, %v5442
        %v5549 = vmul.f32 %v5513, %v5513
        %v5550 = vmul.f32 %v5515, %v5515
        %v5551 = vmul.f32 %v5446, %v5446
        %v5552 = vmul.f32 %v5448, %v5448
        %v5553 = vmul.f32 %v5519, %v5519
        %v5554 = vmul.f32 %v5521, %v5521
        %v5555 = vmul.f32 %v5450, %v5450
        %v5556 = vmul.f32 %v5452, %v5452
        %v5557 = vmul.f32 %v5523, %v5523
        %v5558 = vmul.f32 %v5525, %v5525
        %v5559 = vmul.f32 %v5416, %v5527
        %v5560 = vmul.f32 %v5418, %v5528
        %v5561 = vmul.f32 %v5489, %v5529
        %v5562 = vmul.f32 %v5491, %v5530
        %v5563 = vmul.f32 %v5420, %v5531
        %v5564 = vmul.f32 %v5422, %v5532
        %v5565 = vmul.f32 %v5493, %v5533
        %v5566 = vmul.f32 %v5495, %v5534
        %v5567 = vmul.f32 %v5426, %v5535
        %v5568 = vmul.f32 %v5428, %v5536
        %v5569 = vmul.f32 %v5499, %v5537
        %v5570 = vmul.f32 %v5501, %v5538
        %v5571 = vmul.f32 %v5430, %v5539
        %v5572 = vmul.f32 %v5432, %v5540
        %v5573 = vmul.f32 %v5503, %v5541
        %v5574 = vmul.f32 %v5505, %v5542
        %v5575 = vmul.f32 %v5436, %v5543
        %v5576 = vmul.f32 %v5438, %v5544
        %v5577 = vmul.f32 %v5509, %v5545
        %v5578 = vmul.f32 %v5511, %v5546
        %v5579 = vmul.f32 %v5440, %v5547
        %v5580 = vmul.f32 %v5442, %v5548
        %v5581 = vmul.f32 %v5513, %v5549
        %v5582 = vmul.f32 %v5515, %v5550
        %v5583 = vmul.f32 %v5446, %v5551
        %v5584 = vmul.f32 %v5448, %v5552
        %v5585 = vmul.f32 %v5519, %v5553
        %v5586 = vmul.f32 %v5521, %v5554
        %v5587 = vmul.f32 %v5450, %v5555
        %v5588 = vmul.f32 %v5452, %v5556
        %v5589 = vmul.f32 %v5523, %v5557
        %v5590 = vmul.f32 %v5525, %v5558
        %v5591 = vmul.f32 %v5559, 0.044715
        %v5592 = vmul.f32 %v5560, 0.044715
        %v5593 = vmul.f32 %v5561, 0.044715
        %v5594 = vmul.f32 %v5562, 0.044715
        %v5595 = vmul.f32 %v5563, 0.044715
        %v5596 = vmul.f32 %v5564, 0.044715
        %v5597 = vmul.f32 %v5565, 0.044715
        %v5598 = vmul.f32 %v5566, 0.044715
        %v5599 = vmul.f32 %v5567, 0.044715
        %v5600 = vmul.f32 %v5568, 0.044715
        %v5601 = vmul.f32 %v5569, 0.044715
        %v5602 = vmul.f32 %v5570, 0.044715
        %v5603 = vmul.f32 %v5571, 0.044715
        %v5604 = vmul.f32 %v5572, 0.044715
        %v5605 = vmul.f32 %v5573, 0.044715
        %v5606 = vmul.f32 %v5574, 0.044715
        %v5607 = vmul.f32 %v5575, 0.044715
        %v5608 = vmul.f32 %v5576, 0.044715
        %v5609 = vmul.f32 %v5577, 0.044715
        %v5610 = vmul.f32 %v5578, 0.044715
        %v5611 = vmul.f32 %v5579, 0.044715
        %v5612 = vmul.f32 %v5580, 0.044715
        %v5613 = vmul.f32 %v5581, 0.044715
        %v5614 = vmul.f32 %v5582, 0.044715
        %v5615 = vmul.f32 %v5583, 0.044715
        %v5616 = vmul.f32 %v5584, 0.044715
        %v5617 = vmul.f32 %v5585, 0.044715
        %v5618 = vmul.f32 %v5586, 0.044715
        %v5619 = vmul.f32 %v5587, 0.044715
        %v5620 = vmul.f32 %v5588, 0.044715
        %v5621 = vmul.f32 %v5589, 0.044715
        %v5622 = vmul.f32 %v5590, 0.044715
        %v5623 = vadd.f32 %v5416, %v5591
        %v5624 = vadd.f32 %v5418, %v5592
        %v5625 = vadd.f32 %v5489, %v5593
        %v5626 = vadd.f32 %v5491, %v5594
        %v5627 = vadd.f32 %v5420, %v5595
        %v5628 = vadd.f32 %v5422, %v5596
        %v5629 = vadd.f32 %v5493, %v5597
        %v5630 = vadd.f32 %v5495, %v5598
        %v5631 = vadd.f32 %v5426, %v5599
        %v5632 = vadd.f32 %v5428, %v5600
        %v5633 = vadd.f32 %v5499, %v5601
        %v5634 = vadd.f32 %v5501, %v5602
        %v5635 = vadd.f32 %v5430, %v5603
        %v5636 = vadd.f32 %v5432, %v5604
        %v5637 = vadd.f32 %v5503, %v5605
        %v5638 = vadd.f32 %v5505, %v5606
        %v5639 = vadd.f32 %v5436, %v5607
        %v5640 = vadd.f32 %v5438, %v5608
        %v5641 = vadd.f32 %v5509, %v5609
        %v5642 = vadd.f32 %v5511, %v5610
        %v5643 = vadd.f32 %v5440, %v5611
        %v5644 = vadd.f32 %v5442, %v5612
        %v5645 = vadd.f32 %v5513, %v5613
        %v5646 = vadd.f32 %v5515, %v5614
        %v5647 = vadd.f32 %v5446, %v5615
        %v5648 = vadd.f32 %v5448, %v5616
        %v5649 = vadd.f32 %v5519, %v5617
        %v5650 = vadd.f32 %v5521, %v5618
        %v5651 = vadd.f32 %v5450, %v5619
        %v5652 = vadd.f32 %v5452, %v5620
        %v5653 = vadd.f32 %v5523, %v5621
        %v5654 = vadd.f32 %v5525, %v5622
        %v5655 = vmul.f32 %v5623, 0.7978846
        %v5656 = vmul.f32 %v5624, 0.7978846
        %v5657 = vmul.f32 %v5625, 0.7978846
        %v5658 = vmul.f32 %v5626, 0.7978846
        %v5659 = vmul.f32 %v5627, 0.7978846
        %v5660 = vmul.f32 %v5628, 0.7978846
        %v5661 = vmul.f32 %v5629, 0.7978846
        %v5662 = vmul.f32 %v5630, 0.7978846
        %v5663 = vmul.f32 %v5631, 0.7978846
        %v5664 = vmul.f32 %v5632, 0.7978846
        %v5665 = vmul.f32 %v5633, 0.7978846
        %v5666 = vmul.f32 %v5634, 0.7978846
        %v5667 = vmul.f32 %v5635, 0.7978846
        %v5668 = vmul.f32 %v5636, 0.7978846
        %v5669 = vmul.f32 %v5637, 0.7978846
        %v5670 = vmul.f32 %v5638, 0.7978846
        %v5671 = vmul.f32 %v5639, 0.7978846
        %v5672 = vmul.f32 %v5640, 0.7978846
        %v5673 = vmul.f32 %v5641, 0.7978846
        %v5674 = vmul.f32 %v5642, 0.7978846
        %v5675 = vmul.f32 %v5643, 0.7978846
        %v5676 = vmul.f32 %v5644, 0.7978846
        %v5677 = vmul.f32 %v5645, 0.7978846
        %v5678 = vmul.f32 %v5646, 0.7978846
        %v5679 = vmul.f32 %v5647, 0.7978846
        %v5680 = vmul.f32 %v5648, 0.7978846
        %v5681 = vmul.f32 %v5649, 0.7978846
        %v5682 = vmul.f32 %v5650, 0.7978846
        %v5683 = vmul.f32 %v5651, 0.7978846
        %v5684 = vmul.f32 %v5652, 0.7978846
        %v5685 = vmul.f32 %v5653, 0.7978846
        %v5686 = vmul.f32 %v5654, 0.7978846
        %v5687 = vtanh.pop %v5655
        %v5688 = vtanh.pop %v5656
        %v5689 = vtanh.pop %v5657
        %v5690 = vtanh.pop %v5658
        %v5691 = vtanh.pop %v5659
        %v5692 = vtanh.pop %v5660
        %v5693 = vtanh.pop %v5661
        %v5694 = vtanh.pop %v5662
        %v5695 = vtanh.pop %v5663
        %v5696 = vtanh.pop %v5664
        %v5697 = vtanh.pop %v5665
        %v5698 = vtanh.pop %v5666
        %v5699 = vtanh.pop %v5667
        %v5700 = vtanh.pop %v5668
        %v5701 = vtanh.pop %v5669
        %v5702 = vtanh.pop %v5670
        %v5703 = vtanh.pop %v5671
        %v5704 = vtanh.pop %v5672
        %v5705 = vtanh.pop %v5673
        %v5706 = vtanh.pop %v5674
        %v5707 = vtanh.pop %v5675
        %v5708 = vtanh.pop %v5676
        %v5709 = vtanh.pop %v5677
        %v5710 = vtanh.pop %v5678
        %v5711 = vtanh.pop %v5679
        %v5712 = vtanh.pop %v5680
        %v5713 = vtanh.pop %v5681
        %v5714 = vtanh.pop %v5682
        %v5715 = vtanh.pop %v5683
        %v5716 = vtanh.pop %v5684
        %v5717 = vtanh.pop %v5685
        %v5718 = vtanh.pop %v5686
        %v5719 = vadd.f32 %v5687, 1.0
        %v5720 = vadd.f32 %v5688, 1.0
        %v5721 = vadd.f32 %v5689, 1.0
        %v5722 = vadd.f32 %v5690, 1.0
        %v5723 = vadd.f32 %v5691, 1.0
        %v5724 = vadd.f32 %v5692, 1.0
        %v5725 = vadd.f32 %v5693, 1.0
        %v5726 = vadd.f32 %v5694, 1.0
        %v5727 = vadd.f32 %v5695, 1.0
        %v5728 = vadd.f32 %v5696, 1.0
        %v5729 = vadd.f32 %v5697, 1.0
        %v5730 = vadd.f32 %v5698, 1.0
        %v5731 = vadd.f32 %v5699, 1.0
        %v5732 = vadd.f32 %v5700, 1.0
        %v5733 = vadd.f32 %v5701, 1.0
        %v5734 = vadd.f32 %v5702, 1.0
        %v5735 = vadd.f32 %v5703, 1.0
        %v5736 = vadd.f32 %v5704, 1.0
        %v5737 = vadd.f32 %v5705, 1.0
        %v5738 = vadd.f32 %v5706, 1.0
        %v5739 = vadd.f32 %v5707, 1.0
        %v5740 = vadd.f32 %v5708, 1.0
        %v5741 = vadd.f32 %v5709, 1.0
        %v5742 = vadd.f32 %v5710, 1.0
        %v5743 = vadd.f32 %v5711, 1.0
        %v5744 = vadd.f32 %v5712, 1.0
        %v5745 = vadd.f32 %v5713, 1.0
        %v5746 = vadd.f32 %v5714, 1.0
        %v5747 = vadd.f32 %v5715, 1.0
        %v5748 = vadd.f32 %v5716, 1.0
        %v5749 = vadd.f32 %v5717, 1.0
        %v5750 = vadd.f32 %v5718, 1.0
        %v5751 = vmul.f32 %v5719, 0.5
        %v5752 = vmul.f32 %v5720, 0.5
        %v5753 = vmul.f32 %v5721, 0.5
        %v5754 = vmul.f32 %v5722, 0.5
        %v5755 = vmul.f32 %v5723, 0.5
        %v5756 = vmul.f32 %v5724, 0.5
        %v5757 = vmul.f32 %v5725, 0.5
        %v5758 = vmul.f32 %v5726, 0.5
        %v5759 = vmul.f32 %v5727, 0.5
        %v5760 = vmul.f32 %v5728, 0.5
        %v5761 = vmul.f32 %v5729, 0.5
        %v5762 = vmul.f32 %v5730, 0.5
        %v5763 = vmul.f32 %v5731, 0.5
        %v5764 = vmul.f32 %v5732, 0.5
        %v5765 = vmul.f32 %v5733, 0.5
        %v5766 = vmul.f32 %v5734, 0.5
        %v5767 = vmul.f32 %v5735, 0.5
        %v5768 = vmul.f32 %v5736, 0.5
        %v5769 = vmul.f32 %v5737, 0.5
        %v5770 = vmul.f32 %v5738, 0.5
        %v5771 = vmul.f32 %v5739, 0.5
        %v5772 = vmul.f32 %v5740, 0.5
        %v5773 = vmul.f32 %v5741, 0.5
        %v5774 = vmul.f32 %v5742, 0.5
        %v5775 = vmul.f32 %v5743, 0.5
        %v5776 = vmul.f32 %v5744, 0.5
        %v5777 = vmul.f32 %v5745, 0.5
        %v5778 = vmul.f32 %v5746, 0.5
        %v5779 = vmul.f32 %v5747, 0.5
        %v5780 = vmul.f32 %v5748, 0.5
        %v5781 = vmul.f32 %v5749, 0.5
        %v5782 = vmul.f32 %v5750, 0.5
        %v5783 = vmul.f32 %v5416, %v5751
        %v5784 = vmul.f32 %v5418, %v5752
        %v5785 = vmul.f32 %v5489, %v5753
        %v5786 = vmul.f32 %v5491, %v5754
        %v5787 = vmul.f32 %v5420, %v5755
        %v5788 = vmul.f32 %v5422, %v5756
        %v5789 = vmul.f32 %v5493, %v5757
        %v5790 = vmul.f32 %v5495, %v5758
        %v5791 = vmul.f32 %v5426, %v5759
        %v5792 = vmul.f32 %v5428, %v5760
        %v5793 = vmul.f32 %v5499, %v5761
        %v5794 = vmul.f32 %v5501, %v5762
        %v5795 = vmul.f32 %v5430, %v5763
        %v5796 = vmul.f32 %v5432, %v5764
        %v5797 = vmul.f32 %v5503, %v5765
        %v5798 = vmul.f32 %v5505, %v5766
        %v5799 = vmul.f32 %v5436, %v5767
        %v5800 = vmul.f32 %v5438, %v5768
        %v5801 = vmul.f32 %v5509, %v5769
        %v5802 = vmul.f32 %v5511, %v5770
        %v5803 = vmul.f32 %v5440, %v5771
        %v5804 = vmul.f32 %v5442, %v5772
        %v5805 = vmul.f32 %v5513, %v5773
        %v5806 = vmul.f32 %v5515, %v5774
        %v5807 = vmul.f32 %v5446, %v5775
        %v5808 = vmul.f32 %v5448, %v5776
        %v5809 = vmul.f32 %v5519, %v5777
        %v5810 = vmul.f32 %v5521, %v5778
        %v5811 = vmul.f32 %v5450, %v5779
        %v5812 = vmul.f32 %v5452, %v5780
        %v5813 = vmul.f32 %v5523, %v5781
        %v5814 = vmul.f32 %v5525, %v5782
        %v5815 = vpack.c.bf16 %v5787, %v5783
        %v5816 = vpack.c.bf16 %v5788, %v5784
        %v5817 = vpack.c.bf16 %v5789, %v5785
        %v5818 = vpack.c.bf16 %v5790, %v5786
        %v5819 = vpack.c.bf16 %v5795, %v5791
        %v5820 = vpack.c.bf16 %v5796, %v5792
        %v5821 = vpack.c.bf16 %v5797, %v5793
        %v5822 = vpack.c.bf16 %v5798, %v5794
        %v5823 = vpack.c.bf16 %v5803, %v5799
        %v5824 = vpack.c.bf16 %v5804, %v5800
        %v5825 = vpack.c.bf16 %v5805, %v5801
        %v5826 = vpack.c.bf16 %v5806, %v5802
        %v5827 = vpack.c.bf16 %v5811, %v5807
        %v5828 = vpack.c.bf16 %v5812, %v5808
        %v5829 = vpack.c.bf16 %v5813, %v5809
        %v5830 = vpack.c.bf16 %v5814, %v5810
        %v5831 = vld [vmem:[%s11] sm:$0xf]
        %v5832 = vld [vmem:[%s11 + $0x4] sm:$0xf]
        %v5833 = vld [vmem:[%s11 + $0x8] sm:$0xf]
        %v5834 = vld [vmem:[%s11 + $0xc] sm:$0xf]
        %v5835 = vld [vmem:[%s11 + $0x10] sm:$0xf]
        %v5836 = vld [vmem:[%s11 + $0x14] sm:$0xf]
        %v5837 = vld [vmem:[%s11 + $0x18] sm:$0xf]
        %v5838 = vld [vmem:[%s11 + $0x1c] sm:$0xf]
        %v5839 = vld [vmem:[%s11 + $0x20] sm:$0xf]
        %v5840 = vld [vmem:[%s11 + $0x24] sm:$0xf]
        %v5841 = vld [vmem:[%s11 + $0x28] sm:$0xf]
        %v5842 = vld [vmem:[%s11 + $0x2c] sm:$0xf]
        %v5843 = vld [vmem:[%s11 + $0x30] sm:$0xf]
        %v5844 = vld [vmem:[%s11 + $0x34] sm:$0xf]
        %v5845 = vld [vmem:[%s11 + $0x38] sm:$0xf]
        %v5846 = vld [vmem:[%s11 + $0x3c] sm:$0xf]
        %v5847 = vld [vmem:[%s11 + $0x40] sm:$0xf]
        %v5848 = vld [vmem:[%s11 + $0x44] sm:$0xf]
        %v5849 = vld [vmem:[%s11 + $0x48] sm:$0xf]
        %v5850 = vld [vmem:[%s11 + $0x4c] sm:$0xf]
        %v5851 = vld [vmem:[%s11 + $0x50] sm:$0xf]
        %v5852 = vld [vmem:[%s11 + $0x54] sm:$0xf]
        %v5853 = vld [vmem:[%s11 + $0x58] sm:$0xf]
        %v5854 = vld [vmem:[%s11 + $0x5c] sm:$0xf]
        %v5855 = vld [vmem:[%s11 + $0x60] sm:$0xf]
        %v5856 = vld [vmem:[%s11 + $0x64] sm:$0xf]
        %v5857 = vld [vmem:[%s11 + $0x68] sm:$0xf]
        %v5858 = vld [vmem:[%s11 + $0x6c] sm:$0xf]
        %v5859 = vld [vmem:[%s11 + $0x70] sm:$0xf]
        %v5860 = vld [vmem:[%s11 + $0x74] sm:$0xf]
        %v5861 = vld [vmem:[%s11 + $0x78] sm:$0xf]
        %v5862 = vld [vmem:[%s11 + $0x7c] sm:$0xf]
        %v5863 = vld [vmem:[%s11 + $0x80] sm:$0xf]
        %v5864 = vld [vmem:[%s11 + $0x84] sm:$0xf]
        %v5865 = vld [vmem:[%s11 + $0x88] sm:$0xf]
        %v5866 = vld [vmem:[%s11 + $0x8c] sm:$0xf]
        %v5867 = vld [vmem:[%s11 + $0x90] sm:$0xf]
        %v5868 = vld [vmem:[%s11 + $0x94] sm:$0xf]
        %v5869 = vld [vmem:[%s11 + $0x98] sm:$0xf]
        %v5870 = vld [vmem:[%s11 + $0x9c] sm:$0xf]
        %v5871 = vld [vmem:[%s11 + $0xa0] sm:$0xf]
        %v5872 = vld [vmem:[%s11 + $0xa4] sm:$0xf]
        %v5873 = vld [vmem:[%s11 + $0xa8] sm:$0xf]
        %v5874 = vld [vmem:[%s11 + $0xac] sm:$0xf]
        %v5875 = vld [vmem:[%s11 + $0xb0] sm:$0xf]
        %v5876 = vld [vmem:[%s11 + $0xb4] sm:$0xf]
        %v5877 = vld [vmem:[%s11 + $0xb8] sm:$0xf]
        %v5878 = vld [vmem:[%s11 + $0xbc] sm:$0xf]
        %v5879 = vld [vmem:[%s11 + $0xc0] sm:$0xf]
        %v5880 = vld [vmem:[%s11 + $0xc4] sm:$0xf]
        %v5881 = vld [vmem:[%s11 + $0xc8] sm:$0xf]
        %v5882 = vld [vmem:[%s11 + $0xcc] sm:$0xf]
        %v5883 = vld [vmem:[%s11 + $0xd0] sm:$0xf]
        %v5884 = vld [vmem:[%s11 + $0xd4] sm:$0xf]
        %v5885 = vld [vmem:[%s11 + $0xd8] sm:$0xf]
        %v5886 = vld [vmem:[%s11 + $0xdc] sm:$0xf]
        %v5887 = vld [vmem:[%s11 + $0xe0] sm:$0xf]
        %v5888 = vld [vmem:[%s11 + $0xe4] sm:$0xf]
        %v5889 = vld [vmem:[%s11 + $0xe8] sm:$0xf]
        %v5890 = vld [vmem:[%s11 + $0xec] sm:$0xf]
        %v5891 = vld [vmem:[%s11 + $0xf0] sm:$0xf]
        %v5892 = vld [vmem:[%s11 + $0xf4] sm:$0xf]
        %v5893 = vld [vmem:[%s11 + $0xf8] sm:$0xf]
        %v5894 = vld [vmem:[%s11 + $0xfc] sm:$0xf]
        %v5895 = vld [vmem:[%s12] sm:$0x1]
        %v5897 = vlaneseq
        %v5898 = vshrl.u32 %v5897, 7
        %v5899 = vsub.s32 0, %v5898
        %v5900 = vrot.slane %v5895, %v5899
        %v5966 = vunpack.c.l.b16 %v5831
        %v5967 = vunpack.c.l.b16 %v5832
        %v5968 = vunpack.c.l.b16 %v5833
        %v5969 = vunpack.c.l.b16 %v5834
        %v5970 = vunpack.c.l.b16 %v5835
        %v5971 = vunpack.c.l.b16 %v5836
        %v5972 = vunpack.c.l.b16 %v5837
        %v5973 = vunpack.c.l.b16 %v5838
        %v5974 = vunpack.c.l.b16 %v5839
        %v5975 = vunpack.c.l.b16 %v5840
        %v5976 = vunpack.c.l.b16 %v5841
        %v5977 = vunpack.c.l.b16 %v5842
        %v5978 = vunpack.c.l.b16 %v5843
        %v5979 = vunpack.c.l.b16 %v5844
        %v5980 = vunpack.c.l.b16 %v5845
        %v5981 = vunpack.c.l.b16 %v5846
        %v5982 = vunpack.c.l.b16 %v5847
        %v5983 = vunpack.c.l.b16 %v5848
        %v5984 = vunpack.c.l.b16 %v5849
        %v5985 = vunpack.c.l.b16 %v5850
        %v5986 = vunpack.c.l.b16 %v5851
        %v5987 = vunpack.c.l.b16 %v5852
        %v5988 = vunpack.c.l.b16 %v5853
        %v5989 = vunpack.c.l.b16 %v5854
        %v5990 = vunpack.c.l.b16 %v5855
        %v5991 = vunpack.c.l.b16 %v5856
        %v5992 = vunpack.c.l.b16 %v5857
        %v5993 = vunpack.c.l.b16 %v5858
        %v5994 = vunpack.c.l.b16 %v5859
        %v5995 = vunpack.c.l.b16 %v5860
        %v5996 = vunpack.c.l.b16 %v5861
        %v5997 = vunpack.c.l.b16 %v5862
        %v5998 = vunpack.c.l.b16 %v5863
        %v5999 = vunpack.c.l.b16 %v5864
        %v6000 = vunpack.c.l.b16 %v5865
        %v6001 = vunpack.c.l.b16 %v5866
        %v6002 = vunpack.c.l.b16 %v5867
        %v6003 = vunpack.c.l.b16 %v5868
        %v6004 = vunpack.c.l.b16 %v5869
        %v6005 = vunpack.c.l.b16 %v5870
        %v6006 = vunpack.c.l.b16 %v5871
        %v6007 = vunpack.c.l.b16 %v5872
        %v6008 = vunpack.c.l.b16 %v5873
        %v6009 = vunpack.c.l.b16 %v5874
        %v6010 = vunpack.c.l.b16 %v5875
        %v6011 = vunpack.c.l.b16 %v5876
        %v6012 = vunpack.c.l.b16 %v5877
        %v6013 = vunpack.c.l.b16 %v5878
        %v6014 = vunpack.c.l.b16 %v5879
        %v6015 = vunpack.c.l.b16 %v5880
        %v6016 = vunpack.c.l.b16 %v5881
        %v6017 = vunpack.c.l.b16 %v5882
        %v6018 = vunpack.c.l.b16 %v5883
        %v6019 = vunpack.c.l.b16 %v5884
        %v6020 = vunpack.c.l.b16 %v5885
        %v6021 = vunpack.c.l.b16 %v5886
        %v6022 = vunpack.c.l.b16 %v5887
        %v6023 = vunpack.c.l.b16 %v5888
        %v6024 = vunpack.c.l.b16 %v5889
        %v6025 = vunpack.c.l.b16 %v5890
        %v6026 = vunpack.c.l.b16 %v5891
        %v6027 = vunpack.c.l.b16 %v5892
        %v6028 = vunpack.c.l.b16 %v5893
        %v6029 = vunpack.c.l.b16 %v5894
        %v6030 = vpack.c.b16 %v5967, %v5966
        %v6031 = vpack.c.b16 %v5969, %v5968
        %v6032 = vpack.c.b16 %v5971, %v5970
        %v6033 = vpack.c.b16 %v5973, %v5972
        %v6034 = vpack.c.b16 %v5975, %v5974
        %v6035 = vpack.c.b16 %v5977, %v5976
        %v6036 = vpack.c.b16 %v5979, %v5978
        %v6037 = vpack.c.b16 %v5981, %v5980
        %v6038 = vpack.c.b16 %v5983, %v5982
        %v6039 = vpack.c.b16 %v5985, %v5984
        %v6040 = vpack.c.b16 %v5987, %v5986
        %v6041 = vpack.c.b16 %v5989, %v5988
        %v6042 = vpack.c.b16 %v5991, %v5990
        %v6043 = vpack.c.b16 %v5993, %v5992
        %v6044 = vpack.c.b16 %v5995, %v5994
        %v6045 = vpack.c.b16 %v5997, %v5996
        %v6046 = vpack.c.b16 %v5999, %v5998
        %v6047 = vpack.c.b16 %v6001, %v6000
        %v6048 = vpack.c.b16 %v6003, %v6002
        %v6049 = vpack.c.b16 %v6005, %v6004
        %v6050 = vpack.c.b16 %v6007, %v6006
        %v6051 = vpack.c.b16 %v6009, %v6008
        %v6052 = vpack.c.b16 %v6011, %v6010
        %v6053 = vpack.c.b16 %v6013, %v6012
        %v6054 = vpack.c.b16 %v6015, %v6014
        %v6055 = vpack.c.b16 %v6017, %v6016
        %v6056 = vpack.c.b16 %v6019, %v6018
        %v6057 = vpack.c.b16 %v6021, %v6020
        %v6058 = vpack.c.b16 %v6023, %v6022
        %v6059 = vpack.c.b16 %v6025, %v6024
        %v6060 = vpack.c.b16 %v6027, %v6026
        %v6061 = vpack.c.b16 %v6029, %v6028
        %6094 = vmatprep.subr.bf16.mxu0 0
        %6095 = vmatpush1.bf16.msra.mxu0 %v6030
        %6096 = vmatprep.subr.bf16.mxu0 0
        %6097 = vmatpush1.bf16.msra.mxu0 %v6031
        %6098 = vmatprep.subr.bf16.mxu0 0
        %6099 = vmatpush1.bf16.msra.mxu0 %v6032
        %6100 = vmatprep.subr.bf16.mxu0 0
        %6101 = vmatpush1.bf16.msra.mxu0 %v6033
        %6102 = vmatprep.subr.bf16.mxu0 0
        %6103 = vmatpush1.bf16.msra.mxu0 %v6034
        %6104 = vmatprep.subr.bf16.mxu0 0
        %6105 = vmatpush1.bf16.msra.mxu0 %v6035
        %6106 = vmatprep.subr.bf16.mxu0 0
        %6107 = vmatpush1.bf16.msra.mxu0 %v6036
        %6108 = vmatprep.subr.bf16.mxu0 0
        %6109 = vmatpush1.bf16.msra.mxu0 %v6037
        %6110 = vmatprep.subr.bf16.mxu0 0
        %6111 = vmatpush1.bf16.msra.mxu0 %v6038
        %6112 = vmatprep.subr.bf16.mxu0 0
        %6113 = vmatpush1.bf16.msra.mxu0 %v6039
        %6114 = vmatprep.subr.bf16.mxu0 0
        %6115 = vmatpush1.bf16.msra.mxu0 %v6040
        %6116 = vmatprep.subr.bf16.mxu0 0
        %6117 = vmatpush1.bf16.msra.mxu0 %v6041
        %6118 = vmatprep.subr.bf16.mxu0 0
        %6119 = vmatpush1.bf16.msra.mxu0 %v6042
        %6120 = vmatprep.subr.bf16.mxu0 0
        %6121 = vmatpush1.bf16.msra.mxu0 %v6043
        %6122 = vmatprep.subr.bf16.mxu0 0
        %6123 = vmatpush1.bf16.msra.mxu0 %v6044
        %6124 = vmatprep.subr.bf16.mxu0 0
        %6125 = vmatpush1.bf16.msra.mxu0 %v6045
        %6126 = vmatprep.mubr.bf16.mxu0 %v5816
        %6127 = vmatmul.mubr.bf16.gmra.mrb[0].mxu0 %v5815
        %v6128 = vpop.f32.mrb[0].mxu0
        %v6129 = vadd.f32 %v5900, %v6128
        %v6130 = vpop.f32.mrb[0].mxu0
        %v6131 = vpop.f32.mrb[0].mxu0
        %v6132 = vadd.f32 %v5900, %v6131
        %v6133 = vpop.f32.mrb[0].mxu0
        %6134 = vmatprep.mubr.bf16.mxu0 %v5820
        %6135 = vmatmul.mubr.bf16.gmra.mrb[0].mxu0 %v5819
        %v6136 = vpop.f32.mrb[0].mxu0
        %v6137 = vadd.f32 %v5900, %v6136
        %v6138 = vpop.f32.mrb[0].mxu0
        %v6139 = vpop.f32.mrb[0].mxu0
        %v6140 = vadd.f32 %v5900, %v6139
        %v6141 = vpop.f32.mrb[0].mxu0
        %6142 = vmatprep.mubr.bf16.mxu0 %v5824
        %6143 = vmatmul.mubr.bf16.gmra.mrb[0].mxu0 %v5823
        %v6144 = vpop.f32.mrb[0].mxu0
        %v6145 = vadd.f32 %v5900, %v6144
        %v6146 = vpop.f32.mrb[0].mxu0
        %v6147 = vpop.f32.mrb[0].mxu0
        %v6148 = vadd.f32 %v5900, %v6147
        %v6149 = vpop.f32.mrb[0].mxu0
        %6150 = vmatprep.mubr.bf16.mxu0 %v5828
        %6151 = vmatmul.mubr.bf16.gmra.mrb[0].mxu0 %v5827
        %v6152 = vpop.f32.mrb[0].mxu0
        %v6153 = vadd.f32 %v5900, %v6152
        %v6154 = vpop.f32.mrb[0].mxu0
        %v6155 = vpop.f32.mrb[0].mxu0
        %v6156 = vadd.f32 %v5900, %v6155
        %v6157 = vpop.f32.mrb[0].mxu0
        %6158 = vdwg.mxu0
        %6159 = vmatprep.subr.bf16.mxu0 0
        %6160 = vmatpush1.bf16.msra.mxu0 %v6046
        %6161 = vmatprep.subr.bf16.mxu0 0
        %6162 = vmatpush1.bf16.msra.mxu0 %v6047
        %6163 = vmatprep.subr.bf16.mxu0 0
        %6164 = vmatpush1.bf16.msra.mxu0 %v6048
        %6165 = vmatprep.subr.bf16.mxu0 0
        %6166 = vmatpush1.bf16.msra.mxu0 %v6049
        %6167 = vmatprep.subr.bf16.mxu0 0
        %6168 = vmatpush1.bf16.msra.mxu0 %v6050
        %6169 = vmatprep.subr.bf16.mxu0 0
        %6170 = vmatpush1.bf16.msra.mxu0 %v6051
        %6171 = vmatprep.subr.bf16.mxu0 0
        %6172 = vmatpush1.bf16.msra.mxu0 %v6052
        %6173 = vmatprep.subr.bf16.mxu0 0
        %6174 = vmatpush1.bf16.msra.mxu0 %v6053
        %6175 = vmatprep.subr.bf16.mxu0 0
        %6176 = vmatpush1.bf16.msra.mxu0 %v6054
        %6177 = vmatprep.subr.bf16.mxu0 0
        %6178 = vmatpush1.bf16.msra.mxu0 %v6055
        %6179 = vmatprep.subr.bf16.mxu0 0
        %6180 = vmatpush1.bf16.msra.mxu0 %v6056
        %6181 = vmatprep.subr.bf16.mxu0 0
        %6182 = vmatpush1.bf16.msra.mxu0 %v6057
        %6183 = vmatprep.subr.bf16.mxu0 0
        %6184 = vmatpush1.bf16.msra.mxu0 %v6058
        %6185 = vmatprep.subr.bf16.mxu0 0
        %6186 = vmatpush1.bf16.msra.mxu0 %v6059
        %6187 = vmatprep.subr.bf16.mxu0 0
        %6188 = vmatpush1.bf16.msra.mxu0 %v6060
        %6189 = vmatprep.subr.bf16.mxu0 0
        %6190 = vmatpush1.bf16.msra.mxu0 %v6061
        %6191 = vmatprep.mubr.bf16.mxu0 %v5818
        %6192 = vmatmul.mubr.bf16.gmra.mrb[0].mxu0 %v5817
        %v6193 = vpop.f32.mrb[0].mxu0
        %v6194 = vadd.f32 %v6129, %v6193
        %v6195 = vpop.f32.mrb[0].mxu0
        %v6196 = vpop.f32.mrb[0].mxu0
        %v6197 = vadd.f32 %v6132, %v6196
        %v6198 = vpop.f32.mrb[0].mxu0
        %6199 = vmatprep.mubr.bf16.mxu0 %v5822
        %6200 = vmatmul.mubr.bf16.gmra.mrb[0].mxu0 %v5821
        %v6201 = vpop.f32.mrb[0].mxu0
        %v6202 = vadd.f32 %v6137, %v6201
        %v6203 = vpop.f32.mrb[0].mxu0
        %v6204 = vpop.f32.mrb[0].mxu0
        %v6205 = vadd.f32 %v6140, %v6204
        %v6206 = vpop.f32.mrb[0].mxu0
        %6207 = vmatprep.mubr.bf16.mxu0 %v5826
        %6208 = vmatmul.mubr.bf16.gmra.mrb[0].mxu0 %v5825
        %v6209 = vpop.f32.mrb[0].mxu0
        %v6210 = vadd.f32 %v6145, %v6209
        %v6211 = vpop.f32.mrb[0].mxu0
        %v6212 = vpop.f32.mrb[0].mxu0
        %v6213 = vadd.f32 %v6148, %v6212
        %v6214 = vpop.f32.mrb[0].mxu0
        %6215 = vmatprep.mubr.bf16.mxu0 %v5830
        %6216 = vmatmul.mubr.bf16.gmra.mrb[0].mxu0 %v5829
        %v6217 = vpop.f32.mrb[0].mxu0
        %v6218 = vadd.f32 %v6153, %v6217
        %v6219 = vpop.f32.mrb[0].mxu0
        %v6220 = vpop.f32.mrb[0].mxu0
        %v6221 = vadd.f32 %v6156, %v6220
        %v6222 = vpop.f32.mrb[0].mxu0
        %6223 = vdwg.mxu0
        %v6224 = vld [vmem:[%s13] sm:$0x1]
        %v6226 = vlaneseq
        %v6227 = vshrl.u32 %v6226, 7
        %v6228 = vsub.s32 0, %v6227
        %v6229 = vrot.slane %v6224, %v6228
        %v6231 = vmul.f32 %v6229, %v6194
        %v6232 = vmul.f32 %v6229, %v6197
        %v6233 = vmul.f32 %v6229, %v6202
        %v6234 = vmul.f32 %v6229, %v6205
        %v6235 = vmul.f32 %v6229, %v6210
        %v6236 = vmul.f32 %v6229, %v6213
        %v6237 = vmul.f32 %v6229, %v6218
        %v6238 = vmul.f32 %v6229, %v6221
        %v6239 = vadd.f32 %v822, %v6231
        %v6240 = vadd.f32 %v823, %v6232
        %v6241 = vadd.f32 %v824, %v6233
        %v6242 = vadd.f32 %v825, %v6234
        %v6243 = vadd.f32 %v826, %v6235
        %v6244 = vadd.f32 %v827, %v6236
        %v6245 = vadd.f32 %v828, %v6237
        %v6246 = vadd.f32 %v829, %v6238
        %v6247 = vadd.f32 %v6239, %v6240
        %v6248 = vadd.f32 %v6247, %v6241
        %v6249 = vadd.f32 %v6248, %v6242
        %v6250 = vadd.f32 %v6249, %v6243
        %v6251 = vadd.f32 %v6250, %v6244
        %v6252 = vadd.f32 %v6251, %v6245
        %v6253 = vadd.f32 %v6252, %v6246
        %v6254 = vrot.slane %v6253, 4
        %v6255 = vadd.f32 %v6253, %v6254
        %v6256 = vrot.slane %v6255, 2
        %v6257 = vadd.f32 %v6255, %v6256
        %v6258 = vrot.slane %v6257, 1
        %v6259 = vadd.f32 %v6257, %v6258
        %v6260 = vrcp.pop 64.0
        %v6261 = vmul.f32 %v6259, %v6260
        %v6262 = vld [vmem:[%s14] sm:$0x1]
        %v6263 = vld [vmem:[%s15] sm:$0x1]
        %6264 = vadd.xlane.f32.xlu0 %v6261
        %v6265 = vpop.xlane.xlu0 %6264
        %v6266 = vmul.f32 %v6265, %v729
        %v6267 = vsub.f32 %v6261, %v6266
        %v6268 = vmul.f32 %v6267, %v6267
        %6269 = vadd.xlane.f32.xlu0 %v6268
        %v6270 = vpop.xlane.xlu0 %6269
        %v6271 = vmul.f32 %v6270, %v729
        %v6272 = vadd.f32 %v6271, 1e-06
        %v6273 = vrsqrt.pop %v6272
        %v6274 = vmul.f32 %v6267, %v6273
        %v6275 = vmul.f32 %v6274, %v6262
        %v6276 = vadd.f32 %v6275, %v6263
        %v6277 = vpack.c.bf16 %v6276, %v6276
        %v6278 = vld [vmem:[%s16] sm:$0xf]
        %v6279 = vld [vmem:[%s16 + $0x4] sm:$0xf]
        %v6280 = vld [vmem:[%s16 + $0x8] sm:$0xf]
        %v6281 = vld [vmem:[%s16 + $0xc] sm:$0xf]
        %v6282 = vld [vmem:[%s16 + $0x10] sm:$0xf]
        %v6283 = vld [vmem:[%s16 + $0x14] sm:$0xf]
        %v6284 = vld [vmem:[%s16 + $0x18] sm:$0xf]
        %v6285 = vld [vmem:[%s16 + $0x1c] sm:$0xf]
        %v6286 = vld [vmem:[%s16 + $0x20] sm:$0xf]
        %v6287 = vld [vmem:[%s16 + $0x24] sm:$0xf]
        %v6288 = vld [vmem:[%s16 + $0x28] sm:$0xf]
        %v6289 = vld [vmem:[%s16 + $0x2c] sm:$0xf]
        %v6290 = vld [vmem:[%s16 + $0x30] sm:$0xf]
        %v6291 = vld [vmem:[%s16 + $0x34] sm:$0xf]
        %v6292 = vld [vmem:[%s16 + $0x38] sm:$0xf]
        %v6293 = vld [vmem:[%s16 + $0x3c] sm:$0xf]
        %v6294 = vld [vmem:[%s17] sm:$0x1]
        %v6311 = vunpack.c.l.b16 %v6278
        %v6312 = vunpack.c.l.b16 %v6279
        %v6313 = vunpack.c.l.b16 %v6280
        %v6314 = vunpack.c.l.b16 %v6281
        %v6315 = vunpack.c.l.b16 %v6282
        %v6316 = vunpack.c.l.b16 %v6283
        %v6317 = vunpack.c.l.b16 %v6284
        %v6318 = vunpack.c.l.b16 %v6285
        %v6319 = vunpack.c.l.b16 %v6286
        %v6320 = vunpack.c.l.b16 %v6287
        %v6321 = vunpack.c.l.b16 %v6288
        %v6322 = vunpack.c.l.b16 %v6289
        %v6323 = vunpack.c.l.b16 %v6290
        %v6324 = vunpack.c.l.b16 %v6291
        %v6325 = vunpack.c.l.b16 %v6292
        %v6326 = vunpack.c.l.b16 %v6293
        %v6327 = vpack.c.b16 %v6312, %v6311
        %v6328 = vpack.c.b16 %v6314, %v6313
        %v6329 = vpack.c.b16 %v6316, %v6315
        %v6330 = vpack.c.b16 %v6318, %v6317
        %v6331 = vpack.c.b16 %v6320, %v6319
        %v6332 = vpack.c.b16 %v6322, %v6321
        %v6333 = vpack.c.b16 %v6324, %v6323
        %v6334 = vpack.c.b16 %v6326, %v6325
        %6343 = vmatprep.subr.bf16.mxu0 0
        %6344 = vmatpush1.bf16.msra.mxu0 %v6327
        %6345 = vmatprep.subr.bf16.mxu0 0
        %6346 = vmatpush1.bf16.msra.mxu0 %v6328
        %6347 = vmatprep.subr.bf16.mxu0 0
        %6348 = vmatpush1.bf16.msra.mxu0 %v6329
        %6349 = vmatprep.subr.bf16.mxu0 0
        %6350 = vmatpush1.bf16.msra.mxu0 %v6330
        %6351 = vmatprep.subr.bf16.mxu0 0
        %6352 = vmatpush1.bf16.msra.mxu0 %v6331
        %6353 = vmatprep.subr.bf16.mxu0 0
        %6354 = vmatpush1.bf16.msra.mxu0 %v6332
        %6355 = vmatprep.subr.bf16.mxu0 0
        %6356 = vmatpush1.bf16.msra.mxu0 %v6333
        %6357 = vmatprep.subr.bf16.mxu0 0
        %6358 = vmatpush1.bf16.msra.mxu0 %v6334
        %6359 = vmatprep.subr.bf16.mxu0 0
        %6360 = vmatpush1.bf16.msra.mxu0 0
        %6361 = vmatprep.subr.bf16.mxu0 0
        %6362 = vmatpush1.bf16.msra.mxu0 0
        %6363 = vmatprep.subr.bf16.mxu0 0
        %6364 = vmatpush1.bf16.msra.mxu0 0
        %6365 = vmatprep.subr.bf16.mxu0 0
        %6366 = vmatpush1.bf16.msra.mxu0 0
        %6367 = vmatprep.subr.bf16.mxu0 0
        %6368 = vmatpush1.bf16.msra.mxu0 0
        %6369 = vmatprep.subr.bf16.mxu0 0
        %6370 = vmatpush1.bf16.msra.mxu0 0
        %6371 = vmatprep.subr.bf16.mxu0 0
        %6372 = vmatpush1.bf16.msra.mxu0 0
        %6373 = vmatprep.subr.bf16.mxu0 0
        %6374 = vmatpush1.bf16.msra.mxu0 0
        %6375 = vmatprep.mubr.bf16.mxu0 0
        %6376 = vmatmul.mubr.bf16.gmra.mrb[0].mxu0 %v6277
        %v6377 = vpop.f32.mrb[0].mxu0
        %v6378 = vadd.f32 %v6294, %v6377
        %v6379 = vpop.f32.mrb[0].mxu0
        %v6380 = vpop.f32.mrb[0].mxu0
        %v6381 = vpop.f32.mrb[0].mxu0
        %6382 = vdwg.mxu0
        %6383 = vst [vmem:[%s567] sm:$0x1] %v6378
        %s6384 = sand.u32 %s423, 1
        %s6385 = scalar_lea.sflag [#allocation4], %s6384
        %s6386 = sand.u32 %s423, 1
        %s6387 = scalar_lea.vmem [#allocation3], %s6386
        // Predicated region
        $region93: #{convnext_forward.1} parent=91 // pred_check
          %p6388 = pneg %p433
        $region94: #{convnext_forward.1} parent=91 // pred_check_branch
          %6390 = sbr.rel (%p6388) target = $region96
        $region95: #{convnext_forward.1} parent=91 // pred_region
          %s6392 = ssub.s32 16, 16
          %6393 = vsyncadd %s6385, %s6392
          %s6394 = smul.addr %s32, 16
          %s6395 = scalar_lea.hbm %s18, %s6394
          %s6397 = sshll.u32 %s6387, 4
          %s6398 = int_to_ptr.vmem [resolvable:$true] %s6397
          %6400 = dma.vmem_to_hbm [thread:$0]  %s6398, 16, %s6395, %s6385
        $region96: #{convnext_forward.1} parent=91 // pred_fallthru
          _
      $region92: #{convnext_forward.1} parent=5 // pred_fallthru
        _
      %p6401 = scmp.le.s32.totalorder 2, %s27
      // Predicated region
      $region97: #{convnext_forward.1} parent=5 // pred_check
        %p6402 = pneg %p6401
      $region98: #{convnext_forward.1} parent=5 // pred_check_branch
        %6404 = sbr.rel (%p6402) target = $region100
      $region99: #{convnext_forward.1} parent=5 // pred_region
        %s6405 = ssub.s32 %s27, 2
        // Predicated region
        $region101: #{convnext_forward.1} parent=99 // pred_check
          %p6406 = pneg %p439
        $region102: #{convnext_forward.1} parent=99 // pred_check_branch
          %6408 = sbr.rel (%p6406) target = $region104
        $region103: #{convnext_forward.1} parent=99 // pred_region
          %s6409 = sand.u32 %s424, 1
          %s6410 = scalar_lea.sflag [#allocation4], %s6409
          %s6411 = sand.u32 %s424, 1
          %s6412 = scalar_lea.vmem [#allocation3], %s6411
          %6413 = dma.done %s6410, 16
        $region104: #{convnext_forward.1} parent=99 // pred_fallthru
          _
      $region100: #{convnext_forward.1} parent=5 // pred_fallthru
        _
    $region6: #{convnext_forward.1} parent=1 // loop_footer
      %s31 = sadd.s32 1, %s27
    $region7: #{convnext_forward.1} parent=1 // loop_footer_branch
      %26 = sbr.rel target = $region3
    $region8: #{convnext_forward.1} parent=1 // loop_exit
      _
    %6414 = vsyncpa [#allocation4], 1
    %s6415 = scalar_lea.sflag [#allocation4], 1
    %6416 = vsyncpa %s6415, 1

</llo_original>
